<compile_context>
chip_gen: v6e
topology: v6e:2x2x1
jax: 0.10.0
libtpu: 0.0.40
codegen_flags: <defaults>
</compile_context>

<pallas_src>
import functools

import jax
import jax.numpy as jnp
from jax import lax
from jax.experimental import pallas as pl
from jax.experimental.pallas import tpu as pltpu


# ---------------------------------------------------------------------------
# Packed per-layer parameter layout
# ---------------------------------------------------------------------------
# attn_w : (L, 8, D, D)  bf16   [self wq,wk,wv,wo, cross wq,wk,wv,wo]
# vecs   : (L, 16, D)    f32    rows below
# w1     : (L, D, F)     bf16
# b1     : (L, 1, F)     f32
# w2     : (L, F, D)     bf16
# dec_g/b: (1, D)        f32    (decoder-level shared LayerNorm)
_SA_B = 0      # self-attn  bq,bk,bv,bo  -> rows 0..3
_CA_B = 4      # cross-attn bq,bk,bv,bo  -> rows 4..7
_MLP_B2 = 8
_LNS_G, _LNS_B = 9, 10
_LNC_G, _LNC_B = 11, 12
_LNL_G, _LNL_B = 13, 14
_N_VEC = 16    # padded to a multiple of 8 sublanes

_LN_EPS = 1e-5


# ---------------------------------------------------------------------------
# Fused decoder kernel: one grid step == (one batch element, one decoder layer)
# ---------------------------------------------------------------------------

def _decoder_kernel(tok_ref, ctok_ref, pos_ref, cpos_ref,
                    attn_w_ref, vecs_ref, w1_ref, b1_ref, w2_ref,
                    dec_g_ref, dec_b_ref,
                    feat_ref,
                    tok_scr, memk_scr, memv_scr,
                    *, n_head, mlp_chunk):
    layer = pl.program_id(1)

    @pl.when(layer == 0)
    def _():
        # init the carried tokens and cache bf16 memory keys/values once per batch
        tok_scr[...] = tok_ref[0]
        memk_scr[...] = (ctok_ref[0] + pos_ref[0]).astype(jnp.bfloat16)
        memv_scr[...] = ctok_ref[0].astype(jnp.bfloat16)

    d_model = tok_ref.shape[-1]
    head_dim = d_model // n_head
    scale = 1.0 / (head_dim ** 0.5)

    vec = vecs_ref[0]                      # (16, D) f32: biases + LN params

    def row(i):
        return vec[i:i + 1]                # (1, D)

    def layer_norm(z, g, b):
        mu = jnp.mean(z, axis=-1, keepdims=True)
        zc = z - mu
        var = jnp.mean(zc * zc, axis=-1, keepdims=True)
        return zc * lax.rsqrt(var + _LN_EPS) * g + b

    def mha(xq_bf, xk_bf, xv_bf, base):
        """Multi-head attention; all matmul operands bf16, accumulation f32."""
        wq = attn_w_ref[0, base + 0]       # (D, D) bf16
        wk = attn_w_ref[0, base + 1]
        wv = attn_w_ref[0, base + 2]
        wo = attn_w_ref[0, base + 3]

        q = jnp.dot(xq_bf, wq, preferred_element_type=jnp.float32) + row(base + 0)
        k = jnp.dot(xk_bf, wk, preferred_element_type=jnp.float32) + row(base + 1)
        v = jnp.dot(xv_bf, wv, preferred_element_type=jnp.float32) + row(base + 2)

        ctx_parts = []
        for h in range(n_head):            # static unroll over heads
            sl = slice(h * head_dim, (h + 1) * head_dim)
            s = lax.dot_general(q[:, sl].astype(jnp.bfloat16),
                                k[:, sl].astype(jnp.bfloat16),
                                (((1,), (1,)), ((), ())),
                                preferred_element_type=jnp.float32) * scale
            s = s - jnp.max(s, axis=-1, keepdims=True)
            e = jnp.exp(s)
            p = e * pl.reciprocal(jnp.sum(e, axis=-1, keepdims=True), approx=True)
            ctx_parts.append(jnp.dot(p.astype(jnp.bfloat16),
                                     v[:, sl].astype(jnp.bfloat16),
                                     preferred_element_type=jnp.float32))
        # one full-width bf16 output projection (no per-head skinny f32 matmuls)
        ctx = jnp.concatenate(ctx_parts, axis=-1).astype(jnp.bfloat16)
        return jnp.dot(ctx, wo, preferred_element_type=jnp.float32) + row(base + 3)

    tok = tok_scr[...]                     # (Sq, D) f32, carried across layers
    cpos = cpos_ref[0]                     # (Sq, D) query pos-emb

    # self-attention: q = k = tokens + cross_pos, v = tokens
    qk_bf = (tok + cpos).astype(jnp.bfloat16)
    sa = mha(qk_bf, qk_bf, tok.astype(jnp.bfloat16), _SA_B)
    t1 = layer_norm(tok + sa, row(_LNS_G), row(_LNS_B))

    # cross-attention: q = t1 + cross_pos, k = cross_tokens + pos, v = cross_tokens
    ca = mha((t1 + cpos).astype(jnp.bfloat16), memk_scr[...], memv_scr[...], _CA_B)
    t2 = layer_norm(t1 + ca, row(_LNC_G), row(_LNC_B))

    # MLP (Linear -> ReLU -> Linear) + post-norm; hidden dim processed in chunks to
    # bound the (rows, F) transient; bf16 operands, f32 accumulate.
    f_total = w1_ref.shape[-1]
    t2_bf = t2.astype(jnp.bfloat16)
    m = jnp.zeros(t2.shape, jnp.float32)
    for f0 in range(0, f_total, mlp_chunk):
        f1 = min(f0 + mlp_chunk, f_total)
        h = jnp.dot(t2_bf, w1_ref[0, :, f0:f1], preferred_element_type=jnp.float32)
        h = jnp.maximum(h + b1_ref[0, :, f0:f1], 0.0)
        m = m + jnp.dot(h.astype(jnp.bfloat16), w2_ref[0, f0:f1, :],
                        preferred_element_type=jnp.float32)
    m = m + row(_MLP_B2)
    t3 = layer_norm(t2 + m, row(_LNL_G), row(_LNL_B))

    tok_scr[...] = t3                                               # carry to next layer
    feat_ref[0, 0] = layer_norm(t3, dec_g_ref[...], dec_b_ref[...])  # decoder norm


# ---------------------------------------------------------------------------
# Wrapper: parameter packing + single pallas_call for the whole decoder
# ---------------------------------------------------------------------------

def _const_spec(arr):
    n = arr.ndim
    return pl.BlockSpec(arr.shape, lambda b, l, _n=n: (0,) * _n)


def _batch_spec(per_batch_shape):
    n = len(per_batch_shape)
    return pl.BlockSpec((1,) + tuple(per_batch_shape),
                        lambda b, l, _n=n: (b,) + (0,) * _n)


def _layer_spec(per_layer_shape):
    n = len(per_layer_shape)
    return pl.BlockSpec((1,) + tuple(per_layer_shape),
                        lambda b, l, _n=n: (l,) + (0,) * _n)


def pack_decoder_params(params):
    layers = params["layers"]
    d = layers[0]["ln_self"]["g"].shape[-1]
    zero = jnp.zeros((d,), jnp.float32)

    def per_layer_stack(fn):
        return jnp.stack([fn(lp) for lp in layers], axis=0)

    attn_w = per_layer_stack(lambda lp: jnp.stack(
        [lp["self_attn"][k] for k in ("wq", "wk", "wv", "wo")] +
        [lp["cross_attn"][k] for k in ("wq", "wk", "wv", "wo")],
        axis=0)).astype(jnp.bfloat16)                              # (L, 8, D, D)

    def vec_rows(lp):
        rows = ([lp["self_attn"][k][0] for k in ("bq", "bk", "bv", "bo")] +
                [lp["cross_attn"][k][0] for k in ("bq", "bk", "bv", "bo")] +
                [lp["mlp"]["b2"][0],
                 lp["ln_self"]["g"][0], lp["ln_self"]["b"][0],
                 lp["ln_cross"]["g"][0], lp["ln_cross"]["b"][0],
                 lp["ln_layer"]["g"][0], lp["ln_layer"]["b"][0],
                 zero])
        return jnp.stack(rows, axis=0)                             # (16, D)

    return dict(
        attn_w=attn_w,
        vecs=per_layer_stack(vec_rows).astype(jnp.float32),        # (L, 16, D)
        w1=per_layer_stack(lambda lp: lp["mlp"]["w1"]).astype(jnp.bfloat16),
        b1=per_layer_stack(lambda lp: lp["mlp"]["b1"]).astype(jnp.float32),
        w2=per_layer_stack(lambda lp: lp["mlp"]["w2"]).astype(jnp.bfloat16),
        dec_g=params["decoder_norm"]["g"].astype(jnp.float32),
        dec_b=params["decoder_norm"]["b"].astype(jnp.float32),
    )


def transformer_decoder(params, tokens, cross_tokens, pos, cross_pos, n_head,
                        key_mask=None):
    """Returns list of per-layer features, each = decoder.norm(layer output)."""
    # TODO(synk): key_padding_mask (additive -inf bias over memory keys) not
    # implemented; the decoder default (key_mask=None) is supported.
    assert key_mask is None

    B, Sq, D = tokens.shape
    Sk = cross_tokens.shape[1]
    L = len(params["layers"])
    F = params["layers"][0]["mlp"]["w1"].shape[-1]
    # NOTE: for real deployments D should be a multiple of 128 so stores are
    # lane-dense; the toy config below (D=32) is layout-bound by construction.
    mlp_chunk = min(F, 1024)

    packed = pack_decoder_params(params)

    feats = pl.pallas_call(
        functools.partial(_decoder_kernel, n_head=n_head, mlp_chunk=mlp_chunk),
        out_shape=jax.ShapeDtypeStruct((L, B, Sq, D), jnp.float32),
        grid=(B, L),                       # batch parallel (megacore), layers inner
        in_specs=[
            _batch_spec((Sq, D)),          # tokens
            _batch_spec((Sk, D)),          # cross_tokens (memory)
            _batch_spec((Sk, D)),          # pos (memory pos-emb)
            _batch_spec((Sq, D)),          # cross_pos (query pos-emb)
            _layer_spec((8, D, D)),        # attn_w
            _layer_spec((_N_VEC, D)),      # vecs
            _layer_spec((D, F)),           # w1
            _layer_spec((1, F)),           # b1
            _layer_spec((F, D)),           # w2
            _const_spec(packed["dec_g"]), _const_spec(packed["dec_b"]),
        ],
        out_specs=pl.BlockSpec((1, 1, Sq, D), lambda b, l: (l, b, 0, 0)),
        scratch_shapes=[
            pltpu.VMEM((Sq, D), jnp.float32),    # tokens carried across layers
            pltpu.VMEM((Sk, D), jnp.bfloat16),   # cached memory keys (ctok + pos)
            pltpu.VMEM((Sk, D), jnp.bfloat16),   # cached memory values (ctok)
        ],
        compiler_params=pltpu.CompilerParams(
            dimension_semantics=("parallel", "arbitrary"),
            vmem_limit_bytes=48 * 1024 * 1024),  # <= v7x 64 MiB physical; > default
    )(tokens, cross_tokens, pos, cross_pos,
      packed["attn_w"], packed["vecs"], packed["w1"], packed["b1"], packed["w2"],
      packed["dec_g"], packed["dec_b"])

    return [feats[l] for l in range(L)]


# ---------------------------------------------------------------------------
# Parameter init (weights stored [in, out] = transpose of torch Linear.weight)
# ---------------------------------------------------------------------------

def _init_attn(key, d):
    ks = jax.random.split(key, 8)
    s = 0.05
    return dict(
        wq=jax.random.normal(ks[0], (d, d), jnp.float32) * s,
        wk=jax.random.normal(ks[1], (d, d), jnp.float32) * s,
        wv=jax.random.normal(ks[2], (d, d), jnp.float32) * s,
        wo=jax.random.normal(ks[3], (d, d), jnp.float32) * s,
        bq=jax.random.normal(ks[4], (1, d), jnp.float32) * s,
        bk=jax.random.normal(ks[5], (1, d), jnp.float32) * s,
        bv=jax.random.normal(ks[6], (1, d), jnp.float32) * s,
        bo=jax.random.normal(ks[7], (1, d), jnp.float32) * s,
    )


def _init_ln(d):
    # PyTorch LayerNorm default init: weight=1, bias=0
    return dict(g=jnp.ones((1, d), jnp.float32), b=jnp.zeros((1, d), jnp.float32))


def _init_layer(key, d, f):
    ks = jax.random.split(key, 6)
    s = 0.05
    return dict(
        self_attn=_init_attn(ks[0], d),
        cross_attn=_init_attn(ks[1], d),
        ln_self=_init_ln(d),
        ln_cross=_init_ln(d),
        ln_layer=_init_ln(d),
        mlp=dict(
            w1=jax.random.normal(ks[2], (d, f), jnp.float32) * s,
            b1=jax.random.normal(ks[3], (1, f), jnp.float32) * s,
            w2=jax.random.normal(ks[4], (f, d), jnp.float32) * s,
            b2=jax.random.normal(ks[5], (1, d), jnp.float32) * s,
        ),
    )


def init_decoder(key, d_model, n_layers, dim_ff):
    return dict(
        layers=[_init_layer(jax.random.fold_in(key, i), d_model, dim_ff)
                for i in range(n_layers)],
        decoder_norm=_init_ln(d_model),
    )


# ---------------------------------------------------------------------------
# Pure-JAX f32 reference (sanity check)
# ---------------------------------------------------------------------------

def _ref_mha(q_in, k_in, v_in, p, n_head):
    d = q_in.shape[-1]
    hd = d // n_head
    q = q_in @ p["wq"] + p["bq"][0]
    k = k_in @ p["wk"] + p["bk"][0]
    v = v_in @ p["wv"] + p["bv"][0]
    B, Sq, _ = q.shape
    Sk = k.shape[1]
    qh = q.reshape(B, Sq, n_head, hd)
    kh = k.reshape(B, Sk, n_head, hd)
    vh = v.reshape(B, Sk, n_head, hd)
    s = jnp.einsum("bqhd,bkhd->bhqk", qh, kh) / (hd ** 0.5)
    a = jax.nn.softmax(s, axis=-1)
    ctx = jnp.einsum("bhqk,bkhd->bqhd", a, vh).reshape(B, Sq, d)
    return ctx @ p["wo"] + p["bo"][0]


def _ref_ln(x, p):
    mu = x.mean(-1, keepdims=True)
    var = ((x - mu) ** 2).mean(-1, keepdims=True)
    return (x - mu) * jax.lax.rsqrt(var + _LN_EPS) * p["g"][0] + p["b"][0]


def _reference(params, tokens, cross_tokens, pos, cross_pos, n_head):
    feats = []
    for lp in params["layers"]:
        qk = tokens + cross_pos
        t1 = _ref_ln(tokens + _ref_mha(qk, qk, tokens, lp["self_attn"], n_head),
                     lp["ln_self"])
        ca = _ref_mha(t1 + cross_pos, cross_tokens + pos, cross_tokens,
                      lp["cross_attn"], n_head)
        t2 = _ref_ln(t1 + ca, lp["ln_cross"])
        h = jax.nn.relu(t2 @ lp["mlp"]["w1"] + lp["mlp"]["b1"][0])
        h = h @ lp["mlp"]["w2"] + lp["mlp"]["b2"][0]
        tokens = _ref_ln(t2 + h, lp["ln_layer"])
        feats.append(_ref_ln(tokens, params["decoder_norm"]))
    return feats


# ---------------------------------------------------------------------------

if __name__ == "__main__":
    d_model, n_head, n_layers = 32, 8, 2
    dim_ff = 8 * d_model
    B, n_queries, n_mem = 2, 8, 16

    key = jax.random.PRNGKey(0)
    k_par, k_tok, k_mem, k_pos, k_cpos = jax.random.split(key, 5)

    params = init_decoder(k_par, d_model, n_layers, dim_ff)
    tokens = jax.random.normal(k_tok, (B, n_queries, d_model), jnp.float32)
    cross_tokens = jax.random.normal(k_mem, (B, n_mem, d_model), jnp.float32)
    pos = jax.random.normal(k_pos, (B, n_mem, d_model), jnp.float32)              # memory pos-emb
    cross_pos = jax.random.normal(k_cpos, (B, n_queries, d_model), jnp.float32)   # query pos-emb

    feats = transformer_decoder(params, tokens, cross_tokens, pos, cross_pos, n_head)
    feats = jax.block_until_ready(feats)

    ref = _reference(params, tokens, cross_tokens, pos, cross_pos, n_head)
    for f, r in zip(feats, ref):
        assert bool(jnp.all(jnp.isfinite(f)))
        # Tolerance accounts for bf16 MXU operands + approx-reciprocal softmax vs
        # the all-f32 reference.
        assert float(jnp.max(jnp.abs(f - r))) < 5e-2, "mismatch vs reference"

    print("KERNEL_OK")
</pallas_src>

<mosaic_0001>
module attributes {stable_mosaic.version = 11 : i64} {
  func.func @_decoder_kernel(%arg0: i32, %arg1: i32, %arg2: memref<1x8x32xf32, #tpu.memory_space<vmem>>, %arg3: memref<1x16x32xf32, #tpu.memory_space<vmem>>, %arg4: memref<1x16x32xf32, #tpu.memory_space<vmem>>, %arg5: memref<1x8x32xf32, #tpu.memory_space<vmem>>, %arg6: memref<1x8x32x32xbf16, #tpu.memory_space<vmem>>, %arg7: memref<1x16x32xf32, #tpu.memory_space<vmem>>, %arg8: memref<1x32x256xbf16, #tpu.memory_space<vmem>>, %arg9: memref<1x1x256xf32, #tpu.memory_space<vmem>>, %arg10: memref<1x256x32xbf16, #tpu.memory_space<vmem>>, %arg11: memref<1x32xf32, #tpu.memory_space<vmem>>, %arg12: memref<1x32xf32, #tpu.memory_space<vmem>>, %arg13: memref<1x1x8x32xf32, #tpu.memory_space<vmem>>, %arg14: memref<8x32xf32, #tpu.memory_space<vmem>>, %arg15: memref<16x32xbf16, #tpu.memory_space<vmem>>, %arg16: memref<16x32xbf16, #tpu.memory_space<vmem>>) attributes {dimension_semantics = [#tpu.dimension_semantics<parallel>, #tpu.dimension_semantics<arbitrary>], iteration_bounds = array<i64: 2, 2>, scalar_prefetch = 0 : i64, scratch_operands = 3 : i64, tpu.core_type = #tpu.core_type<tc>, window_params = [{transform_indices = @transform_0, window_bounds = array<i64: 1, 8, 32>}, {transform_indices = @transform_1, window_bounds = array<i64: 1, 16, 32>}, {transform_indices = @transform_2, window_bounds = array<i64: 1, 16, 32>}, {transform_indices = @transform_3, window_bounds = array<i64: 1, 8, 32>}, {transform_indices = @transform_4, window_bounds = array<i64: 1, 8, 32, 32>}, {transform_indices = @transform_5, window_bounds = array<i64: 1, 16, 32>}, {transform_indices = @transform_6, window_bounds = array<i64: 1, 32, 256>}, {transform_indices = @transform_7, window_bounds = array<i64: 1, 1, 256>}, {transform_indices = @transform_8, window_bounds = array<i64: 1, 256, 32>}, {pipeline_mode = #tpu.pipeline_mode<synchronous>, transform_indices = @transform_9, window_bounds = array<i64: 1, 32>}, {pipeline_mode = #tpu.pipeline_mode<synchronous>, transform_indices = @transform_10, window_bounds = array<i64: 1, 32>}, {transform_indices = @transform_11, window_bounds = array<i64: 1, 1, 8, 32>}]} {
    %c0_i32 = arith.constant 0 : i32
    %0 = arith.cmpi eq, %arg1, %c0_i32 : i32
    %1 = arith.extui %0 : i1 to i32
    %c0_i32_0 = arith.constant 0 : i32
    %2 = arith.cmpi ne, %1, %c0_i32_0 : i32
    scf.if %2 {
      %c0_167 = arith.constant 0 : index
      %c0_168 = arith.constant 0 : index
      %c0_169 = arith.constant 0 : index
      %517 = vector.load %arg2[%c0_167, %c0_168, %c0_169] : memref<1x8x32xf32, #tpu.memory_space<vmem>>, vector<1x8x32xf32>
      %518 = vector.shape_cast %517 : vector<1x8x32xf32> to vector<8x32xf32>
      %c0_170 = arith.constant 0 : index
      %c0_171 = arith.constant 0 : index
      %519 = vector.load %arg14[%c0_170, %c0_171] : memref<8x32xf32, #tpu.memory_space<vmem>>, vector<8x32xf32>
      tpu.vector_store %arg14[%c0_170, %c0_171], %518 {strides = array<i32>} : memref<8x32xf32, #tpu.memory_space<vmem>>, vector<8x32xf32>,
      %c0_172 = arith.constant 0 : index
      %c0_173 = arith.constant 0 : index
      %c0_174 = arith.constant 0 : index
      %520 = vector.load %arg3[%c0_172, %c0_173, %c0_174] : memref<1x16x32xf32, #tpu.memory_space<vmem>>, vector<1x16x32xf32>
      %521 = vector.shape_cast %520 : vector<1x16x32xf32> to vector<16x32xf32>
      %c0_175 = arith.constant 0 : index
      %c0_176 = arith.constant 0 : index
      %c0_177 = arith.constant 0 : index
      %522 = vector.load %arg4[%c0_175, %c0_176, %c0_177] : memref<1x16x32xf32, #tpu.memory_space<vmem>>, vector<1x16x32xf32>
      %523 = vector.shape_cast %522 : vector<1x16x32xf32> to vector<16x32xf32>
      %524 = arith.addf %521, %523 : vector<16x32xf32>
      %525 = arith.truncf %524 : vector<16x32xf32> to vector<16x32xbf16>
      %c0_178 = arith.constant 0 : index
      %c0_179 = arith.constant 0 : index
      %526 = vector.load %arg15[%c0_178, %c0_179] : memref<16x32xbf16, #tpu.memory_space<vmem>>, vector<16x32xbf16>
      tpu.vector_store %arg15[%c0_178, %c0_179], %525 {strides = array<i32>} : memref<16x32xbf16, #tpu.memory_space<vmem>>, vector<16x32xbf16>,
      %c0_180 = arith.constant 0 : index
      %c0_181 = arith.constant 0 : index
      %c0_182 = arith.constant 0 : index
      %527 = vector.load %arg3[%c0_180, %c0_181, %c0_182] : memref<1x16x32xf32, #tpu.memory_space<vmem>>, vector<1x16x32xf32>
      %528 = vector.shape_cast %527 : vector<1x16x32xf32> to vector<16x32xf32>
      %529 = arith.truncf %528 : vector<16x32xf32> to vector<16x32xbf16>
      %c0_183 = arith.constant 0 : index
      %c0_184 = arith.constant 0 : index
      %530 = vector.load %arg16[%c0_183, %c0_184] : memref<16x32xbf16, #tpu.memory_space<vmem>>, vector<16x32xbf16>
      tpu.vector_store %arg16[%c0_183, %c0_184], %529 {strides = array<i32>} : memref<16x32xbf16, #tpu.memory_space<vmem>>, vector<16x32xbf16>,
    } else {
    }
    %c0 = arith.constant 0 : index
    %c0_1 = arith.constant 0 : index
    %c0_2 = arith.constant 0 : index
    %3 = vector.load %arg7[%c0, %c0_1, %c0_2] : memref<1x16x32xf32, #tpu.memory_space<vmem>>, vector<1x16x32xf32>
    %4 = vector.shape_cast %3 : vector<1x16x32xf32> to vector<16x32xf32>
    %c0_3 = arith.constant 0 : index
    %c0_4 = arith.constant 0 : index
    %5 = vector.load %arg14[%c0_3, %c0_4] : memref<8x32xf32, #tpu.memory_space<vmem>>, vector<8x32xf32>
    %c0_5 = arith.constant 0 : index
    %c0_6 = arith.constant 0 : index
    %c0_7 = arith.constant 0 : index
    %6 = vector.load %arg5[%c0_5, %c0_6, %c0_7] : memref<1x8x32xf32, #tpu.memory_space<vmem>>, vector<1x8x32xf32>
    %7 = vector.shape_cast %6 : vector<1x8x32xf32> to vector<8x32xf32>
    %8 = arith.addf %5, %7 : vector<8x32xf32>
    %9 = arith.truncf %8 : vector<8x32xf32> to vector<8x32xbf16>
    %10 = arith.truncf %5 : vector<8x32xf32> to vector<8x32xbf16>
    %c0_8 = arith.constant 0 : index
    %c0_9 = arith.constant 0 : index
    %c0_10 = arith.constant 0 : index
    %c0_11 = arith.constant 0 : index
    %11 = vector.load %arg6[%c0_8, %c0_9, %c0_10, %c0_11] : memref<1x8x32x32xbf16, #tpu.memory_space<vmem>>, vector<1x1x32x32xbf16>
    %12 = vector.shape_cast %11 : vector<1x1x32x32xbf16> to vector<32x32xbf16>
    %c0_12 = arith.constant 0 : index
    %c1 = arith.constant 1 : index
    %c0_13 = arith.constant 0 : index
    %c0_14 = arith.constant 0 : index
    %13 = vector.load %arg6[%c0_12, %c1, %c0_13, %c0_14] : memref<1x8x32x32xbf16, #tpu.memory_space<vmem>>, vector<1x1x32x32xbf16>
    %14 = vector.shape_cast %13 : vector<1x1x32x32xbf16> to vector<32x32xbf16>
    %c0_15 = arith.constant 0 : index
    %c2 = arith.constant 2 : index
    %c0_16 = arith.constant 0 : index
    %c0_17 = arith.constant 0 : index
    %15 = vector.load %arg6[%c0_15, %c2, %c0_16, %c0_17] : memref<1x8x32x32xbf16, #tpu.memory_space<vmem>>, vector<1x1x32x32xbf16>
    %16 = vector.shape_cast %15 : vector<1x1x32x32xbf16> to vector<32x32xbf16>
    %c0_18 = arith.constant 0 : index
    %c3 = arith.constant 3 : index
    %c0_19 = arith.constant 0 : index
    %c0_20 = arith.constant 0 : index
    %17 = vector.load %arg6[%c0_18, %c3, %c0_19, %c0_20] : memref<1x8x32x32xbf16, #tpu.memory_space<vmem>>, vector<1x1x32x32xbf16>
    %18 = vector.shape_cast %17 : vector<1x1x32x32xbf16> to vector<32x32xbf16>
    %cst = arith.constant dense<0.000000e+00> : vector<8x32xf32>
    %19 = tpu.matmul %9, %12, %cst {dimension_numbers = #tpu.dot_dimension_numbers<[1], [0], [0], [1], [0, 0, 1, 1], [], []>} : vector<8x32xbf16>, vector<32x32xbf16>, vector<8x32xf32> -> vector<8x32xf32>
    %20 = vector.extract_strided_slice %4 {offsets = [0, 0], sizes = [1, 32], strides = [1, 1]} : vector<16x32xf32> to vector<1x32xf32>
    %21 = vector.broadcast %20 : vector<1x32xf32> to vector<8x32xf32>
    %22 = arith.addf %19, %21 : vector<8x32xf32>
    %cst_21 = arith.constant dense<0.000000e+00> : vector<8x32xf32>
    %23 = tpu.matmul %9, %14, %cst_21 {dimension_numbers = #tpu.dot_dimension_numbers<[1], [0], [0], [1], [0, 0, 1, 1], [], []>} : vector<8x32xbf16>, vector<32x32xbf16>, vector<8x32xf32> -> vector<8x32xf32>
    %24 = vector.extract_strided_slice %4 {offsets = [1, 0], sizes = [1, 32], strides = [1, 1]} : vector<16x32xf32> to vector<1x32xf32>
    %25 = vector.broadcast %24 : vector<1x32xf32> to vector<8x32xf32>
    %26 = arith.addf %23, %25 : vector<8x32xf32>
    %cst_22 = arith.constant dense<0.000000e+00> : vector<8x32xf32>
    %27 = tpu.matmul %10, %16, %cst_22 {dimension_numbers = #tpu.dot_dimension_numbers<[1], [0], [0], [1], [0, 0, 1, 1], [], []>} : vector<8x32xbf16>, vector<32x32xbf16>, vector<8x32xf32> -> vector<8x32xf32>
    %28 = vector.extract_strided_slice %4 {offsets = [2, 0], sizes = [1, 32], strides = [1, 1]} : vector<16x32xf32> to vector<1x32xf32>
    %29 = vector.broadcast %28 : vector<1x32xf32> to vector<8x32xf32>
    %30 = arith.addf %27, %29 : vector<8x32xf32>
    %31 = vector.extract_strided_slice %22 {offsets = [0, 0], sizes = [8, 4], strides = [1, 1]} : vector<8x32xf32> to vector<8x4xf32>
    %32 = arith.truncf %31 : vector<8x4xf32> to vector<8x4xbf16>
    %33 = vector.extract_strided_slice %26 {offsets = [0, 0], sizes = [8, 4], strides = [1, 1]} : vector<8x32xf32> to vector<8x4xf32>
    %34 = arith.truncf %33 : vector<8x4xf32> to vector<8x4xbf16>
    %cst_23 = arith.constant dense<0.000000e+00> : vector<8x8xf32>
    %35 = tpu.matmul %32, %34, %cst_23 {dimension_numbers = #tpu.dot_dimension_numbers<[1], [1], [0], [0], [0, 0, 1, 0], [], []>} : vector<8x4xbf16>, vector<8x4xbf16>, vector<8x8xf32> -> vector<8x8xf32>
    %cst_24 = arith.constant 5.000000e-01 : f32
    %36 = vector.broadcast %cst_24 : f32 to vector<8x8xf32>
    %37 = arith.mulf %35, %36 : vector<8x8xf32>
    %cst_25 = arith.constant dense<0xFF800000> : vector<8xf32>
    %38 = vector.multi_reduction <maximumf>, %37, %cst_25 [1] : vector<8x8xf32> to vector<8xf32>
    %39 = vector.shape_cast %38 : vector<8xf32> to vector<8x1xf32>
    %40 = vector.broadcast %39 : vector<8x1xf32> to vector<8x8xf32>
    %41 = arith.subf %37, %40 : vector<8x8xf32>
    %42 = math.exp %41 : vector<8x8xf32>
    %cst_26 = arith.constant dense<0.000000e+00> : vector<8xf32>
    %43 = vector.multi_reduction <add>, %42, %cst_26 [1] : vector<8x8xf32> to vector<8xf32>
    %44 = vector.shape_cast %43 : vector<8xf32> to vector<8x1xf32>
    %45 = tpu.reciprocal %44 {approx = true} : vector<8x1xf32> -> vector<8x1xf32>
    %46 = vector.broadcast %45 : vector<8x1xf32> to vector<8x8xf32>
    %47 = arith.mulf %42, %46 : vector<8x8xf32>
    %48 = arith.truncf %47 : vector<8x8xf32> to vector<8x8xbf16>
    %49 = vector.extract_strided_slice %30 {offsets = [0, 0], sizes = [8, 4], strides = [1, 1]} : vector<8x32xf32> to vector<8x4xf32>
    %50 = arith.truncf %49 : vector<8x4xf32> to vector<8x4xbf16>
    %cst_27 = arith.constant dense<0.000000e+00> : vector<8x4xf32>
    %51 = tpu.matmul %48, %50, %cst_27 {dimension_numbers = #tpu.dot_dimension_numbers<[1], [0], [0], [1], [0, 0, 1, 1], [], []>} : vector<8x8xbf16>, vector<8x4xbf16>, vector<8x4xf32> -> vector<8x4xf32>
    %52 = vector.extract_strided_slice %22 {offsets = [0, 4], sizes = [8, 4], strides = [1, 1]} : vector<8x32xf32> to vector<8x4xf32>
    %53 = arith.truncf %52 : vector<8x4xf32> to vector<8x4xbf16>
    %54 = vector.extract_strided_slice %26 {offsets = [0, 4], sizes = [8, 4], strides = [1, 1]} : vector<8x32xf32> to vector<8x4xf32>
    %55 = arith.truncf %54 : vector<8x4xf32> to vector<8x4xbf16>
    %cst_28 = arith.constant dense<0.000000e+00> : vector<8x8xf32>
    %56 = tpu.matmul %53, %55, %cst_28 {dimension_numbers = #tpu.dot_dimension_numbers<[1], [1], [0], [0], [0, 0, 1, 0], [], []>} : vector<8x4xbf16>, vector<8x4xbf16>, vector<8x8xf32> -> vector<8x8xf32>
    %cst_29 = arith.constant 5.000000e-01 : f32
    %57 = vector.broadcast %cst_29 : f32 to vector<8x8xf32>
    %58 = arith.mulf %56, %57 : vector<8x8xf32>
    %cst_30 = arith.constant dense<0xFF800000> : vector<8xf32>
    %59 = vector.multi_reduction <maximumf>, %58, %cst_30 [1] : vector<8x8xf32> to vector<8xf32>
    %60 = vector.shape_cast %59 : vector<8xf32> to vector<8x1xf32>
    %61 = vector.broadcast %60 : vector<8x1xf32> to vector<8x8xf32>
    %62 = arith.subf %58, %61 : vector<8x8xf32>
    %63 = math.exp %62 : vector<8x8xf32>
    %cst_31 = arith.constant dense<0.000000e+00> : vector<8xf32>
    %64 = vector.multi_reduction <add>, %63, %cst_31 [1] : vector<8x8xf32> to vector<8xf32>
    %65 = vector.shape_cast %64 : vector<8xf32> to vector<8x1xf32>
    %66 = tpu.reciprocal %65 {approx = true} : vector<8x1xf32> -> vector<8x1xf32>
    %67 = vector.broadcast %66 : vector<8x1xf32> to vector<8x8xf32>
    %68 = arith.mulf %63, %67 : vector<8x8xf32>
    %69 = arith.truncf %68 : vector<8x8xf32> to vector<8x8xbf16>
    %70 = vector.extract_strided_slice %30 {offsets = [0, 4], sizes = [8, 4], strides = [1, 1]} : vector<8x32xf32> to vector<8x4xf32>
    %71 = arith.truncf %70 : vector<8x4xf32> to vector<8x4xbf16>
    %cst_32 = arith.constant dense<0.000000e+00> : vector<8x4xf32>
    %72 = tpu.matmul %69, %71, %cst_32 {dimension_numbers = #tpu.dot_dimension_numbers<[1], [0], [0], [1], [0, 0, 1, 1], [], []>} : vector<8x8xbf16>, vector<8x4xbf16>, vector<8x4xf32> -> vector<8x4xf32>
    %73 = vector.extract_strided_slice %22 {offsets = [0, 8], sizes = [8, 4], strides = [1, 1]} : vector<8x32xf32> to vector<8x4xf32>
    %74 = arith.truncf %73 : vector<8x4xf32> to vector<8x4xbf16>
    %75 = vector.extract_strided_slice %26 {offsets = [0, 8], sizes = [8, 4], strides = [1, 1]} : vector<8x32xf32> to vector<8x4xf32>
    %76 = arith.truncf %75 : vector<8x4xf32> to vector<8x4xbf16>
    %cst_33 = arith.constant dense<0.000000e+00> : vector<8x8xf32>
    %77 = tpu.matmul %74, %76, %cst_33 {dimension_numbers = #tpu.dot_dimension_numbers<[1], [1], [0], [0], [0, 0, 1, 0], [], []>} : vector<8x4xbf16>, vector<8x4xbf16>, vector<8x8xf32> -> vector<8x8xf32>
    %cst_34 = arith.constant 5.000000e-01 : f32
    %78 = vector.broadcast %cst_34 : f32 to vector<8x8xf32>
    %79 = arith.mulf %77, %78 : vector<8x8xf32>
    %cst_35 = arith.constant dense<0xFF800000> : vector<8xf32>
    %80 = vector.multi_reduction <maximumf>, %79, %cst_35 [1] : vector<8x8xf32> to vector<8xf32>
    %81 = vector.shape_cast %80 : vector<8xf32> to vector<8x1xf32>
    %82 = vector.broadcast %81 : vector<8x1xf32> to vector<8x8xf32>
    %83 = arith.subf %79, %82 : vector<8x8xf32>
    %84 = math.exp %83 : vector<8x8xf32>
    %cst_36 = arith.constant dense<0.000000e+00> : vector<8xf32>
    %85 = vector.multi_reduction <add>, %84, %cst_36 [1] : vector<8x8xf32> to vector<8xf32>
    %86 = vector.shape_cast %85 : vector<8xf32> to vector<8x1xf32>
    %87 = tpu.reciprocal %86 {approx = true} : vector<8x1xf32> -> vector<8x1xf32>
    %88 = vector.broadcast %87 : vector<8x1xf32> to vector<8x8xf32>
    %89 = arith.mulf %84, %88 : vector<8x8xf32>
    %90 = arith.truncf %89 : vector<8x8xf32> to vector<8x8xbf16>
    %91 = vector.extract_strided_slice %30 {offsets = [0, 8], sizes = [8, 4], strides = [1, 1]} : vector<8x32xf32> to vector<8x4xf32>
    %92 = arith.truncf %91 : vector<8x4xf32> to vector<8x4xbf16>
    %cst_37 = arith.constant dense<0.000000e+00> : vector<8x4xf32>
    %93 = tpu.matmul %90, %92, %cst_37 {dimension_numbers = #tpu.dot_dimension_numbers<[1], [0], [0], [1], [0, 0, 1, 1], [], []>} : vector<8x8xbf16>, vector<8x4xbf16>, vector<8x4xf32> -> vector<8x4xf32>
    %94 = vector.extract_strided_slice %22 {offsets = [0, 12], sizes = [8, 4], strides = [1, 1]} : vector<8x32xf32> to vector<8x4xf32>
    %95 = arith.truncf %94 : vector<8x4xf32> to vector<8x4xbf16>
    %96 = vector.extract_strided_slice %26 {offsets = [0, 12], sizes = [8, 4], strides = [1, 1]} : vector<8x32xf32> to vector<8x4xf32>
    %97 = arith.truncf %96 : vector<8x4xf32> to vector<8x4xbf16>
    %cst_38 = arith.constant dense<0.000000e+00> : vector<8x8xf32>
    %98 = tpu.matmul %95, %97, %cst_38 {dimension_numbers = #tpu.dot_dimension_numbers<[1], [1], [0], [0], [0, 0, 1, 0], [], []>} : vector<8x4xbf16>, vector<8x4xbf16>, vector<8x8xf32> -> vector<8x8xf32>
    %cst_39 = arith.constant 5.000000e-01 : f32
    %99 = vector.broadcast %cst_39 : f32 to vector<8x8xf32>
    %100 = arith.mulf %98, %99 : vector<8x8xf32>
    %cst_40 = arith.constant dense<0xFF800000> : vector<8xf32>
    %101 = vector.multi_reduction <maximumf>, %100, %cst_40 [1] : vector<8x8xf32> to vector<8xf32>
    %102 = vector.shape_cast %101 : vector<8xf32> to vector<8x1xf32>
    %103 = vector.broadcast %102 : vector<8x1xf32> to vector<8x8xf32>
    %104 = arith.subf %100, %103 : vector<8x8xf32>
    %105 = math.exp %104 : vector<8x8xf32>
    %cst_41 = arith.constant dense<0.000000e+00> : vector<8xf32>
    %106 = vector.multi_reduction <add>, %105, %cst_41 [1] : vector<8x8xf32> to vector<8xf32>
    %107 = vector.shape_cast %106 : vector<8xf32> to vector<8x1xf32>
    %108 = tpu.reciprocal %107 {approx = true} : vector<8x1xf32> -> vector<8x1xf32>
    %109 = vector.broadcast %108 : vector<8x1xf32> to vector<8x8xf32>
    %110 = arith.mulf %105, %109 : vector<8x8xf32>
    %111 = arith.truncf %110 : vector<8x8xf32> to vector<8x8xbf16>
    %112 = vector.extract_strided_slice %30 {offsets = [0, 12], sizes = [8, 4], strides = [1, 1]} : vector<8x32xf32> to vector<8x4xf32>
    %113 = arith.truncf %112 : vector<8x4xf32> to vector<8x4xbf16>
    %cst_42 = arith.constant dense<0.000000e+00> : vector<8x4xf32>
    %114 = tpu.matmul %111, %113, %cst_42 {dimension_numbers = #tpu.dot_dimension_numbers<[1], [0], [0], [1], [0, 0, 1, 1], [], []>} : vector<8x8xbf16>, vector<8x4xbf16>, vector<8x4xf32> -> vector<8x4xf32>
    %115 = vector.extract_strided_slice %22 {offsets = [0, 16], sizes = [8, 4], strides = [1, 1]} : vector<8x32xf32> to vector<8x4xf32>
    %116 = arith.truncf %115 : vector<8x4xf32> to vector<8x4xbf16>
    %117 = vector.extract_strided_slice %26 {offsets = [0, 16], sizes = [8, 4], strides = [1, 1]} : vector<8x32xf32> to vector<8x4xf32>
    %118 = arith.truncf %117 : vector<8x4xf32> to vector<8x4xbf16>
    %cst_43 = arith.constant dense<0.000000e+00> : vector<8x8xf32>
    %119 = tpu.matmul %116, %118, %cst_43 {dimension_numbers = #tpu.dot_dimension_numbers<[1], [1], [0], [0], [0, 0, 1, 0], [], []>} : vector<8x4xbf16>, vector<8x4xbf16>, vector<8x8xf32> -> vector<8x8xf32>
    %cst_44 = arith.constant 5.000000e-01 : f32
    %120 = vector.broadcast %cst_44 : f32 to vector<8x8xf32>
    %121 = arith.mulf %119, %120 : vector<8x8xf32>
    %cst_45 = arith.constant dense<0xFF800000> : vector<8xf32>
    %122 = vector.multi_reduction <maximumf>, %121, %cst_45 [1] : vector<8x8xf32> to vector<8xf32>
    %123 = vector.shape_cast %122 : vector<8xf32> to vector<8x1xf32>
    %124 = vector.broadcast %123 : vector<8x1xf32> to vector<8x8xf32>
    %125 = arith.subf %121, %124 : vector<8x8xf32>
    %126 = math.exp %125 : vector<8x8xf32>
    %cst_46 = arith.constant dense<0.000000e+00> : vector<8xf32>
    %127 = vector.multi_reduction <add>, %126, %cst_46 [1] : vector<8x8xf32> to vector<8xf32>
    %128 = vector.shape_cast %127 : vector<8xf32> to vector<8x1xf32>
    %129 = tpu.reciprocal %128 {approx = true} : vector<8x1xf32> -> vector<8x1xf32>
    %130 = vector.broadcast %129 : vector<8x1xf32> to vector<8x8xf32>
    %131 = arith.mulf %126, %130 : vector<8x8xf32>
    %132 = arith.truncf %131 : vector<8x8xf32> to vector<8x8xbf16>
    %133 = vector.extract_strided_slice %30 {offsets = [0, 16], sizes = [8, 4], strides = [1, 1]} : vector<8x32xf32> to vector<8x4xf32>
    %134 = arith.truncf %133 : vector<8x4xf32> to vector<8x4xbf16>
    %cst_47 = arith.constant dense<0.000000e+00> : vector<8x4xf32>
    %135 = tpu.matmul %132, %134, %cst_47 {dimension_numbers = #tpu.dot_dimension_numbers<[1], [0], [0], [1], [0, 0, 1, 1], [], []>} : vector<8x8xbf16>, vector<8x4xbf16>, vector<8x4xf32> -> vector<8x4xf32>
    %136 = vector.extract_strided_slice %22 {offsets = [0, 20], sizes = [8, 4], strides = [1, 1]} : vector<8x32xf32> to vector<8x4xf32>
    %137 = arith.truncf %136 : vector<8x4xf32> to vector<8x4xbf16>
    %138 = vector.extract_strided_slice %26 {offsets = [0, 20], sizes = [8, 4], strides = [1, 1]} : vector<8x32xf32> to vector<8x4xf32>
    %139 = arith.truncf %138 : vector<8x4xf32> to vector<8x4xbf16>
    %cst_48 = arith.constant dense<0.000000e+00> : vector<8x8xf32>
    %140 = tpu.matmul %137, %139, %cst_48 {dimension_numbers = #tpu.dot_dimension_numbers<[1], [1], [0], [0], [0, 0, 1, 0], [], []>} : vector<8x4xbf16>, vector<8x4xbf16>, vector<8x8xf32> -> vector<8x8xf32>
    %cst_49 = arith.constant 5.000000e-01 : f32
    %141 = vector.broadcast %cst_49 : f32 to vector<8x8xf32>
    %142 = arith.mulf %140, %141 : vector<8x8xf32>
    %cst_50 = arith.constant dense<0xFF800000> : vector<8xf32>
    %143 = vector.multi_reduction <maximumf>, %142, %cst_50 [1] : vector<8x8xf32> to vector<8xf32>
    %144 = vector.shape_cast %143 : vector<8xf32> to vector<8x1xf32>
    %145 = vector.broadcast %144 : vector<8x1xf32> to vector<8x8xf32>
    %146 = arith.subf %142, %145 : vector<8x8xf32>
    %147 = math.exp %146 : vector<8x8xf32>
    %cst_51 = arith.constant dense<0.000000e+00> : vector<8xf32>
    %148 = vector.multi_reduction <add>, %147, %cst_51 [1] : vector<8x8xf32> to vector<8xf32>
    %149 = vector.shape_cast %148 : vector<8xf32> to vector<8x1xf32>
    %150 = tpu.reciprocal %149 {approx = true} : vector<8x1xf32> -> vector<8x1xf32>
    %151 = vector.broadcast %150 : vector<8x1xf32> to vector<8x8xf32>
    %152 = arith.mulf %147, %151 : vector<8x8xf32>
    %153 = arith.truncf %152 : vector<8x8xf32> to vector<8x8xbf16>
    %154 = vector.extract_strided_slice %30 {offsets = [0, 20], sizes = [8, 4], strides = [1, 1]} : vector<8x32xf32> to vector<8x4xf32>
    %155 = arith.truncf %154 : vector<8x4xf32> to vector<8x4xbf16>
    %cst_52 = arith.constant dense<0.000000e+00> : vector<8x4xf32>
    %156 = tpu.matmul %153, %155, %cst_52 {dimension_numbers = #tpu.dot_dimension_numbers<[1], [0], [0], [1], [0, 0, 1, 1], [], []>} : vector<8x8xbf16>, vector<8x4xbf16>, vector<8x4xf32> -> vector<8x4xf32>
    %157 = vector.extract_strided_slice %22 {offsets = [0, 24], sizes = [8, 4], strides = [1, 1]} : vector<8x32xf32> to vector<8x4xf32>
    %158 = arith.truncf %157 : vector<8x4xf32> to vector<8x4xbf16>
    %159 = vector.extract_strided_slice %26 {offsets = [0, 24], sizes = [8, 4], strides = [1, 1]} : vector<8x32xf32> to vector<8x4xf32>
    %160 = arith.truncf %159 : vector<8x4xf32> to vector<8x4xbf16>
    %cst_53 = arith.constant dense<0.000000e+00> : vector<8x8xf32>
    %161 = tpu.matmul %158, %160, %cst_53 {dimension_numbers = #tpu.dot_dimension_numbers<[1], [1], [0], [0], [0, 0, 1, 0], [], []>} : vector<8x4xbf16>, vector<8x4xbf16>, vector<8x8xf32> -> vector<8x8xf32>
    %cst_54 = arith.constant 5.000000e-01 : f32
    %162 = vector.broadcast %cst_54 : f32 to vector<8x8xf32>
    %163 = arith.mulf %161, %162 : vector<8x8xf32>
    %cst_55 = arith.constant dense<0xFF800000> : vector<8xf32>
    %164 = vector.multi_reduction <maximumf>, %163, %cst_55 [1] : vector<8x8xf32> to vector<8xf32>
    %165 = vector.shape_cast %164 : vector<8xf32> to vector<8x1xf32>
    %166 = vector.broadcast %165 : vector<8x1xf32> to vector<8x8xf32>
    %167 = arith.subf %163, %166 : vector<8x8xf32>
    %168 = math.exp %167 : vector<8x8xf32>
    %cst_56 = arith.constant dense<0.000000e+00> : vector<8xf32>
    %169 = vector.multi_reduction <add>, %168, %cst_56 [1] : vector<8x8xf32> to vector<8xf32>
    %170 = vector.shape_cast %169 : vector<8xf32> to vector<8x1xf32>
    %171 = tpu.reciprocal %170 {approx = true} : vector<8x1xf32> -> vector<8x1xf32>
    %172 = vector.broadcast %171 : vector<8x1xf32> to vector<8x8xf32>
    %173 = arith.mulf %168, %172 : vector<8x8xf32>
    %174 = arith.truncf %173 : vector<8x8xf32> to vector<8x8xbf16>
    %175 = vector.extract_strided_slice %30 {offsets = [0, 24], sizes = [8, 4], strides = [1, 1]} : vector<8x32xf32> to vector<8x4xf32>
    %176 = arith.truncf %175 : vector<8x4xf32> to vector<8x4xbf16>
    %cst_57 = arith.constant dense<0.000000e+00> : vector<8x4xf32>
    %177 = tpu.matmul %174, %176, %cst_57 {dimension_numbers = #tpu.dot_dimension_numbers<[1], [0], [0], [1], [0, 0, 1, 1], [], []>} : vector<8x8xbf16>, vector<8x4xbf16>, vector<8x4xf32> -> vector<8x4xf32>
    %178 = vector.extract_strided_slice %22 {offsets = [0, 28], sizes = [8, 4], strides = [1, 1]} : vector<8x32xf32> to vector<8x4xf32>
    %179 = arith.truncf %178 : vector<8x4xf32> to vector<8x4xbf16>
    %180 = vector.extract_strided_slice %26 {offsets = [0, 28], sizes = [8, 4], strides = [1, 1]} : vector<8x32xf32> to vector<8x4xf32>
    %181 = arith.truncf %180 : vector<8x4xf32> to vector<8x4xbf16>
    %cst_58 = arith.constant dense<0.000000e+00> : vector<8x8xf32>
    %182 = tpu.matmul %179, %181, %cst_58 {dimension_numbers = #tpu.dot_dimension_numbers<[1], [1], [0], [0], [0, 0, 1, 0], [], []>} : vector<8x4xbf16>, vector<8x4xbf16>, vector<8x8xf32> -> vector<8x8xf32>
    %cst_59 = arith.constant 5.000000e-01 : f32
    %183 = vector.broadcast %cst_59 : f32 to vector<8x8xf32>
    %184 = arith.mulf %182, %183 : vector<8x8xf32>
    %cst_60 = arith.constant dense<0xFF800000> : vector<8xf32>
    %185 = vector.multi_reduction <maximumf>, %184, %cst_60 [1] : vector<8x8xf32> to vector<8xf32>
    %186 = vector.shape_cast %185 : vector<8xf32> to vector<8x1xf32>
    %187 = vector.broadcast %186 : vector<8x1xf32> to vector<8x8xf32>
    %188 = arith.subf %184, %187 : vector<8x8xf32>
    %189 = math.exp %188 : vector<8x8xf32>
    %cst_61 = arith.constant dense<0.000000e+00> : vector<8xf32>
    %190 = vector.multi_reduction <add>, %189, %cst_61 [1] : vector<8x8xf32> to vector<8xf32>
    %191 = vector.shape_cast %190 : vector<8xf32> to vector<8x1xf32>
    %192 = tpu.reciprocal %191 {approx = true} : vector<8x1xf32> -> vector<8x1xf32>
    %193 = vector.broadcast %192 : vector<8x1xf32> to vector<8x8xf32>
    %194 = arith.mulf %189, %193 : vector<8x8xf32>
    %195 = arith.truncf %194 : vector<8x8xf32> to vector<8x8xbf16>
    %196 = vector.extract_strided_slice %30 {offsets = [0, 28], sizes = [8, 4], strides = [1, 1]} : vector<8x32xf32> to vector<8x4xf32>
    %197 = arith.truncf %196 : vector<8x4xf32> to vector<8x4xbf16>
    %cst_62 = arith.constant dense<0.000000e+00> : vector<8x4xf32>
    %198 = tpu.matmul %195, %197, %cst_62 {dimension_numbers = #tpu.dot_dimension_numbers<[1], [0], [0], [1], [0, 0, 1, 1], [], []>} : vector<8x8xbf16>, vector<8x4xbf16>, vector<8x4xf32> -> vector<8x4xf32>
    %199 = tpu.concatenate %51, %72, %93, %114, %135, %156, %177, %198 in 1 : vector<8x4xf32>, vector<8x4xf32>, vector<8x4xf32>, vector<8x4xf32>, vector<8x4xf32>, vector<8x4xf32>, vector<8x4xf32>, vector<8x4xf32> -> vector<8x32xf32>
    %200 = arith.truncf %199 : vector<8x32xf32> to vector<8x32xbf16>
    %cst_63 = arith.constant dense<0.000000e+00> : vector<8x32xf32>
    %201 = tpu.matmul %200, %18, %cst_63 {dimension_numbers = #tpu.dot_dimension_numbers<[1], [0], [0], [1], [0, 0, 1, 1], [], []>} : vector<8x32xbf16>, vector<32x32xbf16>, vector<8x32xf32> -> vector<8x32xf32>
    %202 = vector.extract_strided_slice %4 {offsets = [3, 0], sizes = [1, 32], strides = [1, 1]} : vector<16x32xf32> to vector<1x32xf32>
    %203 = vector.broadcast %202 : vector<1x32xf32> to vector<8x32xf32>
    %204 = arith.addf %201, %203 : vector<8x32xf32>
    %205 = arith.addf %5, %204 : vector<8x32xf32>
    %206 = vector.extract_strided_slice %4 {offsets = [9, 0], sizes = [1, 32], strides = [1, 1]} : vector<16x32xf32> to vector<1x32xf32>
    %207 = vector.extract_strided_slice %4 {offsets = [10, 0], sizes = [1, 32], strides = [1, 1]} : vector<16x32xf32> to vector<1x32xf32>
    %cst_64 = arith.constant dense<0.000000e+00> : vector<8xf32>
    %208 = vector.multi_reduction <add>, %205, %cst_64 [1] : vector<8x32xf32> to vector<8xf32>
    %209 = vector.shape_cast %208 : vector<8xf32> to vector<8x1xf32>
    %cst_65 = arith.constant 3.200000e+01 : f32
    %210 = vector.broadcast %cst_65 : f32 to vector<8x1xf32>
    %211 = arith.divf %209, %210 : vector<8x1xf32>
    %212 = vector.broadcast %211 : vector<8x1xf32> to vector<8x32xf32>
    %213 = arith.subf %205, %212 : vector<8x32xf32>
    %214 = arith.mulf %213, %213 : vector<8x32xf32>
    %cst_66 = arith.constant dense<0.000000e+00> : vector<8xf32>
    %215 = vector.multi_reduction <add>, %214, %cst_66 [1] : vector<8x32xf32> to vector<8xf32>
    %216 = vector.shape_cast %215 : vector<8xf32> to vector<8x1xf32>
    %cst_67 = arith.constant 3.200000e+01 : f32
    %217 = vector.broadcast %cst_67 : f32 to vector<8x1xf32>
    %218 = arith.divf %216, %217 : vector<8x1xf32>
    %cst_68 = arith.constant 9.99999974E-6 : f32
    %219 = vector.broadcast %cst_68 : f32 to vector<8x1xf32>
    %220 = arith.addf %218, %219 : vector<8x1xf32>
    %221 = math.rsqrt %220 : vector<8x1xf32>
    %222 = vector.broadcast %221 : vector<8x1xf32> to vector<8x32xf32>
    %223 = arith.mulf %213, %222 : vector<8x32xf32>
    %224 = vector.broadcast %206 : vector<1x32xf32> to vector<8x32xf32>
    %225 = arith.mulf %223, %224 : vector<8x32xf32>
    %226 = vector.broadcast %207 : vector<1x32xf32> to vector<8x32xf32>
    %227 = arith.addf %225, %226 : vector<8x32xf32>
    %228 = arith.addf %227, %7 : vector<8x32xf32>
    %229 = arith.truncf %228 : vector<8x32xf32> to vector<8x32xbf16>
    %c0_69 = arith.constant 0 : index
    %c0_70 = arith.constant 0 : index
    %230 = vector.load %arg15[%c0_69, %c0_70] : memref<16x32xbf16, #tpu.memory_space<vmem>>, vector<16x32xbf16>
    %c0_71 = arith.constant 0 : index
    %c0_72 = arith.constant 0 : index
    %231 = vector.load %arg16[%c0_71, %c0_72] : memref<16x32xbf16, #tpu.memory_space<vmem>>, vector<16x32xbf16>
    %c0_73 = arith.constant 0 : index
    %c4 = arith.constant 4 : index
    %c0_74 = arith.constant 0 : index
    %c0_75 = arith.constant 0 : index
    %232 = vector.load %arg6[%c0_73, %c4, %c0_74, %c0_75] : memref<1x8x32x32xbf16, #tpu.memory_space<vmem>>, vector<1x1x32x32xbf16>
    %233 = vector.shape_cast %232 : vector<1x1x32x32xbf16> to vector<32x32xbf16>
    %c0_76 = arith.constant 0 : index
    %c5 = arith.constant 5 : index
    %c0_77 = arith.constant 0 : index
    %c0_78 = arith.constant 0 : index
    %234 = vector.load %arg6[%c0_76, %c5, %c0_77, %c0_78] : memref<1x8x32x32xbf16, #tpu.memory_space<vmem>>, vector<1x1x32x32xbf16>
    %235 = vector.shape_cast %234 : vector<1x1x32x32xbf16> to vector<32x32xbf16>
    %c0_79 = arith.constant 0 : index
    %c6 = arith.constant 6 : index
    %c0_80 = arith.constant 0 : index
    %c0_81 = arith.constant 0 : index
    %236 = vector.load %arg6[%c0_79, %c6, %c0_80, %c0_81] : memref<1x8x32x32xbf16, #tpu.memory_space<vmem>>, vector<1x1x32x32xbf16>
    %237 = vector.shape_cast %236 : vector<1x1x32x32xbf16> to vector<32x32xbf16>
    %c0_82 = arith.constant 0 : index
    %c7 = arith.constant 7 : index
    %c0_83 = arith.constant 0 : index
    %c0_84 = arith.constant 0 : index
    %238 = vector.load %arg6[%c0_82, %c7, %c0_83, %c0_84] : memref<1x8x32x32xbf16, #tpu.memory_space<vmem>>, vector<1x1x32x32xbf16>
    %239 = vector.shape_cast %238 : vector<1x1x32x32xbf16> to vector<32x32xbf16>
    %cst_85 = arith.constant dense<0.000000e+00> : vector<8x32xf32>
    %240 = tpu.matmul %229, %233, %cst_85 {dimension_numbers = #tpu.dot_dimension_numbers<[1], [0], [0], [1], [0, 0, 1, 1], [], []>} : vector<8x32xbf16>, vector<32x32xbf16>, vector<8x32xf32> -> vector<8x32xf32>
    %241 = vector.extract_strided_slice %4 {offsets = [4, 0], sizes = [1, 32], strides = [1, 1]} : vector<16x32xf32> to vector<1x32xf32>
    %242 = vector.broadcast %241 : vector<1x32xf32> to vector<8x32xf32>
    %243 = arith.addf %240, %242 : vector<8x32xf32>
    %cst_86 = arith.constant dense<0.000000e+00> : vector<16x32xf32>
    %244 = tpu.matmul %230, %235, %cst_86 {dimension_numbers = #tpu.dot_dimension_numbers<[1], [0], [0], [1], [0, 0, 1, 1], [], []>} : vector<16x32xbf16>, vector<32x32xbf16>, vector<16x32xf32> -> vector<16x32xf32>
    %245 = vector.extract_strided_slice %4 {offsets = [5, 0], sizes = [1, 32], strides = [1, 1]} : vector<16x32xf32> to vector<1x32xf32>
    %246 = vector.broadcast %245 : vector<1x32xf32> to vector<16x32xf32>
    %247 = arith.addf %244, %246 : vector<16x32xf32>
    %cst_87 = arith.constant dense<0.000000e+00> : vector<16x32xf32>
    %248 = tpu.matmul %231, %237, %cst_87 {dimension_numbers = #tpu.dot_dimension_numbers<[1], [0], [0], [1], [0, 0, 1, 1], [], []>} : vector<16x32xbf16>, vector<32x32xbf16>, vector<16x32xf32> -> vector<16x32xf32>
    %249 = vector.extract_strided_slice %4 {offsets = [6, 0], sizes = [1, 32], strides = [1, 1]} : vector<16x32xf32> to vector<1x32xf32>
    %250 = vector.broadcast %249 : vector<1x32xf32> to vector<16x32xf32>
    %251 = arith.addf %248, %250 : vector<16x32xf32>
    %252 = vector.extract_strided_slice %243 {offsets = [0, 0], sizes = [8, 4], strides = [1, 1]} : vector<8x32xf32> to vector<8x4xf32>
    %253 = arith.truncf %252 : vector<8x4xf32> to vector<8x4xbf16>
    %254 = vector.extract_strided_slice %247 {offsets = [0, 0], sizes = [16, 4], strides = [1, 1]} : vector<16x32xf32> to vector<16x4xf32>
    %255 = arith.truncf %254 : vector<16x4xf32> to vector<16x4xbf16>
    %cst_88 = arith.constant dense<0.000000e+00> : vector<8x16xf32>
    %256 = tpu.matmul %253, %255, %cst_88 {dimension_numbers = #tpu.dot_dimension_numbers<[1], [1], [0], [0], [0, 0, 1, 0], [], []>} : vector<8x4xbf16>, vector<16x4xbf16>, vector<8x16xf32> -> vector<8x16xf32>
    %cst_89 = arith.constant 5.000000e-01 : f32
    %257 = vector.broadcast %cst_89 : f32 to vector<8x16xf32>
    %258 = arith.mulf %256, %257 : vector<8x16xf32>
    %cst_90 = arith.constant dense<0xFF800000> : vector<8xf32>
    %259 = vector.multi_reduction <maximumf>, %258, %cst_90 [1] : vector<8x16xf32> to vector<8xf32>
    %260 = vector.shape_cast %259 : vector<8xf32> to vector<8x1xf32>
    %261 = vector.broadcast %260 : vector<8x1xf32> to vector<8x16xf32>
    %262 = arith.subf %258, %261 : vector<8x16xf32>
    %263 = math.exp %262 : vector<8x16xf32>
    %cst_91 = arith.constant dense<0.000000e+00> : vector<8xf32>
    %264 = vector.multi_reduction <add>, %263, %cst_91 [1] : vector<8x16xf32> to vector<8xf32>
    %265 = vector.shape_cast %264 : vector<8xf32> to vector<8x1xf32>
    %266 = tpu.reciprocal %265 {approx = true} : vector<8x1xf32> -> vector<8x1xf32>
    %267 = vector.broadcast %266 : vector<8x1xf32> to vector<8x16xf32>
    %268 = arith.mulf %263, %267 : vector<8x16xf32>
    %269 = arith.truncf %268 : vector<8x16xf32> to vector<8x16xbf16>
    %270 = vector.extract_strided_slice %251 {offsets = [0, 0], sizes = [16, 4], strides = [1, 1]} : vector<16x32xf32> to vector<16x4xf32>
    %271 = arith.truncf %270 : vector<16x4xf32> to vector<16x4xbf16>
    %cst_92 = arith.constant dense<0.000000e+00> : vector<8x4xf32>
    %272 = tpu.matmul %269, %271, %cst_92 {dimension_numbers = #tpu.dot_dimension_numbers<[1], [0], [0], [1], [0, 0, 1, 1], [], []>} : vector<8x16xbf16>, vector<16x4xbf16>, vector<8x4xf32> -> vector<8x4xf32>
    %273 = vector.extract_strided_slice %243 {offsets = [0, 4], sizes = [8, 4], strides = [1, 1]} : vector<8x32xf32> to vector<8x4xf32>
    %274 = arith.truncf %273 : vector<8x4xf32> to vector<8x4xbf16>
    %275 = vector.extract_strided_slice %247 {offsets = [0, 4], sizes = [16, 4], strides = [1, 1]} : vector<16x32xf32> to vector<16x4xf32>
    %276 = arith.truncf %275 : vector<16x4xf32> to vector<16x4xbf16>
    %cst_93 = arith.constant dense<0.000000e+00> : vector<8x16xf32>
    %277 = tpu.matmul %274, %276, %cst_93 {dimension_numbers = #tpu.dot_dimension_numbers<[1], [1], [0], [0], [0, 0, 1, 0], [], []>} : vector<8x4xbf16>, vector<16x4xbf16>, vector<8x16xf32> -> vector<8x16xf32>
    %cst_94 = arith.constant 5.000000e-01 : f32
    %278 = vector.broadcast %cst_94 : f32 to vector<8x16xf32>
    %279 = arith.mulf %277, %278 : vector<8x16xf32>
    %cst_95 = arith.constant dense<0xFF800000> : vector<8xf32>
    %280 = vector.multi_reduction <maximumf>, %279, %cst_95 [1] : vector<8x16xf32> to vector<8xf32>
    %281 = vector.shape_cast %280 : vector<8xf32> to vector<8x1xf32>
    %282 = vector.broadcast %281 : vector<8x1xf32> to vector<8x16xf32>
    %283 = arith.subf %279, %282 : vector<8x16xf32>
    %284 = math.exp %283 : vector<8x16xf32>
    %cst_96 = arith.constant dense<0.000000e+00> : vector<8xf32>
    %285 = vector.multi_reduction <add>, %284, %cst_96 [1] : vector<8x16xf32> to vector<8xf32>
    %286 = vector.shape_cast %285 : vector<8xf32> to vector<8x1xf32>
    %287 = tpu.reciprocal %286 {approx = true} : vector<8x1xf32> -> vector<8x1xf32>
    %288 = vector.broadcast %287 : vector<8x1xf32> to vector<8x16xf32>
    %289 = arith.mulf %284, %288 : vector<8x16xf32>
    %290 = arith.truncf %289 : vector<8x16xf32> to vector<8x16xbf16>
    %291 = vector.extract_strided_slice %251 {offsets = [0, 4], sizes = [16, 4], strides = [1, 1]} : vector<16x32xf32> to vector<16x4xf32>
    %292 = arith.truncf %291 : vector<16x4xf32> to vector<16x4xbf16>
    %cst_97 = arith.constant dense<0.000000e+00> : vector<8x4xf32>
    %293 = tpu.matmul %290, %292, %cst_97 {dimension_numbers = #tpu.dot_dimension_numbers<[1], [0], [0], [1], [0, 0, 1, 1], [], []>} : vector<8x16xbf16>, vector<16x4xbf16>, vector<8x4xf32> -> vector<8x4xf32>
    %294 = vector.extract_strided_slice %243 {offsets = [0, 8], sizes = [8, 4], strides = [1, 1]} : vector<8x32xf32> to vector<8x4xf32>
    %295 = arith.truncf %294 : vector<8x4xf32> to vector<8x4xbf16>
    %296 = vector.extract_strided_slice %247 {offsets = [0, 8], sizes = [16, 4], strides = [1, 1]} : vector<16x32xf32> to vector<16x4xf32>
    %297 = arith.truncf %296 : vector<16x4xf32> to vector<16x4xbf16>
    %cst_98 = arith.constant dense<0.000000e+00> : vector<8x16xf32>
    %298 = tpu.matmul %295, %297, %cst_98 {dimension_numbers = #tpu.dot_dimension_numbers<[1], [1], [0], [0], [0, 0, 1, 0], [], []>} : vector<8x4xbf16>, vector<16x4xbf16>, vector<8x16xf32> -> vector<8x16xf32>
    %cst_99 = arith.constant 5.000000e-01 : f32
    %299 = vector.broadcast %cst_99 : f32 to vector<8x16xf32>
    %300 = arith.mulf %298, %299 : vector<8x16xf32>
    %cst_100 = arith.constant dense<0xFF800000> : vector<8xf32>
    %301 = vector.multi_reduction <maximumf>, %300, %cst_100 [1] : vector<8x16xf32> to vector<8xf32>
    %302 = vector.shape_cast %301 : vector<8xf32> to vector<8x1xf32>
    %303 = vector.broadcast %302 : vector<8x1xf32> to vector<8x16xf32>
    %304 = arith.subf %300, %303 : vector<8x16xf32>
    %305 = math.exp %304 : vector<8x16xf32>
    %cst_101 = arith.constant dense<0.000000e+00> : vector<8xf32>
    %306 = vector.multi_reduction <add>, %305, %cst_101 [1] : vector<8x16xf32> to vector<8xf32>
    %307 = vector.shape_cast %306 : vector<8xf32> to vector<8x1xf32>
    %308 = tpu.reciprocal %307 {approx = true} : vector<8x1xf32> -> vector<8x1xf32>
    %309 = vector.broadcast %308 : vector<8x1xf32> to vector<8x16xf32>
    %310 = arith.mulf %305, %309 : vector<8x16xf32>
    %311 = arith.truncf %310 : vector<8x16xf32> to vector<8x16xbf16>
    %312 = vector.extract_strided_slice %251 {offsets = [0, 8], sizes = [16, 4], strides = [1, 1]} : vector<16x32xf32> to vector<16x4xf32>
    %313 = arith.truncf %312 : vector<16x4xf32> to vector<16x4xbf16>
    %cst_102 = arith.constant dense<0.000000e+00> : vector<8x4xf32>
    %314 = tpu.matmul %311, %313, %cst_102 {dimension_numbers = #tpu.dot_dimension_numbers<[1], [0], [0], [1], [0, 0, 1, 1], [], []>} : vector<8x16xbf16>, vector<16x4xbf16>, vector<8x4xf32> -> vector<8x4xf32>
    %315 = vector.extract_strided_slice %243 {offsets = [0, 12], sizes = [8, 4], strides = [1, 1]} : vector<8x32xf32> to vector<8x4xf32>
    %316 = arith.truncf %315 : vector<8x4xf32> to vector<8x4xbf16>
    %317 = vector.extract_strided_slice %247 {offsets = [0, 12], sizes = [16, 4], strides = [1, 1]} : vector<16x32xf32> to vector<16x4xf32>
    %318 = arith.truncf %317 : vector<16x4xf32> to vector<16x4xbf16>
    %cst_103 = arith.constant dense<0.000000e+00> : vector<8x16xf32>
    %319 = tpu.matmul %316, %318, %cst_103 {dimension_numbers = #tpu.dot_dimension_numbers<[1], [1], [0], [0], [0, 0, 1, 0], [], []>} : vector<8x4xbf16>, vector<16x4xbf16>, vector<8x16xf32> -> vector<8x16xf32>
    %cst_104 = arith.constant 5.000000e-01 : f32
    %320 = vector.broadcast %cst_104 : f32 to vector<8x16xf32>
    %321 = arith.mulf %319, %320 : vector<8x16xf32>
    %cst_105 = arith.constant dense<0xFF800000> : vector<8xf32>
    %322 = vector.multi_reduction <maximumf>, %321, %cst_105 [1] : vector<8x16xf32> to vector<8xf32>
    %323 = vector.shape_cast %322 : vector<8xf32> to vector<8x1xf32>
    %324 = vector.broadcast %323 : vector<8x1xf32> to vector<8x16xf32>
    %325 = arith.subf %321, %324 : vector<8x16xf32>
    %326 = math.exp %325 : vector<8x16xf32>
    %cst_106 = arith.constant dense<0.000000e+00> : vector<8xf32>
    %327 = vector.multi_reduction <add>, %326, %cst_106 [1] : vector<8x16xf32> to vector<8xf32>
    %328 = vector.shape_cast %327 : vector<8xf32> to vector<8x1xf32>
    %329 = tpu.reciprocal %328 {approx = true} : vector<8x1xf32> -> vector<8x1xf32>
    %330 = vector.broadcast %329 : vector<8x1xf32> to vector<8x16xf32>
    %331 = arith.mulf %326, %330 : vector<8x16xf32>
    %332 = arith.truncf %331 : vector<8x16xf32> to vector<8x16xbf16>
    %333 = vector.extract_strided_slice %251 {offsets = [0, 12], sizes = [16, 4], strides = [1, 1]} : vector<16x32xf32> to vector<16x4xf32>
    %334 = arith.truncf %333 : vector<16x4xf32> to vector<16x4xbf16>
    %cst_107 = arith.constant dense<0.000000e+00> : vector<8x4xf32>
    %335 = tpu.matmul %332, %334, %cst_107 {dimension_numbers = #tpu.dot_dimension_numbers<[1], [0], [0], [1], [0, 0, 1, 1], [], []>} : vector<8x16xbf16>, vector<16x4xbf16>, vector<8x4xf32> -> vector<8x4xf32>
    %336 = vector.extract_strided_slice %243 {offsets = [0, 16], sizes = [8, 4], strides = [1, 1]} : vector<8x32xf32> to vector<8x4xf32>
    %337 = arith.truncf %336 : vector<8x4xf32> to vector<8x4xbf16>
    %338 = vector.extract_strided_slice %247 {offsets = [0, 16], sizes = [16, 4], strides = [1, 1]} : vector<16x32xf32> to vector<16x4xf32>
    %339 = arith.truncf %338 : vector<16x4xf32> to vector<16x4xbf16>
    %cst_108 = arith.constant dense<0.000000e+00> : vector<8x16xf32>
    %340 = tpu.matmul %337, %339, %cst_108 {dimension_numbers = #tpu.dot_dimension_numbers<[1], [1], [0], [0], [0, 0, 1, 0], [], []>} : vector<8x4xbf16>, vector<16x4xbf16>, vector<8x16xf32> -> vector<8x16xf32>
    %cst_109 = arith.constant 5.000000e-01 : f32
    %341 = vector.broadcast %cst_109 : f32 to vector<8x16xf32>
    %342 = arith.mulf %340, %341 : vector<8x16xf32>
    %cst_110 = arith.constant dense<0xFF800000> : vector<8xf32>
    %343 = vector.multi_reduction <maximumf>, %342, %cst_110 [1] : vector<8x16xf32> to vector<8xf32>
    %344 = vector.shape_cast %343 : vector<8xf32> to vector<8x1xf32>
    %345 = vector.broadcast %344 : vector<8x1xf32> to vector<8x16xf32>
    %346 = arith.subf %342, %345 : vector<8x16xf32>
    %347 = math.exp %346 : vector<8x16xf32>
    %cst_111 = arith.constant dense<0.000000e+00> : vector<8xf32>
    %348 = vector.multi_reduction <add>, %347, %cst_111 [1] : vector<8x16xf32> to vector<8xf32>
    %349 = vector.shape_cast %348 : vector<8xf32> to vector<8x1xf32>
    %350 = tpu.reciprocal %349 {approx = true} : vector<8x1xf32> -> vector<8x1xf32>
    %351 = vector.broadcast %350 : vector<8x1xf32> to vector<8x16xf32>
    %352 = arith.mulf %347, %351 : vector<8x16xf32>
    %353 = arith.truncf %352 : vector<8x16xf32> to vector<8x16xbf16>
    %354 = vector.extract_strided_slice %251 {offsets = [0, 16], sizes = [16, 4], strides = [1, 1]} : vector<16x32xf32> to vector<16x4xf32>
    %355 = arith.truncf %354 : vector<16x4xf32> to vector<16x4xbf16>
    %cst_112 = arith.constant dense<0.000000e+00> : vector<8x4xf32>
    %356 = tpu.matmul %353, %355, %cst_112 {dimension_numbers = #tpu.dot_dimension_numbers<[1], [0], [0], [1], [0, 0, 1, 1], [], []>} : vector<8x16xbf16>, vector<16x4xbf16>, vector<8x4xf32> -> vector<8x4xf32>
    %357 = vector.extract_strided_slice %243 {offsets = [0, 20], sizes = [8, 4], strides = [1, 1]} : vector<8x32xf32> to vector<8x4xf32>
    %358 = arith.truncf %357 : vector<8x4xf32> to vector<8x4xbf16>
    %359 = vector.extract_strided_slice %247 {offsets = [0, 20], sizes = [16, 4], strides = [1, 1]} : vector<16x32xf32> to vector<16x4xf32>
    %360 = arith.truncf %359 : vector<16x4xf32> to vector<16x4xbf16>
    %cst_113 = arith.constant dense<0.000000e+00> : vector<8x16xf32>
    %361 = tpu.matmul %358, %360, %cst_113 {dimension_numbers = #tpu.dot_dimension_numbers<[1], [1], [0], [0], [0, 0, 1, 0], [], []>} : vector<8x4xbf16>, vector<16x4xbf16>, vector<8x16xf32> -> vector<8x16xf32>
    %cst_114 = arith.constant 5.000000e-01 : f32
    %362 = vector.broadcast %cst_114 : f32 to vector<8x16xf32>
    %363 = arith.mulf %361, %362 : vector<8x16xf32>
    %cst_115 = arith.constant dense<0xFF800000> : vector<8xf32>
    %364 = vector.multi_reduction <maximumf>, %363, %cst_115 [1] : vector<8x16xf32> to vector<8xf32>
    %365 = vector.shape_cast %364 : vector<8xf32> to vector<8x1xf32>
    %366 = vector.broadcast %365 : vector<8x1xf32> to vector<8x16xf32>
    %367 = arith.subf %363, %366 : vector<8x16xf32>
    %368 = math.exp %367 : vector<8x16xf32>
    %cst_116 = arith.constant dense<0.000000e+00> : vector<8xf32>
    %369 = vector.multi_reduction <add>, %368, %cst_116 [1] : vector<8x16xf32> to vector<8xf32>
    %370 = vector.shape_cast %369 : vector<8xf32> to vector<8x1xf32>
    %371 = tpu.reciprocal %370 {approx = true} : vector<8x1xf32> -> vector<8x1xf32>
    %372 = vector.broadcast %371 : vector<8x1xf32> to vector<8x16xf32>
    %373 = arith.mulf %368, %372 : vector<8x16xf32>
    %374 = arith.truncf %373 : vector<8x16xf32> to vector<8x16xbf16>
    %375 = vector.extract_strided_slice %251 {offsets = [0, 20], sizes = [16, 4], strides = [1, 1]} : vector<16x32xf32> to vector<16x4xf32>
    %376 = arith.truncf %375 : vector<16x4xf32> to vector<16x4xbf16>
    %cst_117 = arith.constant dense<0.000000e+00> : vector<8x4xf32>
    %377 = tpu.matmul %374, %376, %cst_117 {dimension_numbers = #tpu.dot_dimension_numbers<[1], [0], [0], [1], [0, 0, 1, 1], [], []>} : vector<8x16xbf16>, vector<16x4xbf16>, vector<8x4xf32> -> vector<8x4xf32>
    %378 = vector.extract_strided_slice %243 {offsets = [0, 24], sizes = [8, 4], strides = [1, 1]} : vector<8x32xf32> to vector<8x4xf32>
    %379 = arith.truncf %378 : vector<8x4xf32> to vector<8x4xbf16>
    %380 = vector.extract_strided_slice %247 {offsets = [0, 24], sizes = [16, 4], strides = [1, 1]} : vector<16x32xf32> to vector<16x4xf32>
    %381 = arith.truncf %380 : vector<16x4xf32> to vector<16x4xbf16>
    %cst_118 = arith.constant dense<0.000000e+00> : vector<8x16xf32>
    %382 = tpu.matmul %379, %381, %cst_118 {dimension_numbers = #tpu.dot_dimension_numbers<[1], [1], [0], [0], [0, 0, 1, 0], [], []>} : vector<8x4xbf16>, vector<16x4xbf16>, vector<8x16xf32> -> vector<8x16xf32>
    %cst_119 = arith.constant 5.000000e-01 : f32
    %383 = vector.broadcast %cst_119 : f32 to vector<8x16xf32>
    %384 = arith.mulf %382, %383 : vector<8x16xf32>
    %cst_120 = arith.constant dense<0xFF800000> : vector<8xf32>
    %385 = vector.multi_reduction <maximumf>, %384, %cst_120 [1] : vector<8x16xf32> to vector<8xf32>
    %386 = vector.shape_cast %385 : vector<8xf32> to vector<8x1xf32>
    %387 = vector.broadcast %386 : vector<8x1xf32> to vector<8x16xf32>
    %388 = arith.subf %384, %387 : vector<8x16xf32>
    %389 = math.exp %388 : vector<8x16xf32>
    %cst_121 = arith.constant dense<0.000000e+00> : vector<8xf32>
    %390 = vector.multi_reduction <add>, %389, %cst_121 [1] : vector<8x16xf32> to vector<8xf32>
    %391 = vector.shape_cast %390 : vector<8xf32> to vector<8x1xf32>
    %392 = tpu.reciprocal %391 {approx = true} : vector<8x1xf32> -> vector<8x1xf32>
    %393 = vector.broadcast %392 : vector<8x1xf32> to vector<8x16xf32>
    %394 = arith.mulf %389, %393 : vector<8x16xf32>
    %395 = arith.truncf %394 : vector<8x16xf32> to vector<8x16xbf16>
    %396 = vector.extract_strided_slice %251 {offsets = [0, 24], sizes = [16, 4], strides = [1, 1]} : vector<16x32xf32> to vector<16x4xf32>
    %397 = arith.truncf %396 : vector<16x4xf32> to vector<16x4xbf16>
    %cst_122 = arith.constant dense<0.000000e+00> : vector<8x4xf32>
    %398 = tpu.matmul %395, %397, %cst_122 {dimension_numbers = #tpu.dot_dimension_numbers<[1], [0], [0], [1], [0, 0, 1, 1], [], []>} : vector<8x16xbf16>, vector<16x4xbf16>, vector<8x4xf32> -> vector<8x4xf32>
    %399 = vector.extract_strided_slice %243 {offsets = [0, 28], sizes = [8, 4], strides = [1, 1]} : vector<8x32xf32> to vector<8x4xf32>
    %400 = arith.truncf %399 : vector<8x4xf32> to vector<8x4xbf16>
    %401 = vector.extract_strided_slice %247 {offsets = [0, 28], sizes = [16, 4], strides = [1, 1]} : vector<16x32xf32> to vector<16x4xf32>
    %402 = arith.truncf %401 : vector<16x4xf32> to vector<16x4xbf16>
    %cst_123 = arith.constant dense<0.000000e+00> : vector<8x16xf32>
    %403 = tpu.matmul %400, %402, %cst_123 {dimension_numbers = #tpu.dot_dimension_numbers<[1], [1], [0], [0], [0, 0, 1, 0], [], []>} : vector<8x4xbf16>, vector<16x4xbf16>, vector<8x16xf32> -> vector<8x16xf32>
    %cst_124 = arith.constant 5.000000e-01 : f32
    %404 = vector.broadcast %cst_124 : f32 to vector<8x16xf32>
    %405 = arith.mulf %403, %404 : vector<8x16xf32>
    %cst_125 = arith.constant dense<0xFF800000> : vector<8xf32>
    %406 = vector.multi_reduction <maximumf>, %405, %cst_125 [1] : vector<8x16xf32> to vector<8xf32>
    %407 = vector.shape_cast %406 : vector<8xf32> to vector<8x1xf32>
    %408 = vector.broadcast %407 : vector<8x1xf32> to vector<8x16xf32>
    %409 = arith.subf %405, %408 : vector<8x16xf32>
    %410 = math.exp %409 : vector<8x16xf32>
    %cst_126 = arith.constant dense<0.000000e+00> : vector<8xf32>
    %411 = vector.multi_reduction <add>, %410, %cst_126 [1] : vector<8x16xf32> to vector<8xf32>
    %412 = vector.shape_cast %411 : vector<8xf32> to vector<8x1xf32>
    %413 = tpu.reciprocal %412 {approx = true} : vector<8x1xf32> -> vector<8x1xf32>
    %414 = vector.broadcast %413 : vector<8x1xf32> to vector<8x16xf32>
    %415 = arith.mulf %410, %414 : vector<8x16xf32>
    %416 = arith.truncf %415 : vector<8x16xf32> to vector<8x16xbf16>
    %417 = vector.extract_strided_slice %251 {offsets = [0, 28], sizes = [16, 4], strides = [1, 1]} : vector<16x32xf32> to vector<16x4xf32>
    %418 = arith.truncf %417 : vector<16x4xf32> to vector<16x4xbf16>
    %cst_127 = arith.constant dense<0.000000e+00> : vector<8x4xf32>
    %419 = tpu.matmul %416, %418, %cst_127 {dimension_numbers = #tpu.dot_dimension_numbers<[1], [0], [0], [1], [0, 0, 1, 1], [], []>} : vector<8x16xbf16>, vector<16x4xbf16>, vector<8x4xf32> -> vector<8x4xf32>
    %420 = tpu.concatenate %272, %293, %314, %335, %356, %377, %398, %419 in 1 : vector<8x4xf32>, vector<8x4xf32>, vector<8x4xf32>, vector<8x4xf32>, vector<8x4xf32>, vector<8x4xf32>, vector<8x4xf32>, vector<8x4xf32> -> vector<8x32xf32>
    %421 = arith.truncf %420 : vector<8x32xf32> to vector<8x32xbf16>
    %cst_128 = arith.constant dense<0.000000e+00> : vector<8x32xf32>
    %422 = tpu.matmul %421, %239, %cst_128 {dimension_numbers = #tpu.dot_dimension_numbers<[1], [0], [0], [1], [0, 0, 1, 1], [], []>} : vector<8x32xbf16>, vector<32x32xbf16>, vector<8x32xf32> -> vector<8x32xf32>
    %423 = vector.extract_strided_slice %4 {offsets = [7, 0], sizes = [1, 32], strides = [1, 1]} : vector<16x32xf32> to vector<1x32xf32>
    %424 = vector.broadcast %423 : vector<1x32xf32> to vector<8x32xf32>
    %425 = arith.addf %422, %424 : vector<8x32xf32>
    %426 = arith.addf %227, %425 : vector<8x32xf32>
    %427 = vector.extract_strided_slice %4 {offsets = [11, 0], sizes = [1, 32], strides = [1, 1]} : vector<16x32xf32> to vector<1x32xf32>
    %428 = vector.extract_strided_slice %4 {offsets = [12, 0], sizes = [1, 32], strides = [1, 1]} : vector<16x32xf32> to vector<1x32xf32>
    %cst_129 = arith.constant dense<0.000000e+00> : vector<8xf32>
    %429 = vector.multi_reduction <add>, %426, %cst_129 [1] : vector<8x32xf32> to vector<8xf32>
    %430 = vector.shape_cast %429 : vector<8xf32> to vector<8x1xf32>
    %cst_130 = arith.constant 3.200000e+01 : f32
    %431 = vector.broadcast %cst_130 : f32 to vector<8x1xf32>
    %432 = arith.divf %430, %431 : vector<8x1xf32>
    %433 = vector.broadcast %432 : vector<8x1xf32> to vector<8x32xf32>
    %434 = arith.subf %426, %433 : vector<8x32xf32>
    %435 = arith.mulf %434, %434 : vector<8x32xf32>
    %cst_131 = arith.constant dense<0.000000e+00> : vector<8xf32>
    %436 = vector.multi_reduction <add>, %435, %cst_131 [1] : vector<8x32xf32> to vector<8xf32>
    %437 = vector.shape_cast %436 : vector<8xf32> to vector<8x1xf32>
    %cst_132 = arith.constant 3.200000e+01 : f32
    %438 = vector.broadcast %cst_132 : f32 to vector<8x1xf32>
    %439 = arith.divf %437, %438 : vector<8x1xf32>
    %cst_133 = arith.constant 9.99999974E-6 : f32
    %440 = vector.broadcast %cst_133 : f32 to vector<8x1xf32>
    %441 = arith.addf %439, %440 : vector<8x1xf32>
    %442 = math.rsqrt %441 : vector<8x1xf32>
    %443 = vector.broadcast %442 : vector<8x1xf32> to vector<8x32xf32>
    %444 = arith.mulf %434, %443 : vector<8x32xf32>
    %445 = vector.broadcast %427 : vector<1x32xf32> to vector<8x32xf32>
    %446 = arith.mulf %444, %445 : vector<8x32xf32>
    %447 = vector.broadcast %428 : vector<1x32xf32> to vector<8x32xf32>
    %448 = arith.addf %446, %447 : vector<8x32xf32>
    %449 = arith.truncf %448 : vector<8x32xf32> to vector<8x32xbf16>
    %cst_134 = arith.constant 0.000000e+00 : f32
    %450 = vector.broadcast %cst_134 : f32 to vector<8x32xf32>
    %c0_135 = arith.constant 0 : index
    %c0_136 = arith.constant 0 : index
    %c0_137 = arith.constant 0 : index
    %451 = vector.load %arg8[%c0_135, %c0_136, %c0_137] : memref<1x32x256xbf16, #tpu.memory_space<vmem>>, vector<1x32x256xbf16>
    %452 = vector.shape_cast %451 : vector<1x32x256xbf16> to vector<32x256xbf16>
    %cst_138 = arith.constant dense<0.000000e+00> : vector<8x256xf32>
    %453 = tpu.matmul %449, %452, %cst_138 {dimension_numbers = #tpu.dot_dimension_numbers<[1], [0], [0], [1], [0, 0, 1, 1], [], []>} : vector<8x32xbf16>, vector<32x256xbf16>, vector<8x256xf32> -> vector<8x256xf32>
    %c0_139 = arith.constant 0 : index
    %c0_140 = arith.constant 0 : index
    %c0_141 = arith.constant 0 : index
    %454 = vector.load %arg9[%c0_139, %c0_140, %c0_141] : memref<1x1x256xf32, #tpu.memory_space<vmem>>, vector<1x1x256xf32>
    %455 = vector.shape_cast %454 : vector<1x1x256xf32> to vector<1x256xf32>
    %456 = vector.broadcast %455 : vector<1x256xf32> to vector<8x256xf32>
    %457 = arith.addf %453, %456 : vector<8x256xf32>
    %cst_142 = arith.constant 0.000000e+00 : f32
    %458 = vector.broadcast %cst_142 : f32 to vector<8x256xf32>
    %459 = arith.maximumf %457, %458 : vector<8x256xf32>
    %460 = arith.truncf %459 : vector<8x256xf32> to vector<8x256xbf16>
    %c0_143 = arith.constant 0 : index
    %c0_144 = arith.constant 0 : index
    %c0_145 = arith.constant 0 : index
    %461 = vector.load %arg10[%c0_143, %c0_144, %c0_145] : memref<1x256x32xbf16, #tpu.memory_space<vmem>>, vector<1x256x32xbf16>
    %462 = vector.shape_cast %461 : vector<1x256x32xbf16> to vector<256x32xbf16>
    %cst_146 = arith.constant dense<0.000000e+00> : vector<8x32xf32>
    %463 = tpu.matmul %460, %462, %cst_146 {dimension_numbers = #tpu.dot_dimension_numbers<[1], [0], [0], [1], [0, 0, 1, 1], [], []>} : vector<8x256xbf16>, vector<256x32xbf16>, vector<8x32xf32> -> vector<8x32xf32>
    %464 = arith.addf %450, %463 : vector<8x32xf32>
    %465 = vector.extract_strided_slice %4 {offsets = [8, 0], sizes = [1, 32], strides = [1, 1]} : vector<16x32xf32> to vector<1x32xf32>
    %466 = vector.broadcast %465 : vector<1x32xf32> to vector<8x32xf32>
    %467 = arith.addf %464, %466 : vector<8x32xf32>
    %468 = arith.addf %448, %467 : vector<8x32xf32>
    %469 = vector.extract_strided_slice %4 {offsets = [13, 0], sizes = [1, 32], strides = [1, 1]} : vector<16x32xf32> to vector<1x32xf32>
    %470 = vector.extract_strided_slice %4 {offsets = [14, 0], sizes = [1, 32], strides = [1, 1]} : vector<16x32xf32> to vector<1x32xf32>
    %cst_147 = arith.constant dense<0.000000e+00> : vector<8xf32>
    %471 = vector.multi_reduction <add>, %468, %cst_147 [1] : vector<8x32xf32> to vector<8xf32>
    %472 = vector.shape_cast %471 : vector<8xf32> to vector<8x1xf32>
    %cst_148 = arith.constant 3.200000e+01 : f32
    %473 = vector.broadcast %cst_148 : f32 to vector<8x1xf32>
    %474 = arith.divf %472, %473 : vector<8x1xf32>
    %475 = vector.broadcast %474 : vector<8x1xf32> to vector<8x32xf32>
    %476 = arith.subf %468, %475 : vector<8x32xf32>
    %477 = arith.mulf %476, %476 : vector<8x32xf32>
    %cst_149 = arith.constant dense<0.000000e+00> : vector<8xf32>
    %478 = vector.multi_reduction <add>, %477, %cst_149 [1] : vector<8x32xf32> to vector<8xf32>
    %479 = vector.shape_cast %478 : vector<8xf32> to vector<8x1xf32>
    %cst_150 = arith.constant 3.200000e+01 : f32
    %480 = vector.broadcast %cst_150 : f32 to vector<8x1xf32>
    %481 = arith.divf %479, %480 : vector<8x1xf32>
    %cst_151 = arith.constant 9.99999974E-6 : f32
    %482 = vector.broadcast %cst_151 : f32 to vector<8x1xf32>
    %483 = arith.addf %481, %482 : vector<8x1xf32>
    %484 = math.rsqrt %483 : vector<8x1xf32>
    %485 = vector.broadcast %484 : vector<8x1xf32> to vector<8x32xf32>
    %486 = arith.mulf %476, %485 : vector<8x32xf32>
    %487 = vector.broadcast %469 : vector<1x32xf32> to vector<8x32xf32>
    %488 = arith.mulf %486, %487 : vector<8x32xf32>
    %489 = vector.broadcast %470 : vector<1x32xf32> to vector<8x32xf32>
    %490 = arith.addf %488, %489 : vector<8x32xf32>
    %c0_152 = arith.constant 0 : index
    %c0_153 = arith.constant 0 : index
    %491 = vector.load %arg14[%c0_152, %c0_153] : memref<8x32xf32, #tpu.memory_space<vmem>>, vector<8x32xf32>
    tpu.vector_store %arg14[%c0_152, %c0_153], %490 {strides = array<i32>} : memref<8x32xf32, #tpu.memory_space<vmem>>, vector<8x32xf32>,
    %c0_154 = arith.constant 0 : index
    %c0_155 = arith.constant 0 : index
    %492 = vector.load %arg11[%c0_154, %c0_155] : memref<1x32xf32, #tpu.memory_space<vmem>>, vector<1x32xf32>
    %c0_156 = arith.constant 0 : index
    %c0_157 = arith.constant 0 : index
    %493 = vector.load %arg12[%c0_156, %c0_157] : memref<1x32xf32, #tpu.memory_space<vmem>>, vector<1x32xf32>
    %cst_158 = arith.constant dense<0.000000e+00> : vector<8xf32>
    %494 = vector.multi_reduction <add>, %490, %cst_158 [1] : vector<8x32xf32> to vector<8xf32>
    %495 = vector.shape_cast %494 : vector<8xf32> to vector<8x1xf32>
    %cst_159 = arith.constant 3.200000e+01 : f32
    %496 = vector.broadcast %cst_159 : f32 to vector<8x1xf32>
    %497 = arith.divf %495, %496 : vector<8x1xf32>
    %498 = vector.broadcast %497 : vector<8x1xf32> to vector<8x32xf32>
    %499 = arith.subf %490, %498 : vector<8x32xf32>
    %500 = arith.mulf %499, %499 : vector<8x32xf32>
    %cst_160 = arith.constant dense<0.000000e+00> : vector<8xf32>
    %501 = vector.multi_reduction <add>, %500, %cst_160 [1] : vector<8x32xf32> to vector<8xf32>
    %502 = vector.shape_cast %501 : vector<8xf32> to vector<8x1xf32>
    %cst_161 = arith.constant 3.200000e+01 : f32
    %503 = vector.broadcast %cst_161 : f32 to vector<8x1xf32>
    %504 = arith.divf %502, %503 : vector<8x1xf32>
    %cst_162 = arith.constant 9.99999974E-6 : f32
    %505 = vector.broadcast %cst_162 : f32 to vector<8x1xf32>
    %506 = arith.addf %504, %505 : vector<8x1xf32>
    %507 = math.rsqrt %506 : vector<8x1xf32>
    %508 = vector.broadcast %507 : vector<8x1xf32> to vector<8x32xf32>
    %509 = arith.mulf %499, %508 : vector<8x32xf32>
    %510 = vector.broadcast %492 : vector<1x32xf32> to vector<8x32xf32>
    %511 = arith.mulf %509, %510 : vector<8x32xf32>
    %512 = vector.broadcast %493 : vector<1x32xf32> to vector<8x32xf32>
    %513 = arith.addf %511, %512 : vector<8x32xf32>
    %c0_163 = arith.constant 0 : index
    %c0_164 = arith.constant 0 : index
    %c0_165 = arith.constant 0 : index
    %c0_166 = arith.constant 0 : index
    %514 = vector.load %arg13[%c0_163, %c0_164, %c0_165, %c0_166] : memref<1x1x8x32xf32, #tpu.memory_space<vmem>>, vector<1x1x8x32xf32>
    %515 = vector.shape_cast %514 : vector<1x1x8x32xf32> to vector<8x32xf32>
    %516 = vector.shape_cast %513 : vector<8x32xf32> to vector<1x1x8x32xf32>
    tpu.vector_store %arg13[%c0_163, %c0_164, %c0_165, %c0_166], %516 {strides = array<i32>} : memref<1x1x8x32xf32, #tpu.memory_space<vmem>>, vector<1x1x8x32xf32>,
    return
  }
  func.func @transform_0(%arg0: i32, %arg1: i32) -> (i32, i32, i32) {
    %c0_i32 = arith.constant 0 : i32
    %c0_i32_0 = arith.constant 0 : i32
    %c0_i32_1 = arith.constant 0 : i32
    return %arg0, %c0_i32, %c0_i32_0 : i32, i32, i32
  }
  func.func @transform_1(%arg0: i32, %arg1: i32) -> (i32, i32, i32) {
    %c0_i32 = arith.constant 0 : i32
    %c0_i32_0 = arith.constant 0 : i32
    %c0_i32_1 = arith.constant 0 : i32
    return %arg0, %c0_i32, %c0_i32_0 : i32, i32, i32
  }
  func.func @transform_2(%arg0: i32, %arg1: i32) -> (i32, i32, i32) {
    %c0_i32 = arith.constant 0 : i32
    %c0_i32_0 = arith.constant 0 : i32
    %c0_i32_1 = arith.constant 0 : i32
    return %arg0, %c0_i32, %c0_i32_0 : i32, i32, i32
  }
  func.func @transform_3(%arg0: i32, %arg1: i32) -> (i32, i32, i32) {
    %c0_i32 = arith.constant 0 : i32
    %c0_i32_0 = arith.constant 0 : i32
    %c0_i32_1 = arith.constant 0 : i32
    return %arg0, %c0_i32, %c0_i32_0 : i32, i32, i32
  }
  func.func @transform_4(%arg0: i32, %arg1: i32) -> (i32, i32, i32, i32) {
    %c0_i32 = arith.constant 0 : i32
    %c0_i32_0 = arith.constant 0 : i32
    %c0_i32_1 = arith.constant 0 : i32
    %c0_i32_2 = arith.constant 0 : i32
    return %arg1, %c0_i32, %c0_i32_0, %c0_i32_1 : i32, i32, i32, i32
  }
  func.func @transform_5(%arg0: i32, %arg1: i32) -> (i32, i32, i32) {
    %c0_i32 = arith.constant 0 : i32
    %c0_i32_0 = arith.constant 0 : i32
    %c0_i32_1 = arith.constant 0 : i32
    return %arg1, %c0_i32, %c0_i32_0 : i32, i32, i32
  }
  func.func @transform_6(%arg0: i32, %arg1: i32) -> (i32, i32, i32) {
    %c0_i32 = arith.constant 0 : i32
    %c0_i32_0 = arith.constant 0 : i32
    %c0_i32_1 = arith.constant 0 : i32
    return %arg1, %c0_i32, %c0_i32_0 : i32, i32, i32
  }
  func.func @transform_7(%arg0: i32, %arg1: i32) -> (i32, i32, i32) {
    %c0_i32 = arith.constant 0 : i32
    %c0_i32_0 = arith.constant 0 : i32
    %c0_i32_1 = arith.constant 0 : i32
    return %arg1, %c0_i32, %c0_i32_0 : i32, i32, i32
  }
  func.func @transform_8(%arg0: i32, %arg1: i32) -> (i32, i32, i32) {
    %c0_i32 = arith.constant 0 : i32
    %c0_i32_0 = arith.constant 0 : i32
    %c0_i32_1 = arith.constant 0 : i32
    return %arg1, %c0_i32, %c0_i32_0 : i32, i32, i32
  }
  func.func @transform_9(%arg0: i32, %arg1: i32) -> (i32, i32) {
    %c0_i32 = arith.constant 0 : i32
    %c0_i32_0 = arith.constant 0 : i32
    %c0_i32_1 = arith.constant 0 : i32
    return %c0_i32, %c0_i32_0 : i32, i32
  }
  func.func @transform_10(%arg0: i32, %arg1: i32) -> (i32, i32) {
    %c0_i32 = arith.constant 0 : i32
    %c0_i32_0 = arith.constant 0 : i32
    %c0_i32_1 = arith.constant 0 : i32
    return %c0_i32, %c0_i32_0 : i32, i32
  }
  func.func @transform_11(%arg0: i32, %arg1: i32) -> (i32, i32, i32, i32) {
    %c0_i32 = arith.constant 0 : i32
    %c0_i32_0 = arith.constant 0 : i32
    %c0_i32_1 = arith.constant 0 : i32
    return %arg1, %arg0, %c0_i32, %c0_i32_0 : i32, i32, i32, i32
  }
}

</mosaic_0001>

<llo_original>
// kernel: tpu_custom_call.1
$region0: #{tpu_custom_call.1}
  #allocation0 [shape = 'u32[]', space=smem, size = 0x4, offset = 0x4, fixed_abs, tag = 'smem constant byte address 0x4 - core index']
  #allocation1 [shape = 'u32[144,128]{1,0:T(1,128)}', space=vmem, size = 0x12000, scoped, tag = 'internal scratch']
  #allocation2 [shape = 'f32[8,32]{1,0:T(8,128)}', space=vmem, size = 0x1000, scoped, tag = 'scratch operand']
  #allocation3 [shape = 'bf16[16,32]{1,0:T(8,128)(2,1)}', space=vmem, size = 0x1000, scoped, tag = 'scratch operand']
  #allocation4 [shape = 'bf16[16,32]{1,0:T(8,128)(2,1)}', space=vmem, size = 0x1000, scoped, tag = 'scratch operand']
  %s0 = inlined_call_operand.hbm [shape: f32[2,8,32], index: 0, kind: input, shape index: {}]
  %s1 = inlined_call_operand.hbm [shape: f32[2,16,32], index: 1, kind: input, shape index: {}]
  %s2 = inlined_call_operand.hbm [shape: f32[2,16,32], index: 2, kind: input, shape index: {}]
  %s3 = inlined_call_operand.hbm [shape: f32[2,8,32], index: 3, kind: input, shape index: {}]
  %s4 = inlined_call_operand.vmem [shape: bf16[2,8,32,32], index: 4, kind: input, shape index: {}]
  %s5 = inlined_call_operand.hbm [shape: f32[2,16,32], index: 5, kind: input, shape index: {}]
  %s6 = inlined_call_operand.vmem [shape: bf16[2,32,256], index: 6, kind: input, shape index: {}]
  %s7 = inlined_call_operand.vmem [shape: f32[2,1,256], index: 7, kind: input, shape index: {}]
  %s8 = inlined_call_operand.vmem [shape: bf16[2,256,32], index: 8, kind: input, shape index: {}]
  %s9 = inlined_call_operand.vmem [shape: f32[1,32], index: 9, kind: input, shape index: {}]
  %s10 = inlined_call_operand.vmem [shape: f32[1,32], index: 10, kind: input, shape index: {}]
  %s11 = inlined_call_operand.hbm [shape: f32[2,2,8,32], index: 11, kind: output, shape index: {}]
  %s12 = sld [smem:[#allocation0]]
  $region101: #{tpu_custom_call.1} parent=0
    _
  %s14 = ssub.s32 1, %s12
  %s15 = scalar_select 0, %s14, %s12
  $region1: #{tpu_custom_call.1} parent=0
    #allocation5 [shape = 'u8[8192]{0}', space=vmem, size = 0x2000, scoped, tag = 'input window, operand 0']
    #allocation6 [shape = 's32[2]{0}', space=sflag, size = 0x8, scoped, tag = 'scoped memory for tpu_custom_call.1']
    #allocation7 [shape = 's32[2]{0}', space=sflag, size = 0x8, scoped, tag = 'scoped memory for tpu_custom_call.1']
    #allocation8 [shape = 'u8[16384]{0}', space=vmem, size = 0x4000, scoped, tag = 'input window, operand 1']
    #allocation9 [shape = 's32[2]{0}', space=sflag, size = 0x8, scoped, tag = 'scoped memory for tpu_custom_call.1']
    #allocation10 [shape = 'u8[16384]{0}', space=vmem, size = 0x4000, scoped, tag = 'input window, operand 2']
    #allocation11 [shape = 'u8[8192]{0}', space=vmem, size = 0x2000, scoped, tag = 'input window, operand 3']
    #allocation12 [shape = 's32[2]{0}', space=sflag, size = 0x8, scoped, tag = 'scoped memory for tpu_custom_call.1']
    #allocation13 [shape = 'u8[16384]{0}', space=vmem, size = 0x4000, scoped, tag = 'input window, operand 5']
    #allocation14 [shape = 'u8[8192]{0}', space=vmem, size = 0x2000, scoped, tag = 'output window, operand 0']
    %16 = vsyncpa [#allocation6], 0
    %s17 = scalar_lea.sflag [#allocation6], 1
    %18 = vsyncpa %s17, 0
    %19 = vsyncpa [#allocation9], 0
    %s20 = scalar_lea.sflag [#allocation9], 1
    %21 = vsyncpa %s20, 0
    %22 = vsyncpa [#allocation12], 0
    %s23 = scalar_lea.sflag [#allocation12], 1
    %24 = vsyncpa %s23, 0
    %25 = vsyncpa [#allocation7], 0
    %s26 = scalar_lea.sflag [#allocation7], 1
    %27 = vsyncpa %s26, 0
    loop: start=0, step=1, limit=6
    $region2: #{tpu_custom_call.1} parent=1 // loop_pre_header
      _
    $region3: #{tpu_custom_call.1} parent=1 // loop_header
      %s29 = sphi 0, %s33
      %p30 = scmp.ge.s32.totalorder %s29, 6
      %s36 = sphi 0, %s48
      %s37 = sphi 0, %s44
      %s38 = sphi 0, %s36
      %s39 = sphi 0, %s37
      %s40 = sphi 0, %s38
      %s41 = sphi 0, %s39
      %s51 = sphi 0, %s53
      %s54 = sphi 0, %s51
      %s55 = sphi 0, %s54
      %s71 = sphi 0, %s55
      %s77 = sphi 0, %s79
      %s80 = sphi 0, %s77
      %s81 = sphi 0, %s80
      %s97 = sphi 0, %s81
      %s103 = sphi 0, %s105
      %s106 = sphi 0, %s103
      %s107 = sphi 0, %s106
      %s123 = sphi 0, %s107
      %s129 = sphi 0, %s131
      %s132 = sphi 0, %s129
      %s133 = sphi 0, %s132
      %s149 = sphi 0, %s133
      %s155 = sphi 0, %s157
      %s158 = sphi 0, %s155
      %s159 = sphi 0, %s158
      %s175 = sphi 0, %s159
      %s181 = sphi 0, %s183
      %s184 = sphi 0, %s181
      %s185 = sphi 0, %s184
      %s201 = sphi 0, %s185
      %s207 = sphi 0, %s209
      %s210 = sphi 0, %s207
      %s211 = sphi 0, %s210
      %s227 = sphi 0, %s211
      %s233 = sphi 0, %s235
      %s236 = sphi 0, %s233
      %s237 = sphi 0, %s236
      %s253 = sphi 0, %s237
      %s259 = sphi 0, %s261
      %s262 = sphi 0, %s259
      %s263 = sphi 0, %s262
      %s279 = sphi 0, %s263
      %s283 = sphi 0, %s283
      %s285 = sphi 0, %s283
      %s286 = sphi 0, %s285
      %s300 = sphi 0, %s286
      %s304 = sphi 0, %s304
      %s306 = sphi 0, %s304
      %s307 = sphi 0, %s306
      %s321 = sphi 0, %s307
      %s329 = sphi 0, %s331
      %s332 = sphi 0, %s329
      %s333 = sphi 0, %s332
      %s349 = sphi 0, %s333
    $region4: #{tpu_custom_call.1} parent=1 // loop_header_branch
      %32 = sbr.rel (%p30) target = $region8
    $region5: #{tpu_custom_call.1} parent=1 // loop_body
      %s34 = ssub.s32 %s29, 1
      %s35 = ssub.s32 %s29, 2
      %s42 = sadd.s32 1, %s37
      %p43 = scmp.ge.s32.totalorder %s42, 2
      %s44 = scalar_select %p43, 0, %s42
      %s45 = sadd.s32 1, %s36
      %s46 = scalar_select %p43, %s45, %s36
      %p47 = scmp.ge.s32.totalorder %s46, 2
      %s48 = scalar_select %p47, 0, %s46
      %s49 = ssub.s32 %s36, %s48
      %p50 = scmp.eq.s32.totalorder %s49, 0
      %s52 = sadd.s32 %s51, 1
      %s53 = scalar_select %p50, %s51, %s52
      %p56 = pneg %p50
      %p57 = scmp.eq.s32.totalorder %s29, 3
      %p58 = por %p56, %p57
      %p59 = scmp.ne.s32.totalorder %s51, %s54
      %p60 = scmp.eq.s32.totalorder %s29, 0
      %p61 = por %p59, %p60
      %p62 = scmp.ne.s32.totalorder %s51, %s54
      %p63 = scmp.eq.s32.totalorder %s34, 3
      %p64 = por %p62, %p63
      %p65 = scmp.ne.s32.totalorder %s54, %s55
      %p66 = scmp.eq.s32.totalorder %s34, 0
      %p67 = por %p65, %p66
      %p68 = scmp.ne.s32.totalorder %s54, %s55
      %p69 = scmp.eq.s32.totalorder %s35, 3
      %p70 = por %p68, %p69
      %p72 = scmp.ne.s32.totalorder %s55, %s71
      %p73 = scmp.eq.s32.totalorder %s35, 0
      %p74 = por %p72, %p73
      %s75 = ssub.s32 %s36, %s48
      %p76 = scmp.eq.s32.totalorder %s75, 0
      %s78 = sadd.s32 %s77, 1
      %s79 = scalar_select %p76, %s77, %s78
      %p82 = pneg %p76
      %p83 = scmp.eq.s32.totalorder %s29, 3
      %p84 = por %p82, %p83
      %p85 = scmp.ne.s32.totalorder %s77, %s80
      %p86 = scmp.eq.s32.totalorder %s29, 0
      %p87 = por %p85, %p86
      %p88 = scmp.ne.s32.totalorder %s77, %s80
      %p89 = scmp.eq.s32.totalorder %s34, 3
      %p90 = por %p88, %p89
      %p91 = scmp.ne.s32.totalorder %s80, %s81
      %p92 = scmp.eq.s32.totalorder %s34, 0
      %p93 = por %p91, %p92
      %p94 = scmp.ne.s32.totalorder %s80, %s81
      %p95 = scmp.eq.s32.totalorder %s35, 3
      %p96 = por %p94, %p95
      %p98 = scmp.ne.s32.totalorder %s81, %s97
      %p99 = scmp.eq.s32.totalorder %s35, 0
      %p100 = por %p98, %p99
      %s101 = ssub.s32 %s36, %s48
      %p102 = scmp.eq.s32.totalorder %s101, 0
      %s104 = sadd.s32 %s103, 1
      %s105 = scalar_select %p102, %s103, %s104
      %p108 = pneg %p102
      %p109 = scmp.eq.s32.totalorder %s29, 3
      %p110 = por %p108, %p109
      %p111 = scmp.ne.s32.totalorder %s103, %s106
      %p112 = scmp.eq.s32.totalorder %s29, 0
      %p113 = por %p111, %p112
      %p114 = scmp.ne.s32.totalorder %s103, %s106
      %p115 = scmp.eq.s32.totalorder %s34, 3
      %p116 = por %p114, %p115
      %p117 = scmp.ne.s32.totalorder %s106, %s107
      %p118 = scmp.eq.s32.totalorder %s34, 0
      %p119 = por %p117, %p118
      %p120 = scmp.ne.s32.totalorder %s106, %s107
      %p121 = scmp.eq.s32.totalorder %s35, 3
      %p122 = por %p120, %p121
      %p124 = scmp.ne.s32.totalorder %s107, %s123
      %p125 = scmp.eq.s32.totalorder %s35, 0
      %p126 = por %p124, %p125
      %s127 = ssub.s32 %s36, %s48
      %p128 = scmp.eq.s32.totalorder %s127, 0
      %s130 = sadd.s32 %s129, 1
      %s131 = scalar_select %p128, %s129, %s130
      %p134 = pneg %p128
      %p135 = scmp.eq.s32.totalorder %s29, 3
      %p136 = por %p134, %p135
      %p137 = scmp.ne.s32.totalorder %s129, %s132
      %p138 = scmp.eq.s32.totalorder %s29, 0
      %p139 = por %p137, %p138
      %p140 = scmp.ne.s32.totalorder %s129, %s132
      %p141 = scmp.eq.s32.totalorder %s34, 3
      %p142 = por %p140, %p141
      %p143 = scmp.ne.s32.totalorder %s132, %s133
      %p144 = scmp.eq.s32.totalorder %s34, 0
      %p145 = por %p143, %p144
      %p146 = scmp.ne.s32.totalorder %s132, %s133
      %p147 = scmp.eq.s32.totalorder %s35, 3
      %p148 = por %p146, %p147
      %p150 = scmp.ne.s32.totalorder %s133, %s149
      %p151 = scmp.eq.s32.totalorder %s35, 0
      %p152 = por %p150, %p151
      %s153 = ssub.s32 %s37, %s44
      %p154 = scmp.eq.s32.totalorder %s153, 0
      %s156 = sadd.s32 %s155, 1
      %s157 = scalar_select %p154, %s155, %s156
      %p160 = pneg %p154
      %p161 = scmp.eq.s32.totalorder %s29, 3
      %p162 = por %p160, %p161
      %p163 = scmp.ne.s32.totalorder %s155, %s158
      %p164 = scmp.eq.s32.totalorder %s29, 0
      %p165 = por %p163, %p164
      %p166 = scmp.ne.s32.totalorder %s155, %s158
      %p167 = scmp.eq.s32.totalorder %s34, 3
      %p168 = por %p166, %p167
      %p169 = scmp.ne.s32.totalorder %s158, %s159
      %p170 = scmp.eq.s32.totalorder %s34, 0
      %p171 = por %p169, %p170
      %p172 = scmp.ne.s32.totalorder %s158, %s159
      %p173 = scmp.eq.s32.totalorder %s35, 3
      %p174 = por %p172, %p173
      %p176 = scmp.ne.s32.totalorder %s159, %s175
      %p177 = scmp.eq.s32.totalorder %s35, 0
      %p178 = por %p176, %p177
      %s179 = ssub.s32 %s37, %s44
      %p180 = scmp.eq.s32.totalorder %s179, 0
      %s182 = sadd.s32 %s181, 1
      %s183 = scalar_select %p180, %s181, %s182
      %p186 = pneg %p180
      %p187 = scmp.eq.s32.totalorder %s29, 3
      %p188 = por %p186, %p187
      %p189 = scmp.ne.s32.totalorder %s181, %s184
      %p190 = scmp.eq.s32.totalorder %s29, 0
      %p191 = por %p189, %p190
      %p192 = scmp.ne.s32.totalorder %s181, %s184
      %p193 = scmp.eq.s32.totalorder %s34, 3
      %p194 = por %p192, %p193
      %p195 = scmp.ne.s32.totalorder %s184, %s185
      %p196 = scmp.eq.s32.totalorder %s34, 0
      %p197 = por %p195, %p196
      %p198 = scmp.ne.s32.totalorder %s184, %s185
      %p199 = scmp.eq.s32.totalorder %s35, 3
      %p200 = por %p198, %p199
      %p202 = scmp.ne.s32.totalorder %s185, %s201
      %p203 = scmp.eq.s32.totalorder %s35, 0
      %p204 = por %p202, %p203
      %s205 = ssub.s32 %s37, %s44
      %p206 = scmp.eq.s32.totalorder %s205, 0
      %s208 = sadd.s32 %s207, 1
      %s209 = scalar_select %p206, %s207, %s208
      %p212 = pneg %p206
      %p213 = scmp.eq.s32.totalorder %s29, 3
      %p214 = por %p212, %p213
      %p215 = scmp.ne.s32.totalorder %s207, %s210
      %p216 = scmp.eq.s32.totalorder %s29, 0
      %p217 = por %p215, %p216
      %p218 = scmp.ne.s32.totalorder %s207, %s210
      %p219 = scmp.eq.s32.totalorder %s34, 3
      %p220 = por %p218, %p219
      %p221 = scmp.ne.s32.totalorder %s210, %s211
      %p222 = scmp.eq.s32.totalorder %s34, 0
      %p223 = por %p221, %p222
      %p224 = scmp.ne.s32.totalorder %s210, %s211
      %p225 = scmp.eq.s32.totalorder %s35, 3
      %p226 = por %p224, %p225
      %p228 = scmp.ne.s32.totalorder %s211, %s227
      %p229 = scmp.eq.s32.totalorder %s35, 0
      %p230 = por %p228, %p229
      %s231 = ssub.s32 %s37, %s44
      %p232 = scmp.eq.s32.totalorder %s231, 0
      %s234 = sadd.s32 %s233, 1
      %s235 = scalar_select %p232, %s233, %s234
      %p238 = pneg %p232
      %p239 = scmp.eq.s32.totalorder %s29, 3
      %p240 = por %p238, %p239
      %p241 = scmp.ne.s32.totalorder %s233, %s236
      %p242 = scmp.eq.s32.totalorder %s29, 0
      %p243 = por %p241, %p242
      %p244 = scmp.ne.s32.totalorder %s233, %s236
      %p245 = scmp.eq.s32.totalorder %s34, 3
      %p246 = por %p244, %p245
      %p247 = scmp.ne.s32.totalorder %s236, %s237
      %p248 = scmp.eq.s32.totalorder %s34, 0
      %p249 = por %p247, %p248
      %p250 = scmp.ne.s32.totalorder %s236, %s237
      %p251 = scmp.eq.s32.totalorder %s35, 3
      %p252 = por %p250, %p251
      %p254 = scmp.ne.s32.totalorder %s237, %s253
      %p255 = scmp.eq.s32.totalorder %s35, 0
      %p256 = por %p254, %p255
      %s257 = ssub.s32 %s37, %s44
      %p258 = scmp.eq.s32.totalorder %s257, 0
      %s260 = sadd.s32 %s259, 1
      %s261 = scalar_select %p258, %s259, %s260
      %p264 = pneg %p258
      %p265 = scmp.eq.s32.totalorder %s29, 3
      %p266 = por %p264, %p265
      %p267 = scmp.ne.s32.totalorder %s259, %s262
      %p268 = scmp.eq.s32.totalorder %s29, 0
      %p269 = por %p267, %p268
      %p270 = scmp.ne.s32.totalorder %s259, %s262
      %p271 = scmp.eq.s32.totalorder %s34, 3
      %p272 = por %p270, %p271
      %p273 = scmp.ne.s32.totalorder %s262, %s263
      %p274 = scmp.eq.s32.totalorder %s34, 0
      %p275 = por %p273, %p274
      %p276 = scmp.ne.s32.totalorder %s262, %s263
      %p277 = scmp.eq.s32.totalorder %s35, 3
      %p278 = por %p276, %p277
      %p280 = scmp.ne.s32.totalorder %s263, %s279
      %p281 = scmp.eq.s32.totalorder %s35, 0
      %p282 = por %p280, %p281
      %s284 = sadd.s32 %s283, 1
      %p287 = scmp.eq.s32.totalorder %s29, 3
      %p288 = scmp.ne.s32.totalorder %s283, %s285
      %p289 = scmp.eq.s32.totalorder %s29, 0
      %p290 = por %p288, %p289
      %p291 = scmp.ne.s32.totalorder %s283, %s285
      %p292 = scmp.eq.s32.totalorder %s34, 3
      %p293 = por %p291, %p292
      %p294 = scmp.ne.s32.totalorder %s285, %s286
      %p295 = scmp.eq.s32.totalorder %s34, 0
      %p296 = por %p294, %p295
      %p297 = scmp.ne.s32.totalorder %s285, %s286
      %p298 = scmp.eq.s32.totalorder %s35, 3
      %p299 = por %p297, %p298
      %p301 = scmp.ne.s32.totalorder %s286, %s300
      %p302 = scmp.eq.s32.totalorder %s35, 0
      %p303 = por %p301, %p302
      %s305 = sadd.s32 %s304, 1
      %p308 = scmp.eq.s32.totalorder %s29, 3
      %p309 = scmp.ne.s32.totalorder %s304, %s306
      %p310 = scmp.eq.s32.totalorder %s29, 0
      %p311 = por %p309, %p310
      %p312 = scmp.ne.s32.totalorder %s304, %s306
      %p313 = scmp.eq.s32.totalorder %s34, 3
      %p314 = por %p312, %p313
      %p315 = scmp.ne.s32.totalorder %s306, %s307
      %p316 = scmp.eq.s32.totalorder %s34, 0
      %p317 = por %p315, %p316
      %p318 = scmp.ne.s32.totalorder %s306, %s307
      %p319 = scmp.eq.s32.totalorder %s35, 3
      %p320 = por %p318, %p319
      %p322 = scmp.ne.s32.totalorder %s307, %s321
      %p323 = scmp.eq.s32.totalorder %s35, 0
      %p324 = por %p322, %p323
      %s325 = ssub.s32 %s37, %s44
      %s326 = ssub.s32 %s36, %s48
      %s327 = sor.u32 %s325, %s326
      %p328 = scmp.eq.s32.totalorder %s327, 0
      %s330 = sadd.s32 %s329, 1
      %s331 = scalar_select %p328, %s329, %s330
      %p334 = pneg %p328
      %p335 = scmp.eq.s32.totalorder %s29, 3
      %p336 = por %p334, %p335
      %p337 = scmp.ne.s32.totalorder %s329, %s332
      %p338 = scmp.eq.s32.totalorder %s29, 0
      %p339 = por %p337, %p338
      %p340 = scmp.ne.s32.totalorder %s329, %s332
      %p341 = scmp.eq.s32.totalorder %s34, 3
      %p342 = por %p340, %p341
      %p343 = scmp.ne.s32.totalorder %s332, %s333
      %p344 = scmp.eq.s32.totalorder %s34, 0
      %p345 = por %p343, %p344
      %p346 = scmp.ne.s32.totalorder %s332, %s333
      %p347 = scmp.eq.s32.totalorder %s35, 3
      %p348 = por %p346, %p347
      %p350 = scmp.ne.s32.totalorder %s333, %s349
      %p351 = scmp.eq.s32.totalorder %s35, 0
      %p352 = por %p350, %p351
      %p353 = scmp.le.s32.totalorder 1, %s29
      %p354 = scmp.lt.s32.totalorder %s29, 5
      %p355 = pnand %p353, %p354
      %p356 = pneg %p355
      // Predicated region
      $region9: #{tpu_custom_call.1} parent=5 // pred_check
        _
      $region10: #{tpu_custom_call.1} parent=5 // pred_check_branch
        %358 = sbr.rel (%p355) target = $region12
      $region11: #{tpu_custom_call.1} parent=5 // pred_region
        %s359 = ssub.s32 %s29, 1
        // Predicated region
        $region13: #{tpu_custom_call.1} parent=11 // pred_check
          %p360 = pneg %p296
        $region14: #{tpu_custom_call.1} parent=11 // pred_check_branch
          %362 = sbr.rel (%p360) target = $region16
        $region15: #{tpu_custom_call.1} parent=11 // pred_region
          _
        $region16: #{tpu_custom_call.1} parent=11 // pred_fallthru
          _
        // Predicated region
        $region17: #{tpu_custom_call.1} parent=11 // pred_check
          %p363 = pneg %p317
        $region18: #{tpu_custom_call.1} parent=11 // pred_check_branch
          %365 = sbr.rel (%p363) target = $region20
        $region19: #{tpu_custom_call.1} parent=11 // pred_region
          _
        $region20: #{tpu_custom_call.1} parent=11 // pred_fallthru
          _
      $region12: #{tpu_custom_call.1} parent=5 // pred_fallthru
        _
      %p366 = scmp.lt.s32.totalorder %s29, 4
      // Predicated region
      $region21: #{tpu_custom_call.1} parent=5 // pred_check
        %p367 = pneg %p366
      $region22: #{tpu_custom_call.1} parent=5 // pred_check_branch
        %369 = sbr.rel (%p367) target = $region24
      $region23: #{tpu_custom_call.1} parent=5 // pred_region
        // Predicated region
        $region25: #{tpu_custom_call.1} parent=23 // pred_check
          %p370 = pneg %p61
        $region26: #{tpu_custom_call.1} parent=23 // pred_check_branch
          %372 = sbr.rel (%p370) target = $region28
        $region27: #{tpu_custom_call.1} parent=23 // pred_region
          %s373 = sand.u32 %s51, 1
          %s374 = scalar_lea.sflag [#allocation6], %s373
          %s375 = sand.u32 %s51, 1
          %s376 = smul.addr %s375, 8
          %s377 = scalar_lea.vmem [#allocation5], %s376
          %s379 = ssub.s32 128, 128
          %380 = vsyncadd %s374, %s379
          %s381 = smul.addr %s36, 128
          %s382 = scalar_lea.hbm %s0, %s381
          %s384 = sshll.u32 %s377, 4
          %s385 = int_to_ptr.vmem [resolvable:$true] %s384
          %387 = dma.hbm_to_vmem [thread:$0]  %s382, 128, %s385, %s374
        $region28: #{tpu_custom_call.1} parent=23 // pred_fallthru
          _
        // Predicated region
        $region29: #{tpu_custom_call.1} parent=23 // pred_check
          %p388 = pneg %p87
        $region30: #{tpu_custom_call.1} parent=23 // pred_check_branch
          %390 = sbr.rel (%p388) target = $region32
        $region31: #{tpu_custom_call.1} parent=23 // pred_region
          %s391 = sand.u32 %s29, 1
          %s392 = scalar_lea.sflag [#allocation9], %s391
          %s393 = sand.u32 %s77, 1
          %s394 = smul.addr %s393, 16
          %s395 = scalar_lea.vmem [#allocation8], %s394
          %s397 = ssub.s32 256, 256
          %398 = vsyncadd %s392, %s397
          %s399 = smul.addr %s36, 2
          %s400 = smul.addr %s399, 128
          %s401 = scalar_lea.hbm %s1, %s400
          %s402 = sshll.u32 %s395, 4
          %s403 = int_to_ptr.vmem [resolvable:$true] %s402
          %408 = dma.hbm_to_vmem [thread:$0]  %s401, 256, %s403, %s392, 128, 128, 8
        $region32: #{tpu_custom_call.1} parent=23 // pred_fallthru
          _
        // Predicated region
        $region33: #{tpu_custom_call.1} parent=23 // pred_check
          %p409 = pneg %p113
        $region34: #{tpu_custom_call.1} parent=23 // pred_check_branch
          %411 = sbr.rel (%p409) target = $region36
        $region35: #{tpu_custom_call.1} parent=23 // pred_region
          %s412 = sand.u32 %s29, 1
          %s413 = scalar_lea.sflag [#allocation9], %s412
          %s414 = sand.u32 %s103, 1
          %s415 = smul.addr %s414, 16
          %s416 = scalar_lea.vmem [#allocation10], %s415
          %s418 = ssub.s32 256, 256
          %419 = vsyncadd %s413, %s418
          %s420 = smul.addr %s36, 2
          %s421 = smul.addr %s420, 128
          %s422 = scalar_lea.hbm %s2, %s421
          %s423 = sshll.u32 %s416, 4
          %s424 = int_to_ptr.vmem [resolvable:$true] %s423
          %429 = dma.hbm_to_vmem [thread:$0]  %s422, 256, %s424, %s413, 128, 128, 8
        $region36: #{tpu_custom_call.1} parent=23 // pred_fallthru
          _
        // Predicated region
        $region37: #{tpu_custom_call.1} parent=23 // pred_check
          %p430 = pneg %p139
        $region38: #{tpu_custom_call.1} parent=23 // pred_check_branch
          %432 = sbr.rel (%p430) target = $region40
        $region39: #{tpu_custom_call.1} parent=23 // pred_region
          %s433 = sand.u32 %s29, 1
          %s434 = scalar_lea.sflag [#allocation12], %s433
          %s435 = sand.u32 %s129, 1
          %s436 = smul.addr %s435, 8
          %s437 = scalar_lea.vmem [#allocation11], %s436
          %s439 = ssub.s32 128, 128
          %440 = vsyncadd %s434, %s439
          %s441 = smul.addr %s36, 128
          %s442 = scalar_lea.hbm %s3, %s441
          %s444 = sshll.u32 %s437, 4
          %s445 = int_to_ptr.vmem [resolvable:$true] %s444
          %447 = dma.hbm_to_vmem [thread:$0]  %s442, 128, %s445, %s434
        $region40: #{tpu_custom_call.1} parent=23 // pred_fallthru
          _
        // Predicated region
        $region41: #{tpu_custom_call.1} parent=23 // pred_check
          %p448 = pneg %p165
        $region42: #{tpu_custom_call.1} parent=23 // pred_check_branch
          %450 = sbr.rel (%p448) target = $region44
        $region43: #{tpu_custom_call.1} parent=23 // pred_region
          %p451 = scmp.lt.s32.totalorder %s37, 1
          %s452 = scalar_select %p451, %s37, 1
          %s453 = smul.addr %s452, 32
          %s454 = smul.addr %s453, 4
          %s455 = scalar_lea.vmem %s4, %s454
        $region44: #{tpu_custom_call.1} parent=23 // pred_fallthru
          _
        // Predicated region
        $region45: #{tpu_custom_call.1} parent=23 // pred_check
          %p456 = pneg %p191
        $region46: #{tpu_custom_call.1} parent=23 // pred_check_branch
          %458 = sbr.rel (%p456) target = $region48
        $region47: #{tpu_custom_call.1} parent=23 // pred_region
          %s459 = sand.u32 %s29, 1
          %s460 = scalar_lea.sflag [#allocation12], %s459
          %s461 = sand.u32 %s181, 1
          %s462 = smul.addr %s461, 16
          %s463 = scalar_lea.vmem [#allocation13], %s462
          %s465 = ssub.s32 256, 256
          %466 = vsyncadd %s460, %s465
          %s467 = smul.addr %s37, 2
          %s468 = smul.addr %s467, 128
          %s469 = scalar_lea.hbm %s5, %s468
          %s470 = sshll.u32 %s463, 4
          %s471 = int_to_ptr.vmem [resolvable:$true] %s470
          %476 = dma.hbm_to_vmem [thread:$0]  %s469, 256, %s471, %s460, 128, 128, 8
        $region48: #{tpu_custom_call.1} parent=23 // pred_fallthru
          _
        // Predicated region
        $region49: #{tpu_custom_call.1} parent=23 // pred_check
          %p477 = pneg %p217
        $region50: #{tpu_custom_call.1} parent=23 // pred_check_branch
          %479 = sbr.rel (%p477) target = $region52
        $region51: #{tpu_custom_call.1} parent=23 // pred_region
          %p480 = scmp.lt.s32.totalorder %s37, 1
          %s481 = scalar_select %p480, %s37, 1
          %s482 = smul.addr %s481, 8
          %s483 = smul.addr %s482, 4
          %s484 = scalar_lea.vmem %s6, %s483
        $region52: #{tpu_custom_call.1} parent=23 // pred_fallthru
          _
        // Predicated region
        $region53: #{tpu_custom_call.1} parent=23 // pred_check
          %p485 = pneg %p243
        $region54: #{tpu_custom_call.1} parent=23 // pred_check_branch
          %487 = sbr.rel (%p485) target = $region56
        $region55: #{tpu_custom_call.1} parent=23 // pred_region
          %p488 = scmp.lt.s32.totalorder %s37, 1
          %s489 = scalar_select %p488, %s37, 1
          %s490 = smul.addr %s489, 2
          %s491 = scalar_lea.vmem %s7, %s490
        $region56: #{tpu_custom_call.1} parent=23 // pred_fallthru
          _
        // Predicated region
        $region57: #{tpu_custom_call.1} parent=23 // pred_check
          %p492 = pneg %p269
        $region58: #{tpu_custom_call.1} parent=23 // pred_check_branch
          %494 = sbr.rel (%p492) target = $region60
        $region59: #{tpu_custom_call.1} parent=23 // pred_region
          %p495 = scmp.lt.s32.totalorder %s37, 1
          %s496 = scalar_select %p495, %s37, 1
          %s497 = smul.addr %s496, 32
          %s498 = smul.addr %s497, 4
          %s499 = scalar_lea.vmem %s8, %s498
        $region60: #{tpu_custom_call.1} parent=23 // pred_fallthru
          _
      $region24: #{tpu_custom_call.1} parent=5 // pred_fallthru
        _
      %p500 = scmp.le.s32.totalorder 1, %s29
      %p501 = scmp.lt.s32.totalorder %s29, 5
      %p502 = pnand %p500, %p501
      %p503 = pneg %p502
      // Predicated region
      $region61: #{tpu_custom_call.1} parent=5 // pred_check
        _
      $region62: #{tpu_custom_call.1} parent=5 // pred_check_branch
        %505 = sbr.rel (%p502) target = $region64
      $region63: #{tpu_custom_call.1} parent=5 // pred_region
        %s506 = ssub.s32 %s29, 1
        %s507 = sand.u32 %s54, 1
        %s508 = scalar_lea.sflag [#allocation6], %s507
        %s509 = sand.u32 %s54, 1
        %s510 = smul.addr %s509, 8
        %s511 = scalar_lea.vmem [#allocation5], %s510
        // Predicated region
        $region65: #{tpu_custom_call.1} parent=63 // pred_check
          %p512 = pneg %p67
        $region66: #{tpu_custom_call.1} parent=63 // pred_check_branch
          %514 = sbr.rel (%p512) target = $region68
        $region67: #{tpu_custom_call.1} parent=63 // pred_region
          %515 = dma.done %s508, 128
        $region68: #{tpu_custom_call.1} parent=63 // pred_fallthru
          _
        %s516 = sand.u32 %s34, 1
        %s517 = scalar_lea.sflag [#allocation9], %s516
        %s518 = sand.u32 %s80, 1
        %s519 = smul.addr %s518, 16
        %s520 = scalar_lea.vmem [#allocation8], %s519
        // Predicated region
        $region69: #{tpu_custom_call.1} parent=63 // pred_check
          %p521 = pneg %p93
        $region70: #{tpu_custom_call.1} parent=63 // pred_check_branch
          %523 = sbr.rel (%p521) target = $region72
        $region71: #{tpu_custom_call.1} parent=63 // pred_region
          %524 = dma.done %s517, 256
        $region72: #{tpu_custom_call.1} parent=63 // pred_fallthru
          _
        %s525 = sand.u32 %s34, 1
        %s526 = scalar_lea.sflag [#allocation9], %s525
        %s527 = sand.u32 %s106, 1
        %s528 = smul.addr %s527, 16
        %s529 = scalar_lea.vmem [#allocation10], %s528
        // Predicated region
        $region73: #{tpu_custom_call.1} parent=63 // pred_check
          %p530 = pneg %p119
        $region74: #{tpu_custom_call.1} parent=63 // pred_check_branch
          %532 = sbr.rel (%p530) target = $region76
        $region75: #{tpu_custom_call.1} parent=63 // pred_region
          %533 = dma.done %s526, 256
        $region76: #{tpu_custom_call.1} parent=63 // pred_fallthru
          _
        %s534 = sand.u32 %s34, 1
        %s535 = scalar_lea.sflag [#allocation12], %s534
        %s536 = sand.u32 %s132, 1
        %s537 = smul.addr %s536, 8
        %s538 = scalar_lea.vmem [#allocation11], %s537
        // Predicated region
        $region77: #{tpu_custom_call.1} parent=63 // pred_check
          %p539 = pneg %p145
        $region78: #{tpu_custom_call.1} parent=63 // pred_check_branch
          %541 = sbr.rel (%p539) target = $region80
        $region79: #{tpu_custom_call.1} parent=63 // pred_region
          %542 = dma.done %s535, 128
        $region80: #{tpu_custom_call.1} parent=63 // pred_fallthru
          _
        %s543 = sand.u32 %s34, 1
        %s544 = scalar_lea.sflag [#allocation12], %s543
        %s545 = sand.u32 %s184, 1
        %s546 = smul.addr %s545, 16
        %s547 = scalar_lea.vmem [#allocation13], %s546
        // Predicated region
        $region81: #{tpu_custom_call.1} parent=63 // pred_check
          %p548 = pneg %p197
        $region82: #{tpu_custom_call.1} parent=63 // pred_check_branch
          %550 = sbr.rel (%p548) target = $region84
        $region83: #{tpu_custom_call.1} parent=63 // pred_region
          %551 = dma.done %s544, 256
        $region84: #{tpu_custom_call.1} parent=63 // pred_fallthru
          _
        %s552 = sand.u32 %s54, 1
        %s553 = scalar_lea.sflag [#allocation6], %s552
        %s554 = sand.u32 %s54, 1
        %s555 = smul.addr %s554, 8
        %s556 = scalar_lea.vmem [#allocation5], %s555
        %p557 = pneg %p67
        %p558 = pneg %p64
        %s559 = sand.u32 %s34, 1
        %s560 = scalar_lea.sflag [#allocation9], %s559
        %s561 = sand.u32 %s80, 1
        %s562 = smul.addr %s561, 16
        %s563 = scalar_lea.vmem [#allocation8], %s562
        %p564 = pneg %p93
        %p565 = pneg %p90
        %s566 = sand.u32 %s34, 1
        %s567 = scalar_lea.sflag [#allocation9], %s566
        %s568 = sand.u32 %s106, 1
        %s569 = smul.addr %s568, 16
        %s570 = scalar_lea.vmem [#allocation10], %s569
        %p571 = pneg %p119
        %p572 = pneg %p116
        %s573 = sand.u32 %s34, 1
        %s574 = scalar_lea.sflag [#allocation12], %s573
        %s575 = sand.u32 %s132, 1
        %s576 = smul.addr %s575, 8
        %s577 = scalar_lea.vmem [#allocation11], %s576
        %p578 = pneg %p145
        %p579 = pneg %p142
        %p580 = scmp.lt.s32.totalorder %s39, 1
        %s581 = scalar_select %p580, %s39, 1
        %s582 = smul.addr %s581, 32
        %s583 = smul.addr %s582, 4
        %s584 = scalar_lea.vmem %s4, %s583
        %p585 = pneg %p171
        %p586 = pneg %p168
        %s587 = sand.u32 %s34, 1
        %s588 = scalar_lea.sflag [#allocation12], %s587
        %s589 = sand.u32 %s184, 1
        %s590 = smul.addr %s589, 16
        %s591 = scalar_lea.vmem [#allocation13], %s590
        %p592 = pneg %p197
        %p593 = pneg %p194
        %p594 = scmp.lt.s32.totalorder %s39, 1
        %s595 = scalar_select %p594, %s39, 1
        %s596 = smul.addr %s595, 8
        %s597 = smul.addr %s596, 4
        %s598 = scalar_lea.vmem %s6, %s597
        %p599 = pneg %p223
        %p600 = pneg %p220
        %p601 = scmp.lt.s32.totalorder %s39, 1
        %s602 = scalar_select %p601, %s39, 1
        %s603 = smul.addr %s602, 2
        %s604 = scalar_lea.vmem %s7, %s603
        %p605 = pneg %p249
        %p606 = pneg %p246
        %p607 = scmp.lt.s32.totalorder %s39, 1
        %s608 = scalar_select %p607, %s39, 1
        %s609 = smul.addr %s608, 32
        %s610 = smul.addr %s609, 4
        %s611 = scalar_lea.vmem %s8, %s610
        %p612 = pneg %p275
        %p613 = pneg %p272
        %p614 = pneg %p296
        %p615 = pneg %p293
        %p616 = pneg %p317
        %p617 = pneg %p314
        %p618 = pneg %p345
        %p619 = pneg %p342
        %s620 = sand.u32 %s332, 1
        %s621 = scalar_lea.sflag [#allocation7], %s620
        %s622 = sand.u32 %s332, 1
        %s623 = smul.addr %s622, 8
        %s624 = scalar_lea.vmem [#allocation14], %s623
        %p625 = scmp.lt.s32.totalorder %s39, 1
        %s626 = scalar_select %p625, %s39, 1
        %s627 = smul.addr %s626, 32
        %s628 = smul.addr %s627, 4
        %s629 = scalar_lea.vmem %s4, %s628
        %p630 = scmp.lt.s32.totalorder %s39, 1
        %s631 = scalar_select %p630, %s39, 1
        %s632 = smul.addr %s631, 8
        %s633 = smul.addr %s632, 4
        %s634 = scalar_lea.vmem %s6, %s633
        %p635 = scmp.lt.s32.totalorder %s39, 1
        %s636 = scalar_select %p635, %s39, 1
        %s637 = smul.addr %s636, 2
        %s638 = scalar_lea.vmem %s7, %s637
        %p639 = scmp.lt.s32.totalorder %s39, 1
        %s640 = scalar_select %p639, %s39, 1
        %s641 = smul.addr %s640, 32
        %s642 = smul.addr %s641, 4
        %s643 = scalar_lea.vmem %s8, %s642
        %p645 = scmp.eq.s32.totalorder %s39, 0
        // Predicated region
        $region85: #{tpu_custom_call.1} parent=63 // pred_check
          %p646 = pneg %p645
        $region86: #{tpu_custom_call.1} parent=63 // pred_check_branch
          %648 = sbr.rel (%p646) target = $region88
        $region87: #{tpu_custom_call.1} parent=63 // pred_region
          %v649 = vld [vmem:[%s511] sm:$0xff]
          %vm650 = vcmask 261120
          %651 = vst.msk [vmem:[#allocation2] sm:$0xff] %vm650, %v649
          %v652 = vld [vmem:[%s520] sm:$0xff]
          %v653 = vld [vmem:[%s520 + $0x8] sm:$0xff]
          %v654 = vld [vmem:[%s529] sm:$0xff]
          %v655 = vld [vmem:[%s529 + $0x8] sm:$0xff]
          %v656 = vadd.f32 %v652, %v654
          %v657 = vadd.f32 %v653, %v655
          %v658 = vpack.c.bf16 %v657, %v656
          %v660 = vunpack.c.l.b16 %v658
          %v661 = vunpack.c.h.b16 %v658
          %v662 = vpack.c.b16 %v660, %v660
          %v663 = vpack.c.b16 %v661, %v661
          %vm666 = vcmask 257024
          %667 = vst.msk [vmem:[#allocation3] sm:$0xf] %vm666, %v662
          %668 = vst.msk [vmem:[#allocation3 + $0x4] sm:$0xf] %vm666, %v663
          %v669 = vld [vmem:[%s520] sm:$0xff]
          %v670 = vld [vmem:[%s520 + $0x8] sm:$0xff]
          %v671 = vpack.c.bf16 %v670, %v669
          %v673 = vunpack.c.l.b16 %v671
          %v674 = vunpack.c.h.b16 %v671
          %v675 = vpack.c.b16 %v673, %v673
          %v676 = vpack.c.b16 %v674, %v674
          %679 = vst.msk [vmem:[#allocation4] sm:$0xf] %vm666, %v675
          %680 = vst.msk [vmem:[#allocation4 + $0x4] sm:$0xf] %vm666, %v676
        $region88: #{tpu_custom_call.1} parent=63 // pred_fallthru
          _
        %v681 = vld [vmem:[%s547] sm:$0xff]
        %v682 = vld [vmem:[%s547 + $0x8] sm:$0xff]
        %v683 = vld [vmem:[#allocation2] sm:$0xff]
        %v684 = vld [vmem:[%s538] sm:$0xff]
        %v685 = vadd.f32 %v683, %v684
        %v686 = vpack.c.bf16 %v685, %v685
        %v687 = vpack.c.bf16 %v683, %v683
        %v688 = vld [vmem:[%s629] sm:$0xf]
        %v689 = vld [vmem:[%s629 + $0x4] sm:$0xf]
        %v690 = vld [vmem:[%s629 + $0x8] sm:$0xf]
        %v691 = vld [vmem:[%s629 + $0xc] sm:$0xf]
        %s692 = scalar_lea.vmem %s629, 16
        %v693 = vld [vmem:[%s692] sm:$0xf]
        %v694 = vld [vmem:[%s692 + $0x4] sm:$0xf]
        %v695 = vld [vmem:[%s692 + $0x8] sm:$0xf]
        %v696 = vld [vmem:[%s692 + $0xc] sm:$0xf]
        %s697 = scalar_lea.vmem %s629, 32
        %v698 = vld [vmem:[%s697] sm:$0xf]
        %v699 = vld [vmem:[%s697 + $0x4] sm:$0xf]
        %v700 = vld [vmem:[%s697 + $0x8] sm:$0xf]
        %v701 = vld [vmem:[%s697 + $0xc] sm:$0xf]
        %s702 = scalar_lea.vmem %s629, 48
        %v703 = vld [vmem:[%s702] sm:$0xf]
        %v704 = vld [vmem:[%s702 + $0x4] sm:$0xf]
        %v705 = vld [vmem:[%s702 + $0x8] sm:$0xf]
        %v706 = vld [vmem:[%s702 + $0xc] sm:$0xf]
        %v707 = vlaneseq
        %v708 = vshrl.u32 %v707, 7
        %v709 = vsub.s32 0, %v708
        %v710 = vrot.slane %v681, %v709
        %v715 = vunpack.c.l.b16 %v688
        %v716 = vunpack.c.l.b16 %v689
        %v717 = vunpack.c.l.b16 %v690
        %v718 = vunpack.c.l.b16 %v691
        %v719 = vpack.c.b16 %v716, %v715
        %v720 = vpack.c.b16 %v718, %v717
        %vm723 = vcmask 261120
        %v725 = vsel %vm723, %v686, 0
        %727 = vmatprep.subr.bf16.mxu0 0
        %728 = vmatpush1.bf16.msra.mxu0 0
        %729 = vmatprep.subr.bf16.mxu0 0
        %730 = vmatpush1.bf16.msra.mxu0 0
        %731 = vmatprep.subr.bf16.mxu0 0
        %732 = vmatpush1.bf16.msra.mxu0 0
        %733 = vmatprep.subr.bf16.mxu0 0
        %734 = vmatpush1.bf16.msra.mxu0 0
        %735 = vmatprep.subr.bf16.mxu0 0
        %736 = vmatpush1.bf16.msra.mxu0 0
        %737 = vmatprep.subr.bf16.mxu0 0
        %738 = vmatpush1.bf16.msra.mxu0 0
        %739 = vmatprep.subr.bf16.mxu0 0
        %740 = vmatpush1.bf16.msra.mxu0 %v720
        %741 = vmatprep.subr.bf16.mxu0 0
        %742 = vmatpush1.bf16.msra.mxu0 %v719
        %743 = vmatprep.subr.bf16.mxu0 0
        %744 = vmatpush2.bf16.msra.mxu0 0
        %745 = vmatprep.subr.bf16.mxu0 0
        %746 = vmatpush2.bf16.msra.mxu0 0
        %747 = vmatprep.subr.bf16.mxu0 0
        %748 = vmatpush2.bf16.msra.mxu0 0
        %749 = vmatprep.subr.bf16.mxu0 0
        %750 = vmatpush2.bf16.msra.mxu0 0
        %751 = vmatprep.subr.bf16.mxu0 0
        %752 = vmatpush2.bf16.msra.mxu0 0
        %753 = vmatprep.subr.bf16.mxu0 0
        %754 = vmatpush2.bf16.msra.mxu0 0
        %755 = vmatprep.subr.bf16.mxu0 0
        %756 = vmatpush2.bf16.msra.mxu0 0
        %757 = vmatprep.subr.bf16.mxu0 0
        %758 = vmatpush2.bf16.msra.mxu0 0
        %759 = vmatprep.mubr.bf16.mxu0 0
        %760 = vmatmul.mubr.bf16.gmra.mxu0 %v725
        %v761 = vpop.f32.mrf.mxu0
        %v762 = vadd.f32 %v710, %v761
        %v763 = vpop.f32.mrf.mxu0
        %v764 = vpop.f32.mrf.mxu0
        %v765 = vpop.f32.mrf.mxu0
        %766 = vdwg.mxu0
        %v767 = vlaneseq
        %v768 = vshrl.u32 %v767, 7
        %v769 = vsub.s32 1, %v768
        %v770 = vrot.slane %v681, %v769
        %v775 = vunpack.c.l.b16 %v693
        %v776 = vunpack.c.l.b16 %v694
        %v777 = vunpack.c.l.b16 %v695
        %v778 = vunpack.c.l.b16 %v696
        %v779 = vpack.c.b16 %v776, %v775
        %v780 = vpack.c.b16 %v778, %v777
        %783 = vmatprep.subr.bf16.mxu0 0
        %784 = vmatpush1.bf16.msra.mxu0 0
        %785 = vmatprep.subr.bf16.mxu0 0
        %786 = vmatpush1.bf16.msra.mxu0 0
        %787 = vmatprep.subr.bf16.mxu0 0
        %788 = vmatpush1.bf16.msra.mxu0 0
        %789 = vmatprep.subr.bf16.mxu0 0
        %790 = vmatpush1.bf16.msra.mxu0 0
        %791 = vmatprep.subr.bf16.mxu0 0
        %792 = vmatpush1.bf16.msra.mxu0 0
        %793 = vmatprep.subr.bf16.mxu0 0
        %794 = vmatpush1.bf16.msra.mxu0 0
        %795 = vmatprep.subr.bf16.mxu0 0
        %796 = vmatpush1.bf16.msra.mxu0 %v780
        %797 = vmatprep.subr.bf16.mxu0 0
        %798 = vmatpush1.bf16.msra.mxu0 %v779
        %799 = vmatprep.subr.bf16.mxu0 0
        %800 = vmatpush2.bf16.msra.mxu0 0
        %801 = vmatprep.subr.bf16.mxu0 0
        %802 = vmatpush2.bf16.msra.mxu0 0
        %803 = vmatprep.subr.bf16.mxu0 0
        %804 = vmatpush2.bf16.msra.mxu0 0
        %805 = vmatprep.subr.bf16.mxu0 0
        %806 = vmatpush2.bf16.msra.mxu0 0
        %807 = vmatprep.subr.bf16.mxu0 0
        %808 = vmatpush2.bf16.msra.mxu0 0
        %809 = vmatprep.subr.bf16.mxu0 0
        %810 = vmatpush2.bf16.msra.mxu0 0
        %811 = vmatprep.subr.bf16.mxu0 0
        %812 = vmatpush2.bf16.msra.mxu0 0
        %813 = vmatprep.subr.bf16.mxu0 0
        %814 = vmatpush2.bf16.msra.mxu0 0
        %815 = vmatprep.mubr.bf16.mxu0 0
        %816 = vmatmul.mubr.bf16.gmra.mxu0 %v725
        %v817 = vpop.f32.mrf.mxu0
        %v818 = vadd.f32 %v770, %v817
        %v819 = vpop.f32.mrf.mxu0
        %v820 = vpop.f32.mrf.mxu0
        %v821 = vpop.f32.mrf.mxu0
        %822 = vdwg.mxu0
        %v823 = vlaneseq
        %v824 = vshrl.u32 %v823, 7
        %v825 = vsub.s32 2, %v824
        %v826 = vrot.slane %v681, %v825
        %v831 = vunpack.c.l.b16 %v698
        %v832 = vunpack.c.l.b16 %v699
        %v833 = vunpack.c.l.b16 %v700
        %v834 = vunpack.c.l.b16 %v701
        %v835 = vpack.c.b16 %v832, %v831
        %v836 = vpack.c.b16 %v834, %v833
        %v840 = vsel %vm723, %v687, 0
        %842 = vmatprep.subr.bf16.mxu0 0
        %843 = vmatpush1.bf16.msra.mxu0 0
        %844 = vmatprep.subr.bf16.mxu0 0
        %845 = vmatpush1.bf16.msra.mxu0 0
        %846 = vmatprep.subr.bf16.mxu0 0
        %847 = vmatpush1.bf16.msra.mxu0 0
        %848 = vmatprep.subr.bf16.mxu0 0
        %849 = vmatpush1.bf16.msra.mxu0 0
        %850 = vmatprep.subr.bf16.mxu0 0
        %851 = vmatpush1.bf16.msra.mxu0 0
        %852 = vmatprep.subr.bf16.mxu0 0
        %853 = vmatpush1.bf16.msra.mxu0 0
        %854 = vmatprep.subr.bf16.mxu0 0
        %855 = vmatpush1.bf16.msra.mxu0 %v836
        %856 = vmatprep.subr.bf16.mxu0 0
        %857 = vmatpush1.bf16.msra.mxu0 %v835
        %858 = vmatprep.subr.bf16.mxu0 0
        %859 = vmatpush2.bf16.msra.mxu0 0
        %860 = vmatprep.subr.bf16.mxu0 0
        %861 = vmatpush2.bf16.msra.mxu0 0
        %862 = vmatprep.subr.bf16.mxu0 0
        %863 = vmatpush2.bf16.msra.mxu0 0
        %864 = vmatprep.subr.bf16.mxu0 0
        %865 = vmatpush2.bf16.msra.mxu0 0
        %866 = vmatprep.subr.bf16.mxu0 0
        %867 = vmatpush2.bf16.msra.mxu0 0
        %868 = vmatprep.subr.bf16.mxu0 0
        %869 = vmatpush2.bf16.msra.mxu0 0
        %870 = vmatprep.subr.bf16.mxu0 0
        %871 = vmatpush2.bf16.msra.mxu0 0
        %872 = vmatprep.subr.bf16.mxu0 0
        %873 = vmatpush2.bf16.msra.mxu0 0
        %874 = vmatprep.mubr.bf16.mxu0 0
        %875 = vmatmul.mubr.bf16.gmra.mxu0 %v840
        %v876 = vpop.f32.mrf.mxu0
        %v877 = vadd.f32 %v826, %v876
        %v878 = vpop.f32.mrf.mxu0
        %v879 = vpop.f32.mrf.mxu0
        %v880 = vpop.f32.mrf.mxu0
        %881 = vdwg.mxu0
        %v882 = vpack.c.bf16 %v762, %v762
        %v883 = vpack.c.bf16 %v818, %v818
        %vm884 = vcmask 31744
        %v886 = vsel %vm884, %v882, 0
        %v889 = vsel %vm884, %v883, 0
        %891 = vmatprep.subr.bf16.mxu0 0
        %892 = vmatpush1.bf16.xpose.msra.mxu0 0
        %893 = vmatprep.subr.bf16.mxu0 0
        %894 = vmatpush1.bf16.xpose.msra.mxu0 0
        %895 = vmatprep.subr.bf16.mxu0 0
        %896 = vmatpush1.bf16.xpose.msra.mxu0 0
        %897 = vmatprep.subr.bf16.mxu0 0
        %898 = vmatpush1.bf16.xpose.msra.mxu0 0
        %899 = vmatprep.subr.bf16.mxu0 0
        %900 = vmatpush1.bf16.xpose.msra.mxu0 0
        %901 = vmatprep.subr.bf16.mxu0 0
        %902 = vmatpush1.bf16.xpose.msra.mxu0 0
        %903 = vmatprep.subr.bf16.mxu0 0
        %904 = vmatpush1.bf16.xpose.msra.mxu0 0
        %905 = vmatprep.subr.bf16.mxu0 0
        %906 = vmatpush1.bf16.xpose.msra.mxu0 %v889
        %907 = vmatprep.subr.bf16.mxu0 0
        %908 = vmatpush2.bf16.xpose.msra.mxu0 0
        %909 = vmatprep.subr.bf16.mxu0 0
        %910 = vmatpush2.bf16.xpose.msra.mxu0 0
        %911 = vmatprep.subr.bf16.mxu0 0
        %912 = vmatpush2.bf16.xpose.msra.mxu0 0
        %913 = vmatprep.subr.bf16.mxu0 0
        %914 = vmatpush2.bf16.xpose.msra.mxu0 0
        %915 = vmatprep.subr.bf16.mxu0 0
        %916 = vmatpush2.bf16.xpose.msra.mxu0 0
        %917 = vmatprep.subr.bf16.mxu0 0
        %918 = vmatpush2.bf16.xpose.msra.mxu0 0
        %919 = vmatprep.subr.bf16.mxu0 0
        %920 = vmatpush2.bf16.xpose.msra.mxu0 0
        %921 = vmatprep.subr.bf16.mxu0 0
        %922 = vmatpush2.bf16.xpose.msra.mxu0 0
        %923 = vmatprep.mubr.bf16.mxu0 0
        %924 = vmatmul.mubr.bf16.gmra.mxu0 %v886
        %v925 = vpop.f32.mrf.mxu0
        %v926 = vadd.f32 0.0, %v925
        %v927 = vpop.f32.mrf.mxu0
        %v928 = vpop.f32.mrf.mxu0
        %v929 = vpop.f32.mrf.mxu0
        %930 = vdwg.mxu0
        %v931 = vmul.f32 %v926, 0.5
        %vm932 = vcmask 64512
        %v933 = vsel %vm932, %v931, -inf
        %934 = vmax.xlane.f32.xlu0 %v933
        %v935 = vpop.xlane.xlu0 %934
        %v936 = vsub.f32 %v931, %v935
        %v937 = vmul.f32 %v936, 1.442695
        %v938 = vpow.pop %v937
        %v939 = vsel %vm932, %v938, 0.0
        %940 = vadd.xlane.f32.xlu0 %v939
        %v941 = vpop.xlane.xlu0 %940
        %v942 = vrcp.pop %v941
        %v943 = vmul.f32 %v938, %v942
        %v944 = vpack.c.bf16 %v943, %v943
        %v945 = vpack.c.bf16 %v877, %v877
        %v947 = vsel %vm932, %v944, 0
        %vm949 = vcmask 1043456
        %v951 = vsel %vm949, %v945, 0
        %953 = vmatprep.subr.bf16.mxu0 0
        %954 = vmatpush1.bf16.msra.mxu0 0
        %955 = vmatprep.subr.bf16.mxu0 0
        %956 = vmatpush1.bf16.msra.mxu0 0
        %957 = vmatprep.subr.bf16.mxu0 0
        %958 = vmatpush1.bf16.msra.mxu0 0
        %959 = vmatprep.subr.bf16.mxu0 0
        %960 = vmatpush1.bf16.msra.mxu0 0
        %961 = vmatprep.subr.bf16.mxu0 0
        %962 = vmatpush1.bf16.msra.mxu0 0
        %963 = vmatprep.subr.bf16.mxu0 0
        %964 = vmatpush1.bf16.msra.mxu0 0
        %965 = vmatprep.subr.bf16.mxu0 0
        %966 = vmatpush1.bf16.msra.mxu0 0
        %967 = vmatprep.subr.bf16.mxu0 0
        %968 = vmatpush1.bf16.msra.mxu0 %v951
        %969 = vmatprep.subr.bf16.mxu0 0
        %970 = vmatpush2.bf16.msra.mxu0 0
        %971 = vmatprep.subr.bf16.mxu0 0
        %972 = vmatpush2.bf16.msra.mxu0 0
        %973 = vmatprep.subr.bf16.mxu0 0
        %974 = vmatpush2.bf16.msra.mxu0 0
        %975 = vmatprep.subr.bf16.mxu0 0
        %976 = vmatpush2.bf16.msra.mxu0 0
        %977 = vmatprep.subr.bf16.mxu0 0
        %978 = vmatpush2.bf16.msra.mxu0 0
        %979 = vmatprep.subr.bf16.mxu0 0
        %980 = vmatpush2.bf16.msra.mxu0 0
        %981 = vmatprep.subr.bf16.mxu0 0
        %982 = vmatpush2.bf16.msra.mxu0 0
        %983 = vmatprep.subr.bf16.mxu0 0
        %984 = vmatpush2.bf16.msra.mxu0 0
        %985 = vmatprep.mubr.bf16.mxu0 0
        %986 = vmatmul.mubr.bf16.gmra.mxu0 %v947
        %v987 = vpop.f32.mrf.mxu0
        %v988 = vadd.f32 0.0, %v987
        %v989 = vpop.f32.mrf.mxu0
        %v990 = vpop.f32.mrf.mxu0
        %v991 = vpop.f32.mrf.mxu0
        %992 = vdwg.mxu0
        %994 = vrot.lane.b32.xlu0 %v882, 124
        %v995 = vpop.permute.xlu0 %994
        %997 = vrot.lane.b32.xlu0 %v883, 124
        %v998 = vpop.permute.xlu0 %997
        %v1000 = vsel %vm884, %v995, 0
        %v1003 = vsel %vm884, %v998, 0
        %1005 = vmatprep.subr.bf16.mxu0 0
        %1006 = vmatpush1.bf16.xpose.msra.mxu0 0
        %1007 = vmatprep.subr.bf16.mxu0 0
        %1008 = vmatpush1.bf16.xpose.msra.mxu0 0
        %1009 = vmatprep.subr.bf16.mxu0 0
        %1010 = vmatpush1.bf16.xpose.msra.mxu0 0
        %1011 = vmatprep.subr.bf16.mxu0 0
        %1012 = vmatpush1.bf16.xpose.msra.mxu0 0
        %1013 = vmatprep.subr.bf16.mxu0 0
        %1014 = vmatpush1.bf16.xpose.msra.mxu0 0
        %1015 = vmatprep.subr.bf16.mxu0 0
        %1016 = vmatpush1.bf16.xpose.msra.mxu0 0
        %1017 = vmatprep.subr.bf16.mxu0 0
        %1018 = vmatpush1.bf16.xpose.msra.mxu0 0
        %1019 = vmatprep.subr.bf16.mxu0 0
        %1020 = vmatpush1.bf16.xpose.msra.mxu0 %v1003
        %1021 = vmatprep.subr.bf16.mxu0 0
        %1022 = vmatpush2.bf16.xpose.msra.mxu0 0
        %1023 = vmatprep.subr.bf16.mxu0 0
        %1024 = vmatpush2.bf16.xpose.msra.mxu0 0
        %1025 = vmatprep.subr.bf16.mxu0 0
        %1026 = vmatpush2.bf16.xpose.msra.mxu0 0
        %1027 = vmatprep.subr.bf16.mxu0 0
        %1028 = vmatpush2.bf16.xpose.msra.mxu0 0
        %1029 = vmatprep.subr.bf16.mxu0 0
        %1030 = vmatpush2.bf16.xpose.msra.mxu0 0
        %1031 = vmatprep.subr.bf16.mxu0 0
        %1032 = vmatpush2.bf16.xpose.msra.mxu0 0
        %1033 = vmatprep.subr.bf16.mxu0 0
        %1034 = vmatpush2.bf16.xpose.msra.mxu0 0
        %1035 = vmatprep.subr.bf16.mxu0 0
        %1036 = vmatpush2.bf16.xpose.msra.mxu0 0
        %1037 = vmatprep.mubr.bf16.mxu0 0
        %1038 = vmatmul.mubr.bf16.gmra.mxu0 %v1000
        %v1039 = vpop.f32.mrf.mxu0
        %v1040 = vadd.f32 0.0, %v1039
        %v1041 = vpop.f32.mrf.mxu0
        %v1042 = vpop.f32.mrf.mxu0
        %v1043 = vpop.f32.mrf.mxu0
        %1044 = vdwg.mxu0
        %v1045 = vmul.f32 %v1040, 0.5
        %v1046 = vsel %vm932, %v1045, -inf
        %1047 = vmax.xlane.f32.xlu0 %v1046
        %v1048 = vpop.xlane.xlu0 %1047
        %v1049 = vsub.f32 %v1045, %v1048
        %v1050 = vmul.f32 %v1049, 1.442695
        %v1051 = vpow.pop %v1050
        %v1052 = vsel %vm932, %v1051, 0.0
        %1053 = vadd.xlane.f32.xlu0 %v1052
        %v1054 = vpop.xlane.xlu0 %1053
        %v1055 = vrcp.pop %v1054
        %v1056 = vmul.f32 %v1051, %v1055
        %v1057 = vpack.c.bf16 %v1056, %v1056
        %1059 = vrot.lane.b32.xlu0 %v945, 124
        %v1060 = vpop.permute.xlu0 %1059
        %v1062 = vsel %vm932, %v1057, 0
        %v1065 = vsel %vm949, %v1060, 0
        %1067 = vmatprep.subr.bf16.mxu0 0
        %1068 = vmatpush1.bf16.msra.mxu0 0
        %1069 = vmatprep.subr.bf16.mxu0 0
        %1070 = vmatpush1.bf16.msra.mxu0 0
        %1071 = vmatprep.subr.bf16.mxu0 0
        %1072 = vmatpush1.bf16.msra.mxu0 0
        %1073 = vmatprep.subr.bf16.mxu0 0
        %1074 = vmatpush1.bf16.msra.mxu0 0
        %1075 = vmatprep.subr.bf16.mxu0 0
        %1076 = vmatpush1.bf16.msra.mxu0 0
        %1077 = vmatprep.subr.bf16.mxu0 0
        %1078 = vmatpush1.bf16.msra.mxu0 0
        %1079 = vmatprep.subr.bf16.mxu0 0
        %1080 = vmatpush1.bf16.msra.mxu0 0
        %1081 = vmatprep.subr.bf16.mxu0 0
        %1082 = vmatpush1.bf16.msra.mxu0 %v1065
        %1083 = vmatprep.subr.bf16.mxu0 0
        %1084 = vmatpush2.bf16.msra.mxu0 0
        %1085 = vmatprep.subr.bf16.mxu0 0
        %1086 = vmatpush2.bf16.msra.mxu0 0
        %1087 = vmatprep.subr.bf16.mxu0 0
        %1088 = vmatpush2.bf16.msra.mxu0 0
        %1089 = vmatprep.subr.bf16.mxu0 0
        %1090 = vmatpush2.bf16.msra.mxu0 0
        %1091 = vmatprep.subr.bf16.mxu0 0
        %1092 = vmatpush2.bf16.msra.mxu0 0
        %1093 = vmatprep.subr.bf16.mxu0 0
        %1094 = vmatpush2.bf16.msra.mxu0 0
        %1095 = vmatprep.subr.bf16.mxu0 0
        %1096 = vmatpush2.bf16.msra.mxu0 0
        %1097 = vmatprep.subr.bf16.mxu0 0
        %1098 = vmatpush2.bf16.msra.mxu0 0
        %1099 = vmatprep.mubr.bf16.mxu0 0
        %1100 = vmatmul.mubr.bf16.gmra.mxu0 %v1062
        %v1101 = vpop.f32.mrf.mxu0
        %v1102 = vadd.f32 0.0, %v1101
        %v1103 = vpop.f32.mrf.mxu0
        %v1104 = vpop.f32.mrf.mxu0
        %v1105 = vpop.f32.mrf.mxu0
        %1106 = vdwg.mxu0
        %1107 = vrot.lane.b32.xlu0 %v882, 120
        %v1108 = vpop.permute.xlu0 %1107
        %1109 = vrot.lane.b32.xlu0 %v883, 120
        %v1110 = vpop.permute.xlu0 %1109
        %v1112 = vsel %vm884, %v1108, 0
        %v1115 = vsel %vm884, %v1110, 0
        %1117 = vmatprep.subr.bf16.mxu0 0
        %1118 = vmatpush1.bf16.xpose.msra.mxu0 0
        %1119 = vmatprep.subr.bf16.mxu0 0
        %1120 = vmatpush1.bf16.xpose.msra.mxu0 0
        %1121 = vmatprep.subr.bf16.mxu0 0
        %1122 = vmatpush1.bf16.xpose.msra.mxu0 0
        %1123 = vmatprep.subr.bf16.mxu0 0
        %1124 = vmatpush1.bf16.xpose.msra.mxu0 0
        %1125 = vmatprep.subr.bf16.mxu0 0
        %1126 = vmatpush1.bf16.xpose.msra.mxu0 0
        %1127 = vmatprep.subr.bf16.mxu0 0
        %1128 = vmatpush1.bf16.xpose.msra.mxu0 0
        %1129 = vmatprep.subr.bf16.mxu0 0
        %1130 = vmatpush1.bf16.xpose.msra.mxu0 0
        %1131 = vmatprep.subr.bf16.mxu0 0
        %1132 = vmatpush1.bf16.xpose.msra.mxu0 %v1115
        %1133 = vmatprep.subr.bf16.mxu0 0
        %1134 = vmatpush2.bf16.xpose.msra.mxu0 0
        %1135 = vmatprep.subr.bf16.mxu0 0
        %1136 = vmatpush2.bf16.xpose.msra.mxu0 0
        %1137 = vmatprep.subr.bf16.mxu0 0
        %1138 = vmatpush2.bf16.xpose.msra.mxu0 0
        %1139 = vmatprep.subr.bf16.mxu0 0
        %1140 = vmatpush2.bf16.xpose.msra.mxu0 0
        %1141 = vmatprep.subr.bf16.mxu0 0
        %1142 = vmatpush2.bf16.xpose.msra.mxu0 0
        %1143 = vmatprep.subr.bf16.mxu0 0
        %1144 = vmatpush2.bf16.xpose.msra.mxu0 0
        %1145 = vmatprep.subr.bf16.mxu0 0
        %1146 = vmatpush2.bf16.xpose.msra.mxu0 0
        %1147 = vmatprep.subr.bf16.mxu0 0
        %1148 = vmatpush2.bf16.xpose.msra.mxu0 0
        %1149 = vmatprep.mubr.bf16.mxu0 0
        %1150 = vmatmul.mubr.bf16.gmra.mxu0 %v1112
        %v1151 = vpop.f32.mrf.mxu0
        %v1152 = vadd.f32 0.0, %v1151
        %v1153 = vpop.f32.mrf.mxu0
        %v1154 = vpop.f32.mrf.mxu0
        %v1155 = vpop.f32.mrf.mxu0
        %1156 = vdwg.mxu0
        %v1157 = vmul.f32 %v1152, 0.5
        %v1158 = vsel %vm932, %v1157, -inf
        %1159 = vmax.xlane.f32.xlu0 %v1158
        %v1160 = vpop.xlane.xlu0 %1159
        %v1161 = vsub.f32 %v1157, %v1160
        %v1162 = vmul.f32 %v1161, 1.442695
        %v1163 = vpow.pop %v1162
        %v1164 = vsel %vm932, %v1163, 0.0
        %1165 = vadd.xlane.f32.xlu0 %v1164
        %v1166 = vpop.xlane.xlu0 %1165
        %v1167 = vrcp.pop %v1166
        %v1168 = vmul.f32 %v1163, %v1167
        %v1169 = vpack.c.bf16 %v1168, %v1168
        %1170 = vrot.lane.b32.xlu0 %v945, 120
        %v1171 = vpop.permute.xlu0 %1170
        %v1173 = vsel %vm932, %v1169, 0
        %v1176 = vsel %vm949, %v1171, 0
        %1178 = vmatprep.subr.bf16.mxu0 0
        %1179 = vmatpush1.bf16.msra.mxu0 0
        %1180 = vmatprep.subr.bf16.mxu0 0
        %1181 = vmatpush1.bf16.msra.mxu0 0
        %1182 = vmatprep.subr.bf16.mxu0 0
        %1183 = vmatpush1.bf16.msra.mxu0 0
        %1184 = vmatprep.subr.bf16.mxu0 0
        %1185 = vmatpush1.bf16.msra.mxu0 0
        %1186 = vmatprep.subr.bf16.mxu0 0
        %1187 = vmatpush1.bf16.msra.mxu0 0
        %1188 = vmatprep.subr.bf16.mxu0 0
        %1189 = vmatpush1.bf16.msra.mxu0 0
        %1190 = vmatprep.subr.bf16.mxu0 0
        %1191 = vmatpush1.bf16.msra.mxu0 0
        %1192 = vmatprep.subr.bf16.mxu0 0
        %1193 = vmatpush1.bf16.msra.mxu0 %v1176
        %1194 = vmatprep.subr.bf16.mxu0 0
        %1195 = vmatpush2.bf16.msra.mxu0 0
        %1196 = vmatprep.subr.bf16.mxu0 0
        %1197 = vmatpush2.bf16.msra.mxu0 0
        %1198 = vmatprep.subr.bf16.mxu0 0
        %1199 = vmatpush2.bf16.msra.mxu0 0
        %1200 = vmatprep.subr.bf16.mxu0 0
        %1201 = vmatpush2.bf16.msra.mxu0 0
        %1202 = vmatprep.subr.bf16.mxu0 0
        %1203 = vmatpush2.bf16.msra.mxu0 0
        %1204 = vmatprep.subr.bf16.mxu0 0
        %1205 = vmatpush2.bf16.msra.mxu0 0
        %1206 = vmatprep.subr.bf16.mxu0 0
        %1207 = vmatpush2.bf16.msra.mxu0 0
        %1208 = vmatprep.subr.bf16.mxu0 0
        %1209 = vmatpush2.bf16.msra.mxu0 0
        %1210 = vmatprep.mubr.bf16.mxu0 0
        %1211 = vmatmul.mubr.bf16.gmra.mxu0 %v1173
        %v1212 = vpop.f32.mrf.mxu0
        %v1213 = vadd.f32 0.0, %v1212
        %v1214 = vpop.f32.mrf.mxu0
        %v1215 = vpop.f32.mrf.mxu0
        %v1216 = vpop.f32.mrf.mxu0
        %1217 = vdwg.mxu0
        %1218 = vrot.lane.b32.xlu0 %v882, 116
        %v1219 = vpop.permute.xlu0 %1218
        %1220 = vrot.lane.b32.xlu0 %v883, 116
        %v1221 = vpop.permute.xlu0 %1220
        %v1223 = vsel %vm884, %v1219, 0
        %v1226 = vsel %vm884, %v1221, 0
        %1228 = vmatprep.subr.bf16.mxu0 0
        %1229 = vmatpush1.bf16.xpose.msra.mxu0 0
        %1230 = vmatprep.subr.bf16.mxu0 0
        %1231 = vmatpush1.bf16.xpose.msra.mxu0 0
        %1232 = vmatprep.subr.bf16.mxu0 0
        %1233 = vmatpush1.bf16.xpose.msra.mxu0 0
        %1234 = vmatprep.subr.bf16.mxu0 0
        %1235 = vmatpush1.bf16.xpose.msra.mxu0 0
        %1236 = vmatprep.subr.bf16.mxu0 0
        %1237 = vmatpush1.bf16.xpose.msra.mxu0 0
        %1238 = vmatprep.subr.bf16.mxu0 0
        %1239 = vmatpush1.bf16.xpose.msra.mxu0 0
        %1240 = vmatprep.subr.bf16.mxu0 0
        %1241 = vmatpush1.bf16.xpose.msra.mxu0 0
        %1242 = vmatprep.subr.bf16.mxu0 0
        %1243 = vmatpush1.bf16.xpose.msra.mxu0 %v1226
        %1244 = vmatprep.subr.bf16.mxu0 0
        %1245 = vmatpush2.bf16.xpose.msra.mxu0 0
        %1246 = vmatprep.subr.bf16.mxu0 0
        %1247 = vmatpush2.bf16.xpose.msra.mxu0 0
        %1248 = vmatprep.subr.bf16.mxu0 0
        %1249 = vmatpush2.bf16.xpose.msra.mxu0 0
        %1250 = vmatprep.subr.bf16.mxu0 0
        %1251 = vmatpush2.bf16.xpose.msra.mxu0 0
        %1252 = vmatprep.subr.bf16.mxu0 0
        %1253 = vmatpush2.bf16.xpose.msra.mxu0 0
        %1254 = vmatprep.subr.bf16.mxu0 0
        %1255 = vmatpush2.bf16.xpose.msra.mxu0 0
        %1256 = vmatprep.subr.bf16.mxu0 0
        %1257 = vmatpush2.bf16.xpose.msra.mxu0 0
        %1258 = vmatprep.subr.bf16.mxu0 0
        %1259 = vmatpush2.bf16.xpose.msra.mxu0 0
        %1260 = vmatprep.mubr.bf16.mxu0 0
        %1261 = vmatmul.mubr.bf16.gmra.mxu0 %v1223
        %v1262 = vpop.f32.mrf.mxu0
        %v1263 = vadd.f32 0.0, %v1262
        %v1264 = vpop.f32.mrf.mxu0
        %v1265 = vpop.f32.mrf.mxu0
        %v1266 = vpop.f32.mrf.mxu0
        %1267 = vdwg.mxu0
        %v1268 = vmul.f32 %v1263, 0.5
        %v1269 = vsel %vm932, %v1268, -inf
        %1270 = vmax.xlane.f32.xlu0 %v1269
        %v1271 = vpop.xlane.xlu0 %1270
        %v1272 = vsub.f32 %v1268, %v1271
        %v1273 = vmul.f32 %v1272, 1.442695
        %v1274 = vpow.pop %v1273
        %v1275 = vsel %vm932, %v1274, 0.0
        %1276 = vadd.xlane.f32.xlu0 %v1275
        %v1277 = vpop.xlane.xlu0 %1276
        %v1278 = vrcp.pop %v1277
        %v1279 = vmul.f32 %v1274, %v1278
        %v1280 = vpack.c.bf16 %v1279, %v1279
        %1281 = vrot.lane.b32.xlu0 %v945, 116
        %v1282 = vpop.permute.xlu0 %1281
        %v1284 = vsel %vm932, %v1280, 0
        %v1287 = vsel %vm949, %v1282, 0
        %1289 = vmatprep.subr.bf16.mxu0 0
        %1290 = vmatpush1.bf16.msra.mxu0 0
        %1291 = vmatprep.subr.bf16.mxu0 0
        %1292 = vmatpush1.bf16.msra.mxu0 0
        %1293 = vmatprep.subr.bf16.mxu0 0
        %1294 = vmatpush1.bf16.msra.mxu0 0
        %1295 = vmatprep.subr.bf16.mxu0 0
        %1296 = vmatpush1.bf16.msra.mxu0 0
        %1297 = vmatprep.subr.bf16.mxu0 0
        %1298 = vmatpush1.bf16.msra.mxu0 0
        %1299 = vmatprep.subr.bf16.mxu0 0
        %1300 = vmatpush1.bf16.msra.mxu0 0
        %1301 = vmatprep.subr.bf16.mxu0 0
        %1302 = vmatpush1.bf16.msra.mxu0 0
        %1303 = vmatprep.subr.bf16.mxu0 0
        %1304 = vmatpush1.bf16.msra.mxu0 %v1287
        %1305 = vmatprep.subr.bf16.mxu0 0
        %1306 = vmatpush2.bf16.msra.mxu0 0
        %1307 = vmatprep.subr.bf16.mxu0 0
        %1308 = vmatpush2.bf16.msra.mxu0 0
        %1309 = vmatprep.subr.bf16.mxu0 0
        %1310 = vmatpush2.bf16.msra.mxu0 0
        %1311 = vmatprep.subr.bf16.mxu0 0
        %1312 = vmatpush2.bf16.msra.mxu0 0
        %1313 = vmatprep.subr.bf16.mxu0 0
        %1314 = vmatpush2.bf16.msra.mxu0 0
        %1315 = vmatprep.subr.bf16.mxu0 0
        %1316 = vmatpush2.bf16.msra.mxu0 0
        %1317 = vmatprep.subr.bf16.mxu0 0
        %1318 = vmatpush2.bf16.msra.mxu0 0
        %1319 = vmatprep.subr.bf16.mxu0 0
        %1320 = vmatpush2.bf16.msra.mxu0 0
        %1321 = vmatprep.mubr.bf16.mxu0 0
        %1322 = vmatmul.mubr.bf16.gmra.mxu0 %v1284
        %v1323 = vpop.f32.mrf.mxu0
        %v1324 = vadd.f32 0.0, %v1323
        %v1325 = vpop.f32.mrf.mxu0
        %v1326 = vpop.f32.mrf.mxu0
        %v1327 = vpop.f32.mrf.mxu0
        %1328 = vdwg.mxu0
        %1329 = vrot.lane.b32.xlu0 %v882, 112
        %v1330 = vpop.permute.xlu0 %1329
        %1331 = vrot.lane.b32.xlu0 %v883, 112
        %v1332 = vpop.permute.xlu0 %1331
        %v1334 = vsel %vm884, %v1330, 0
        %v1337 = vsel %vm884, %v1332, 0
        %1339 = vmatprep.subr.bf16.mxu0 0
        %1340 = vmatpush1.bf16.xpose.msra.mxu0 0
        %1341 = vmatprep.subr.bf16.mxu0 0
        %1342 = vmatpush1.bf16.xpose.msra.mxu0 0
        %1343 = vmatprep.subr.bf16.mxu0 0
        %1344 = vmatpush1.bf16.xpose.msra.mxu0 0
        %1345 = vmatprep.subr.bf16.mxu0 0
        %1346 = vmatpush1.bf16.xpose.msra.mxu0 0
        %1347 = vmatprep.subr.bf16.mxu0 0
        %1348 = vmatpush1.bf16.xpose.msra.mxu0 0
        %1349 = vmatprep.subr.bf16.mxu0 0
        %1350 = vmatpush1.bf16.xpose.msra.mxu0 0
        %1351 = vmatprep.subr.bf16.mxu0 0
        %1352 = vmatpush1.bf16.xpose.msra.mxu0 0
        %1353 = vmatprep.subr.bf16.mxu0 0
        %1354 = vmatpush1.bf16.xpose.msra.mxu0 %v1337
        %1355 = vmatprep.subr.bf16.mxu0 0
        %1356 = vmatpush2.bf16.xpose.msra.mxu0 0
        %1357 = vmatprep.subr.bf16.mxu0 0
        %1358 = vmatpush2.bf16.xpose.msra.mxu0 0
        %1359 = vmatprep.subr.bf16.mxu0 0
        %1360 = vmatpush2.bf16.xpose.msra.mxu0 0
        %1361 = vmatprep.subr.bf16.mxu0 0
        %1362 = vmatpush2.bf16.xpose.msra.mxu0 0
        %1363 = vmatprep.subr.bf16.mxu0 0
        %1364 = vmatpush2.bf16.xpose.msra.mxu0 0
        %1365 = vmatprep.subr.bf16.mxu0 0
        %1366 = vmatpush2.bf16.xpose.msra.mxu0 0
        %1367 = vmatprep.subr.bf16.mxu0 0
        %1368 = vmatpush2.bf16.xpose.msra.mxu0 0
        %1369 = vmatprep.subr.bf16.mxu0 0
        %1370 = vmatpush2.bf16.xpose.msra.mxu0 0
        %1371 = vmatprep.mubr.bf16.mxu0 0
        %1372 = vmatmul.mubr.bf16.gmra.mxu0 %v1334
        %v1373 = vpop.f32.mrf.mxu0
        %v1374 = vadd.f32 0.0, %v1373
        %v1375 = vpop.f32.mrf.mxu0
        %v1376 = vpop.f32.mrf.mxu0
        %v1377 = vpop.f32.mrf.mxu0
        %1378 = vdwg.mxu0
        %v1379 = vmul.f32 %v1374, 0.5
        %v1380 = vsel %vm932, %v1379, -inf
        %1381 = vmax.xlane.f32.xlu0 %v1380
        %v1382 = vpop.xlane.xlu0 %1381
        %v1383 = vsub.f32 %v1379, %v1382
        %v1384 = vmul.f32 %v1383, 1.442695
        %v1385 = vpow.pop %v1384
        %v1386 = vsel %vm932, %v1385, 0.0
        %1387 = vadd.xlane.f32.xlu0 %v1386
        %v1388 = vpop.xlane.xlu0 %1387
        %v1389 = vrcp.pop %v1388
        %v1390 = vmul.f32 %v1385, %v1389
        %v1391 = vpack.c.bf16 %v1390, %v1390
        %1392 = vrot.lane.b32.xlu0 %v945, 112
        %v1393 = vpop.permute.xlu0 %1392
        %v1395 = vsel %vm932, %v1391, 0
        %v1398 = vsel %vm949, %v1393, 0
        %1400 = vmatprep.subr.bf16.mxu0 0
        %1401 = vmatpush1.bf16.msra.mxu0 0
        %1402 = vmatprep.subr.bf16.mxu0 0
        %1403 = vmatpush1.bf16.msra.mxu0 0
        %1404 = vmatprep.subr.bf16.mxu0 0
        %1405 = vmatpush1.bf16.msra.mxu0 0
        %1406 = vmatprep.subr.bf16.mxu0 0
        %1407 = vmatpush1.bf16.msra.mxu0 0
        %1408 = vmatprep.subr.bf16.mxu0 0
        %1409 = vmatpush1.bf16.msra.mxu0 0
        %1410 = vmatprep.subr.bf16.mxu0 0
        %1411 = vmatpush1.bf16.msra.mxu0 0
        %1412 = vmatprep.subr.bf16.mxu0 0
        %1413 = vmatpush1.bf16.msra.mxu0 0
        %1414 = vmatprep.subr.bf16.mxu0 0
        %1415 = vmatpush1.bf16.msra.mxu0 %v1398
        %1416 = vmatprep.subr.bf16.mxu0 0
        %1417 = vmatpush2.bf16.msra.mxu0 0
        %1418 = vmatprep.subr.bf16.mxu0 0
        %1419 = vmatpush2.bf16.msra.mxu0 0
        %1420 = vmatprep.subr.bf16.mxu0 0
        %1421 = vmatpush2.bf16.msra.mxu0 0
        %1422 = vmatprep.subr.bf16.mxu0 0
        %1423 = vmatpush2.bf16.msra.mxu0 0
        %1424 = vmatprep.subr.bf16.mxu0 0
        %1425 = vmatpush2.bf16.msra.mxu0 0
        %1426 = vmatprep.subr.bf16.mxu0 0
        %1427 = vmatpush2.bf16.msra.mxu0 0
        %1428 = vmatprep.subr.bf16.mxu0 0
        %1429 = vmatpush2.bf16.msra.mxu0 0
        %1430 = vmatprep.subr.bf16.mxu0 0
        %1431 = vmatpush2.bf16.msra.mxu0 0
        %1432 = vmatprep.mubr.bf16.mxu0 0
        %1433 = vmatmul.mubr.bf16.gmra.mxu0 %v1395
        %v1434 = vpop.f32.mrf.mxu0
        %v1435 = vadd.f32 0.0, %v1434
        %v1436 = vpop.f32.mrf.mxu0
        %v1437 = vpop.f32.mrf.mxu0
        %v1438 = vpop.f32.mrf.mxu0
        %1439 = vdwg.mxu0
        %1440 = vrot.lane.b32.xlu0 %v882, 108
        %v1441 = vpop.permute.xlu0 %1440
        %1442 = vrot.lane.b32.xlu0 %v883, 108
        %v1443 = vpop.permute.xlu0 %1442
        %v1445 = vsel %vm884, %v1441, 0
        %v1448 = vsel %vm884, %v1443, 0
        %1450 = vmatprep.subr.bf16.mxu0 0
        %1451 = vmatpush1.bf16.xpose.msra.mxu0 0
        %1452 = vmatprep.subr.bf16.mxu0 0
        %1453 = vmatpush1.bf16.xpose.msra.mxu0 0
        %1454 = vmatprep.subr.bf16.mxu0 0
        %1455 = vmatpush1.bf16.xpose.msra.mxu0 0
        %1456 = vmatprep.subr.bf16.mxu0 0
        %1457 = vmatpush1.bf16.xpose.msra.mxu0 0
        %1458 = vmatprep.subr.bf16.mxu0 0
        %1459 = vmatpush1.bf16.xpose.msra.mxu0 0
        %1460 = vmatprep.subr.bf16.mxu0 0
        %1461 = vmatpush1.bf16.xpose.msra.mxu0 0
        %1462 = vmatprep.subr.bf16.mxu0 0
        %1463 = vmatpush1.bf16.xpose.msra.mxu0 0
        %1464 = vmatprep.subr.bf16.mxu0 0
        %1465 = vmatpush1.bf16.xpose.msra.mxu0 %v1448
        %1466 = vmatprep.subr.bf16.mxu0 0
        %1467 = vmatpush2.bf16.xpose.msra.mxu0 0
        %1468 = vmatprep.subr.bf16.mxu0 0
        %1469 = vmatpush2.bf16.xpose.msra.mxu0 0
        %1470 = vmatprep.subr.bf16.mxu0 0
        %1471 = vmatpush2.bf16.xpose.msra.mxu0 0
        %1472 = vmatprep.subr.bf16.mxu0 0
        %1473 = vmatpush2.bf16.xpose.msra.mxu0 0
        %1474 = vmatprep.subr.bf16.mxu0 0
        %1475 = vmatpush2.bf16.xpose.msra.mxu0 0
        %1476 = vmatprep.subr.bf16.mxu0 0
        %1477 = vmatpush2.bf16.xpose.msra.mxu0 0
        %1478 = vmatprep.subr.bf16.mxu0 0
        %1479 = vmatpush2.bf16.xpose.msra.mxu0 0
        %1480 = vmatprep.subr.bf16.mxu0 0
        %1481 = vmatpush2.bf16.xpose.msra.mxu0 0
        %1482 = vmatprep.mubr.bf16.mxu0 0
        %1483 = vmatmul.mubr.bf16.gmra.mxu0 %v1445
        %v1484 = vpop.f32.mrf.mxu0
        %v1485 = vadd.f32 0.0, %v1484
        %v1486 = vpop.f32.mrf.mxu0
        %v1487 = vpop.f32.mrf.mxu0
        %v1488 = vpop.f32.mrf.mxu0
        %1489 = vdwg.mxu0
        %v1490 = vmul.f32 %v1485, 0.5
        %v1491 = vsel %vm932, %v1490, -inf
        %1492 = vmax.xlane.f32.xlu0 %v1491
        %v1493 = vpop.xlane.xlu0 %1492
        %v1494 = vsub.f32 %v1490, %v1493
        %v1495 = vmul.f32 %v1494, 1.442695
        %v1496 = vpow.pop %v1495
        %v1497 = vsel %vm932, %v1496, 0.0
        %1498 = vadd.xlane.f32.xlu0 %v1497
        %v1499 = vpop.xlane.xlu0 %1498
        %v1500 = vrcp.pop %v1499
        %v1501 = vmul.f32 %v1496, %v1500
        %v1502 = vpack.c.bf16 %v1501, %v1501
        %1503 = vrot.lane.b32.xlu0 %v945, 108
        %v1504 = vpop.permute.xlu0 %1503
        %v1506 = vsel %vm932, %v1502, 0
        %v1509 = vsel %vm949, %v1504, 0
        %1511 = vmatprep.subr.bf16.mxu0 0
        %1512 = vmatpush1.bf16.msra.mxu0 0
        %1513 = vmatprep.subr.bf16.mxu0 0
        %1514 = vmatpush1.bf16.msra.mxu0 0
        %1515 = vmatprep.subr.bf16.mxu0 0
        %1516 = vmatpush1.bf16.msra.mxu0 0
        %1517 = vmatprep.subr.bf16.mxu0 0
        %1518 = vmatpush1.bf16.msra.mxu0 0
        %1519 = vmatprep.subr.bf16.mxu0 0
        %1520 = vmatpush1.bf16.msra.mxu0 0
        %1521 = vmatprep.subr.bf16.mxu0 0
        %1522 = vmatpush1.bf16.msra.mxu0 0
        %1523 = vmatprep.subr.bf16.mxu0 0
        %1524 = vmatpush1.bf16.msra.mxu0 0
        %1525 = vmatprep.subr.bf16.mxu0 0
        %1526 = vmatpush1.bf16.msra.mxu0 %v1509
        %1527 = vmatprep.subr.bf16.mxu0 0
        %1528 = vmatpush2.bf16.msra.mxu0 0
        %1529 = vmatprep.subr.bf16.mxu0 0
        %1530 = vmatpush2.bf16.msra.mxu0 0
        %1531 = vmatprep.subr.bf16.mxu0 0
        %1532 = vmatpush2.bf16.msra.mxu0 0
        %1533 = vmatprep.subr.bf16.mxu0 0
        %1534 = vmatpush2.bf16.msra.mxu0 0
        %1535 = vmatprep.subr.bf16.mxu0 0
        %1536 = vmatpush2.bf16.msra.mxu0 0
        %1537 = vmatprep.subr.bf16.mxu0 0
        %1538 = vmatpush2.bf16.msra.mxu0 0
        %1539 = vmatprep.subr.bf16.mxu0 0
        %1540 = vmatpush2.bf16.msra.mxu0 0
        %1541 = vmatprep.subr.bf16.mxu0 0
        %1542 = vmatpush2.bf16.msra.mxu0 0
        %1543 = vmatprep.mubr.bf16.mxu0 0
        %1544 = vmatmul.mubr.bf16.gmra.mxu0 %v1506
        %v1545 = vpop.f32.mrf.mxu0
        %v1546 = vadd.f32 0.0, %v1545
        %v1547 = vpop.f32.mrf.mxu0
        %v1548 = vpop.f32.mrf.mxu0
        %v1549 = vpop.f32.mrf.mxu0
        %1550 = vdwg.mxu0
        %1551 = vrot.lane.b32.xlu0 %v882, 104
        %v1552 = vpop.permute.xlu0 %1551
        %1553 = vrot.lane.b32.xlu0 %v883, 104
        %v1554 = vpop.permute.xlu0 %1553
        %v1556 = vsel %vm884, %v1552, 0
        %v1559 = vsel %vm884, %v1554, 0
        %1561 = vmatprep.subr.bf16.mxu0 0
        %1562 = vmatpush1.bf16.xpose.msra.mxu0 0
        %1563 = vmatprep.subr.bf16.mxu0 0
        %1564 = vmatpush1.bf16.xpose.msra.mxu0 0
        %1565 = vmatprep.subr.bf16.mxu0 0
        %1566 = vmatpush1.bf16.xpose.msra.mxu0 0
        %1567 = vmatprep.subr.bf16.mxu0 0
        %1568 = vmatpush1.bf16.xpose.msra.mxu0 0
        %1569 = vmatprep.subr.bf16.mxu0 0
        %1570 = vmatpush1.bf16.xpose.msra.mxu0 0
        %1571 = vmatprep.subr.bf16.mxu0 0
        %1572 = vmatpush1.bf16.xpose.msra.mxu0 0
        %1573 = vmatprep.subr.bf16.mxu0 0
        %1574 = vmatpush1.bf16.xpose.msra.mxu0 0
        %1575 = vmatprep.subr.bf16.mxu0 0
        %1576 = vmatpush1.bf16.xpose.msra.mxu0 %v1559
        %1577 = vmatprep.subr.bf16.mxu0 0
        %1578 = vmatpush2.bf16.xpose.msra.mxu0 0
        %1579 = vmatprep.subr.bf16.mxu0 0
        %1580 = vmatpush2.bf16.xpose.msra.mxu0 0
        %1581 = vmatprep.subr.bf16.mxu0 0
        %1582 = vmatpush2.bf16.xpose.msra.mxu0 0
        %1583 = vmatprep.subr.bf16.mxu0 0
        %1584 = vmatpush2.bf16.xpose.msra.mxu0 0
        %1585 = vmatprep.subr.bf16.mxu0 0
        %1586 = vmatpush2.bf16.xpose.msra.mxu0 0
        %1587 = vmatprep.subr.bf16.mxu0 0
        %1588 = vmatpush2.bf16.xpose.msra.mxu0 0
        %1589 = vmatprep.subr.bf16.mxu0 0
        %1590 = vmatpush2.bf16.xpose.msra.mxu0 0
        %1591 = vmatprep.subr.bf16.mxu0 0
        %1592 = vmatpush2.bf16.xpose.msra.mxu0 0
        %1593 = vmatprep.mubr.bf16.mxu0 0
        %1594 = vmatmul.mubr.bf16.gmra.mxu0 %v1556
        %v1595 = vpop.f32.mrf.mxu0
        %v1596 = vadd.f32 0.0, %v1595
        %v1597 = vpop.f32.mrf.mxu0
        %v1598 = vpop.f32.mrf.mxu0
        %v1599 = vpop.f32.mrf.mxu0
        %1600 = vdwg.mxu0
        %v1601 = vmul.f32 %v1596, 0.5
        %v1602 = vsel %vm932, %v1601, -inf
        %1603 = vmax.xlane.f32.xlu0 %v1602
        %v1604 = vpop.xlane.xlu0 %1603
        %v1605 = vsub.f32 %v1601, %v1604
        %v1606 = vmul.f32 %v1605, 1.442695
        %v1607 = vpow.pop %v1606
        %v1608 = vsel %vm932, %v1607, 0.0
        %1609 = vadd.xlane.f32.xlu0 %v1608
        %v1610 = vpop.xlane.xlu0 %1609
        %v1611 = vrcp.pop %v1610
        %v1612 = vmul.f32 %v1607, %v1611
        %v1613 = vpack.c.bf16 %v1612, %v1612
        %1614 = vrot.lane.b32.xlu0 %v945, 104
        %v1615 = vpop.permute.xlu0 %1614
        %v1617 = vsel %vm932, %v1613, 0
        %v1620 = vsel %vm949, %v1615, 0
        %1622 = vmatprep.subr.bf16.mxu0 0
        %1623 = vmatpush1.bf16.msra.mxu0 0
        %1624 = vmatprep.subr.bf16.mxu0 0
        %1625 = vmatpush1.bf16.msra.mxu0 0
        %1626 = vmatprep.subr.bf16.mxu0 0
        %1627 = vmatpush1.bf16.msra.mxu0 0
        %1628 = vmatprep.subr.bf16.mxu0 0
        %1629 = vmatpush1.bf16.msra.mxu0 0
        %1630 = vmatprep.subr.bf16.mxu0 0
        %1631 = vmatpush1.bf16.msra.mxu0 0
        %1632 = vmatprep.subr.bf16.mxu0 0
        %1633 = vmatpush1.bf16.msra.mxu0 0
        %1634 = vmatprep.subr.bf16.mxu0 0
        %1635 = vmatpush1.bf16.msra.mxu0 0
        %1636 = vmatprep.subr.bf16.mxu0 0
        %1637 = vmatpush1.bf16.msra.mxu0 %v1620
        %1638 = vmatprep.subr.bf16.mxu0 0
        %1639 = vmatpush2.bf16.msra.mxu0 0
        %1640 = vmatprep.subr.bf16.mxu0 0
        %1641 = vmatpush2.bf16.msra.mxu0 0
        %1642 = vmatprep.subr.bf16.mxu0 0
        %1643 = vmatpush2.bf16.msra.mxu0 0
        %1644 = vmatprep.subr.bf16.mxu0 0
        %1645 = vmatpush2.bf16.msra.mxu0 0
        %1646 = vmatprep.subr.bf16.mxu0 0
        %1647 = vmatpush2.bf16.msra.mxu0 0
        %1648 = vmatprep.subr.bf16.mxu0 0
        %1649 = vmatpush2.bf16.msra.mxu0 0
        %1650 = vmatprep.subr.bf16.mxu0 0
        %1651 = vmatpush2.bf16.msra.mxu0 0
        %1652 = vmatprep.subr.bf16.mxu0 0
        %1653 = vmatpush2.bf16.msra.mxu0 0
        %1654 = vmatprep.mubr.bf16.mxu0 0
        %1655 = vmatmul.mubr.bf16.gmra.mxu0 %v1617
        %v1656 = vpop.f32.mrf.mxu0
        %v1657 = vadd.f32 0.0, %v1656
        %v1658 = vpop.f32.mrf.mxu0
        %v1659 = vpop.f32.mrf.mxu0
        %v1660 = vpop.f32.mrf.mxu0
        %1661 = vdwg.mxu0
        %1662 = vrot.lane.b32.xlu0 %v882, 100
        %v1663 = vpop.permute.xlu0 %1662
        %1664 = vrot.lane.b32.xlu0 %v883, 100
        %v1665 = vpop.permute.xlu0 %1664
        %v1667 = vsel %vm884, %v1663, 0
        %v1670 = vsel %vm884, %v1665, 0
        %1672 = vmatprep.subr.bf16.mxu0 0
        %1673 = vmatpush1.bf16.xpose.msra.mxu0 0
        %1674 = vmatprep.subr.bf16.mxu0 0
        %1675 = vmatpush1.bf16.xpose.msra.mxu0 0
        %1676 = vmatprep.subr.bf16.mxu0 0
        %1677 = vmatpush1.bf16.xpose.msra.mxu0 0
        %1678 = vmatprep.subr.bf16.mxu0 0
        %1679 = vmatpush1.bf16.xpose.msra.mxu0 0
        %1680 = vmatprep.subr.bf16.mxu0 0
        %1681 = vmatpush1.bf16.xpose.msra.mxu0 0
        %1682 = vmatprep.subr.bf16.mxu0 0
        %1683 = vmatpush1.bf16.xpose.msra.mxu0 0
        %1684 = vmatprep.subr.bf16.mxu0 0
        %1685 = vmatpush1.bf16.xpose.msra.mxu0 0
        %1686 = vmatprep.subr.bf16.mxu0 0
        %1687 = vmatpush1.bf16.xpose.msra.mxu0 %v1670
        %1688 = vmatprep.subr.bf16.mxu0 0
        %1689 = vmatpush2.bf16.xpose.msra.mxu0 0
        %1690 = vmatprep.subr.bf16.mxu0 0
        %1691 = vmatpush2.bf16.xpose.msra.mxu0 0
        %1692 = vmatprep.subr.bf16.mxu0 0
        %1693 = vmatpush2.bf16.xpose.msra.mxu0 0
        %1694 = vmatprep.subr.bf16.mxu0 0
        %1695 = vmatpush2.bf16.xpose.msra.mxu0 0
        %1696 = vmatprep.subr.bf16.mxu0 0
        %1697 = vmatpush2.bf16.xpose.msra.mxu0 0
        %1698 = vmatprep.subr.bf16.mxu0 0
        %1699 = vmatpush2.bf16.xpose.msra.mxu0 0
        %1700 = vmatprep.subr.bf16.mxu0 0
        %1701 = vmatpush2.bf16.xpose.msra.mxu0 0
        %1702 = vmatprep.subr.bf16.mxu0 0
        %1703 = vmatpush2.bf16.xpose.msra.mxu0 0
        %1704 = vmatprep.mubr.bf16.mxu0 0
        %1705 = vmatmul.mubr.bf16.gmra.mxu0 %v1667
        %v1706 = vpop.f32.mrf.mxu0
        %v1707 = vadd.f32 0.0, %v1706
        %v1708 = vpop.f32.mrf.mxu0
        %v1709 = vpop.f32.mrf.mxu0
        %v1710 = vpop.f32.mrf.mxu0
        %1711 = vdwg.mxu0
        %v1712 = vmul.f32 %v1707, 0.5
        %v1713 = vsel %vm932, %v1712, -inf
        %1714 = vmax.xlane.f32.xlu0 %v1713
        %v1715 = vpop.xlane.xlu0 %1714
        %v1716 = vsub.f32 %v1712, %v1715
        %v1717 = vmul.f32 %v1716, 1.442695
        %v1718 = vpow.pop %v1717
        %v1719 = vsel %vm932, %v1718, 0.0
        %1720 = vadd.xlane.f32.xlu0 %v1719
        %v1721 = vpop.xlane.xlu0 %1720
        %v1722 = vrcp.pop %v1721
        %v1723 = vmul.f32 %v1718, %v1722
        %v1724 = vpack.c.bf16 %v1723, %v1723
        %1725 = vrot.lane.b32.xlu0 %v945, 100
        %v1726 = vpop.permute.xlu0 %1725
        %v1728 = vsel %vm932, %v1724, 0
        %v1731 = vsel %vm949, %v1726, 0
        %1733 = vmatprep.subr.bf16.mxu0 0
        %1734 = vmatpush1.bf16.msra.mxu0 0
        %1735 = vmatprep.subr.bf16.mxu0 0
        %1736 = vmatpush1.bf16.msra.mxu0 0
        %1737 = vmatprep.subr.bf16.mxu0 0
        %1738 = vmatpush1.bf16.msra.mxu0 0
        %1739 = vmatprep.subr.bf16.mxu0 0
        %1740 = vmatpush1.bf16.msra.mxu0 0
        %1741 = vmatprep.subr.bf16.mxu0 0
        %1742 = vmatpush1.bf16.msra.mxu0 0
        %1743 = vmatprep.subr.bf16.mxu0 0
        %1744 = vmatpush1.bf16.msra.mxu0 0
        %1745 = vmatprep.subr.bf16.mxu0 0
        %1746 = vmatpush1.bf16.msra.mxu0 0
        %1747 = vmatprep.subr.bf16.mxu0 0
        %1748 = vmatpush1.bf16.msra.mxu0 %v1731
        %1749 = vmatprep.subr.bf16.mxu0 0
        %1750 = vmatpush2.bf16.msra.mxu0 0
        %1751 = vmatprep.subr.bf16.mxu0 0
        %1752 = vmatpush2.bf16.msra.mxu0 0
        %1753 = vmatprep.subr.bf16.mxu0 0
        %1754 = vmatpush2.bf16.msra.mxu0 0
        %1755 = vmatprep.subr.bf16.mxu0 0
        %1756 = vmatpush2.bf16.msra.mxu0 0
        %1757 = vmatprep.subr.bf16.mxu0 0
        %1758 = vmatpush2.bf16.msra.mxu0 0
        %1759 = vmatprep.subr.bf16.mxu0 0
        %1760 = vmatpush2.bf16.msra.mxu0 0
        %1761 = vmatprep.subr.bf16.mxu0 0
        %1762 = vmatpush2.bf16.msra.mxu0 0
        %1763 = vmatprep.subr.bf16.mxu0 0
        %1764 = vmatpush2.bf16.msra.mxu0 0
        %1765 = vmatprep.mubr.bf16.mxu0 0
        %1766 = vmatmul.mubr.bf16.gmra.mxu0 %v1728
        %v1767 = vpop.f32.mrf.mxu0
        %v1768 = vadd.f32 0.0, %v1767
        %v1769 = vpop.f32.mrf.mxu0
        %v1770 = vpop.f32.mrf.mxu0
        %v1771 = vpop.f32.mrf.mxu0
        %1772 = vdwg.mxu0
        %1774 = vrot.lane.b32.xlu0 %v1102, 4
        %v1775 = vpop.permute.xlu0 %1774
        %1778 = vrot.lane.b32.xlu0 %v1213, 8
        %v1779 = vpop.permute.xlu0 %1778
        %1782 = vrot.lane.b32.xlu0 %v1324, 12
        %v1783 = vpop.permute.xlu0 %1782
        %1786 = vrot.lane.b32.xlu0 %v1435, 16
        %v1787 = vpop.permute.xlu0 %1786
        %1790 = vrot.lane.b32.xlu0 %v1546, 20
        %v1791 = vpop.permute.xlu0 %1790
        %1794 = vrot.lane.b32.xlu0 %v1657, 24
        %v1795 = vpop.permute.xlu0 %1794
        %1798 = vrot.lane.b32.xlu0 %v1768, 28
        %v1799 = vpop.permute.xlu0 %1798
        %v1801 = vsel %vm884, %v988, %v1775
        %v1802 = vsel %vm932, %v1801, %v1779
        %vm1803 = vcmask 97280
        %v1804 = vsel %vm1803, %v1802, %v1783
        %vm1805 = vcmask 130048
        %v1806 = vsel %vm1805, %v1804, %v1787
        %vm1807 = vcmask 162816
        %v1808 = vsel %vm1807, %v1806, %v1791
        %vm1809 = vcmask 195584
        %v1810 = vsel %vm1809, %v1808, %v1795
        %vm1811 = vcmask 228352
        %v1812 = vsel %vm1811, %v1810, %v1799
        %v1813 = vpack.c.bf16 %v1812, %v1812
        %v1814 = vlaneseq
        %v1815 = vshrl.u32 %v1814, 7
        %v1816 = vsub.s32 3, %v1815
        %v1817 = vrot.slane %v681, %v1816
        %v1822 = vunpack.c.l.b16 %v703
        %v1823 = vunpack.c.l.b16 %v704
        %v1824 = vunpack.c.l.b16 %v705
        %v1825 = vunpack.c.l.b16 %v706
        %v1826 = vpack.c.b16 %v1823, %v1822
        %v1827 = vpack.c.b16 %v1825, %v1824
        %v1831 = vsel %vm723, %v1813, 0
        %1833 = vmatprep.subr.bf16.mxu0 0
        %1834 = vmatpush1.bf16.msra.mxu0 0
        %1835 = vmatprep.subr.bf16.mxu0 0
        %1836 = vmatpush1.bf16.msra.mxu0 0
        %1837 = vmatprep.subr.bf16.mxu0 0
        %1838 = vmatpush1.bf16.msra.mxu0 0
        %1839 = vmatprep.subr.bf16.mxu0 0
        %1840 = vmatpush1.bf16.msra.mxu0 0
        %1841 = vmatprep.subr.bf16.mxu0 0
        %1842 = vmatpush1.bf16.msra.mxu0 0
        %1843 = vmatprep.subr.bf16.mxu0 0
        %1844 = vmatpush1.bf16.msra.mxu0 0
        %1845 = vmatprep.subr.bf16.mxu0 0
        %1846 = vmatpush1.bf16.msra.mxu0 %v1827
        %1847 = vmatprep.subr.bf16.mxu0 0
        %1848 = vmatpush1.bf16.msra.mxu0 %v1826
        %1849 = vmatprep.subr.bf16.mxu0 0
        %1850 = vmatpush2.bf16.msra.mxu0 0
        %1851 = vmatprep.subr.bf16.mxu0 0
        %1852 = vmatpush2.bf16.msra.mxu0 0
        %1853 = vmatprep.subr.bf16.mxu0 0
        %1854 = vmatpush2.bf16.msra.mxu0 0
        %1855 = vmatprep.subr.bf16.mxu0 0
        %1856 = vmatpush2.bf16.msra.mxu0 0
        %1857 = vmatprep.subr.bf16.mxu0 0
        %1858 = vmatpush2.bf16.msra.mxu0 0
        %1859 = vmatprep.subr.bf16.mxu0 0
        %1860 = vmatpush2.bf16.msra.mxu0 0
        %1861 = vmatprep.subr.bf16.mxu0 0
        %1862 = vmatpush2.bf16.msra.mxu0 0
        %1863 = vmatprep.subr.bf16.mxu0 0
        %1864 = vmatpush2.bf16.msra.mxu0 0
        %1865 = vmatprep.mubr.bf16.mxu0 0
        %1866 = vmatmul.mubr.bf16.gmra.mxu0 %v1831
        %v1867 = vpop.f32.mrf.mxu0
        %v1868 = vadd.f32 %v1817, %v1867
        %v1869 = vpop.f32.mrf.mxu0
        %v1870 = vpop.f32.mrf.mxu0
        %v1871 = vpop.f32.mrf.mxu0
        %1872 = vdwg.mxu0
        %v1873 = vadd.f32 %v683, %v1868
        %v1874 = vsel %vm723, %v1873, 0.0
        %1875 = vadd.xlane.f32.xlu0 %v1874
        %v1876 = vpop.xlane.xlu0 %1875
        %v1877 = vrcp.pop 32.0
        %v1878 = vmul.f32 %v1876, %v1877
        %v1879 = vsub.f32 %v1873, %v1878
        %v1880 = vmul.f32 %v1879, %v1879
        %v1881 = vsel %vm723, %v1880, 0.0
        %1882 = vadd.xlane.f32.xlu0 %v1881
        %v1883 = vpop.xlane.xlu0 %1882
        %v1884 = vmul.f32 %v1883, %v1877
        %v1885 = vadd.f32 %v1884, 1e-05
        %v1886 = vrsqrt.pop %v1885
        %v1887 = vmul.f32 %v1879, %v1886
        %v1888 = vlaneseq
        %v1889 = vshrl.u32 %v1888, 7
        %v1890 = vsub.s32 1, %v1889
        %v1891 = vrot.slane %v682, %v1890
        %v1892 = vmul.f32 %v1887, %v1891
        %v1893 = vlaneseq
        %v1894 = vshrl.u32 %v1893, 7
        %v1895 = vsub.s32 2, %v1894
        %v1896 = vrot.slane %v682, %v1895
        %v1897 = vadd.f32 %v1892, %v1896
        %v1898 = vadd.f32 %v1897, %v684
        %v1899 = vpack.c.bf16 %v1898, %v1898
        %v1900 = vld [vmem:[#allocation3] sm:$0xf]
        %v1901 = vld [vmem:[#allocation3 + $0x4] sm:$0xf]
        %v1902 = vld [vmem:[#allocation4] sm:$0xf]
        %v1903 = vld [vmem:[#allocation4 + $0x4] sm:$0xf]
        %s1904 = scalar_lea.vmem %s629, 64
        %v1905 = vld [vmem:[%s1904] sm:$0xf]
        %v1906 = vld [vmem:[%s1904 + $0x4] sm:$0xf]
        %v1907 = vld [vmem:[%s1904 + $0x8] sm:$0xf]
        %v1908 = vld [vmem:[%s1904 + $0xc] sm:$0xf]
        %s1909 = scalar_lea.vmem %s629, 80
        %v1910 = vld [vmem:[%s1909] sm:$0xf]
        %v1911 = vld [vmem:[%s1909 + $0x4] sm:$0xf]
        %v1912 = vld [vmem:[%s1909 + $0x8] sm:$0xf]
        %v1913 = vld [vmem:[%s1909 + $0xc] sm:$0xf]
        %s1914 = scalar_lea.vmem %s629, 96
        %v1915 = vld [vmem:[%s1914] sm:$0xf]
        %v1916 = vld [vmem:[%s1914 + $0x4] sm:$0xf]
        %v1917 = vld [vmem:[%s1914 + $0x8] sm:$0xf]
        %v1918 = vld [vmem:[%s1914 + $0xc] sm:$0xf]
        %s1919 = scalar_lea.vmem %s629, 112
        %v1920 = vld [vmem:[%s1919] sm:$0xf]
        %v1921 = vld [vmem:[%s1919 + $0x4] sm:$0xf]
        %v1922 = vld [vmem:[%s1919 + $0x8] sm:$0xf]
        %v1923 = vld [vmem:[%s1919 + $0xc] sm:$0xf]
        %v1924 = vlaneseq
        %v1925 = vshrl.u32 %v1924, 7
        %v1926 = vsub.s32 4, %v1925
        %v1927 = vrot.slane %v681, %v1926
        %v1932 = vunpack.c.l.b16 %v1905
        %v1933 = vunpack.c.l.b16 %v1906
        %v1934 = vunpack.c.l.b16 %v1907
        %v1935 = vunpack.c.l.b16 %v1908
        %v1936 = vpack.c.b16 %v1933, %v1932
        %v1937 = vpack.c.b16 %v1935, %v1934
        %v1941 = vsel %vm723, %v1899, 0
        %1943 = vmatprep.subr.bf16.mxu0 0
        %1944 = vmatpush1.bf16.msra.mxu0 0
        %1945 = vmatprep.subr.bf16.mxu0 0
        %1946 = vmatpush1.bf16.msra.mxu0 0
        %1947 = vmatprep.subr.bf16.mxu0 0
        %1948 = vmatpush1.bf16.msra.mxu0 0
        %1949 = vmatprep.subr.bf16.mxu0 0
        %1950 = vmatpush1.bf16.msra.mxu0 0
        %1951 = vmatprep.subr.bf16.mxu0 0
        %1952 = vmatpush1.bf16.msra.mxu0 0
        %1953 = vmatprep.subr.bf16.mxu0 0
        %1954 = vmatpush1.bf16.msra.mxu0 0
        %1955 = vmatprep.subr.bf16.mxu0 0
        %1956 = vmatpush1.bf16.msra.mxu0 %v1937
        %1957 = vmatprep.subr.bf16.mxu0 0
        %1958 = vmatpush1.bf16.msra.mxu0 %v1936
        %1959 = vmatprep.subr.bf16.mxu0 0
        %1960 = vmatpush2.bf16.msra.mxu0 0
        %1961 = vmatprep.subr.bf16.mxu0 0
        %1962 = vmatpush2.bf16.msra.mxu0 0
        %1963 = vmatprep.subr.bf16.mxu0 0
        %1964 = vmatpush2.bf16.msra.mxu0 0
        %1965 = vmatprep.subr.bf16.mxu0 0
        %1966 = vmatpush2.bf16.msra.mxu0 0
        %1967 = vmatprep.subr.bf16.mxu0 0
        %1968 = vmatpush2.bf16.msra.mxu0 0
        %1969 = vmatprep.subr.bf16.mxu0 0
        %1970 = vmatpush2.bf16.msra.mxu0 0
        %1971 = vmatprep.subr.bf16.mxu0 0
        %1972 = vmatpush2.bf16.msra.mxu0 0
        %1973 = vmatprep.subr.bf16.mxu0 0
        %1974 = vmatpush2.bf16.msra.mxu0 0
        %1975 = vmatprep.mubr.bf16.mxu0 0
        %1976 = vmatmul.mubr.bf16.gmra.mxu0 %v1941
        %v1977 = vpop.f32.mrf.mxu0
        %v1978 = vadd.f32 %v1927, %v1977
        %v1979 = vpop.f32.mrf.mxu0
        %v1980 = vpop.f32.mrf.mxu0
        %v1981 = vpop.f32.mrf.mxu0
        %1982 = vdwg.mxu0
        %v1983 = vlaneseq
        %v1984 = vshrl.u32 %v1983, 7
        %v1985 = vsub.s32 5, %v1984
        %v1986 = vrot.slane %v681, %v1985
        %v1989 = vunpack.c.l.b16 %v1900
        %v1990 = vunpack.c.l.b16 %v1901
        %v1991 = vpack.c.b16 %v1990, %v1989
        %v1996 = vunpack.c.l.b16 %v1910
        %v1997 = vunpack.c.l.b16 %v1911
        %v1998 = vunpack.c.l.b16 %v1912
        %v1999 = vunpack.c.l.b16 %v1913
        %v2000 = vpack.c.b16 %v1997, %v1996
        %v2001 = vpack.c.b16 %v1999, %v1998
        %v2005 = vsel %vm723, %v1991, 0
        %2007 = vmatprep.subr.bf16.mxu0 0
        %2008 = vmatpush1.bf16.msra.mxu0 0
        %2009 = vmatprep.subr.bf16.mxu0 0
        %2010 = vmatpush1.bf16.msra.mxu0 0
        %2011 = vmatprep.subr.bf16.mxu0 0
        %2012 = vmatpush1.bf16.msra.mxu0 0
        %2013 = vmatprep.subr.bf16.mxu0 0
        %2014 = vmatpush1.bf16.msra.mxu0 0
        %2015 = vmatprep.subr.bf16.mxu0 0
        %2016 = vmatpush1.bf16.msra.mxu0 0
        %2017 = vmatprep.subr.bf16.mxu0 0
        %2018 = vmatpush1.bf16.msra.mxu0 0
        %2019 = vmatprep.subr.bf16.mxu0 0
        %2020 = vmatpush1.bf16.msra.mxu0 %v2001
        %2021 = vmatprep.subr.bf16.mxu0 0
        %2022 = vmatpush1.bf16.msra.mxu0 %v2000
        %2023 = vmatprep.subr.bf16.mxu0 0
        %2024 = vmatpush2.bf16.msra.mxu0 0
        %2025 = vmatprep.subr.bf16.mxu0 0
        %2026 = vmatpush2.bf16.msra.mxu0 0
        %2027 = vmatprep.subr.bf16.mxu0 0
        %2028 = vmatpush2.bf16.msra.mxu0 0
        %2029 = vmatprep.subr.bf16.mxu0 0
        %2030 = vmatpush2.bf16.msra.mxu0 0
        %2031 = vmatprep.subr.bf16.mxu0 0
        %2032 = vmatpush2.bf16.msra.mxu0 0
        %2033 = vmatprep.subr.bf16.mxu0 0
        %2034 = vmatpush2.bf16.msra.mxu0 0
        %2035 = vmatprep.subr.bf16.mxu0 0
        %2036 = vmatpush2.bf16.msra.mxu0 0
        %2037 = vmatprep.subr.bf16.mxu0 0
        %2038 = vmatpush2.bf16.msra.mxu0 0
        %2039 = vmatprep.mubr.bf16.mxu0 0
        %2040 = vmatmul.mubr.bf16.gmra.mxu0 %v2005
        %v2041 = vpop.f32.mrf.mxu0
        %v2042 = vadd.f32 %v1986, %v2041
        %v2043 = vpop.f32.mrf.mxu0
        %v2044 = vpop.f32.mrf.mxu0
        %v2045 = vadd.f32 %v1986, %v2044
        %v2046 = vpop.f32.mrf.mxu0
        %2047 = vdwg.mxu0
        %v2048 = vlaneseq
        %v2049 = vshrl.u32 %v2048, 7
        %v2050 = vsub.s32 6, %v2049
        %v2051 = vrot.slane %v681, %v2050
        %v2054 = vunpack.c.l.b16 %v1902
        %v2055 = vunpack.c.l.b16 %v1903
        %v2056 = vpack.c.b16 %v2055, %v2054
        %v2061 = vunpack.c.l.b16 %v1915
        %v2062 = vunpack.c.l.b16 %v1916
        %v2063 = vunpack.c.l.b16 %v1917
        %v2064 = vunpack.c.l.b16 %v1918
        %v2065 = vpack.c.b16 %v2062, %v2061
        %v2066 = vpack.c.b16 %v2064, %v2063
        %v2070 = vsel %vm723, %v2056, 0
        %2072 = vmatprep.subr.bf16.mxu0 0
        %2073 = vmatpush1.bf16.msra.mxu0 0
        %2074 = vmatprep.subr.bf16.mxu0 0
        %2075 = vmatpush1.bf16.msra.mxu0 0
        %2076 = vmatprep.subr.bf16.mxu0 0
        %2077 = vmatpush1.bf16.msra.mxu0 0
        %2078 = vmatprep.subr.bf16.mxu0 0
        %2079 = vmatpush1.bf16.msra.mxu0 0
        %2080 = vmatprep.subr.bf16.mxu0 0
        %2081 = vmatpush1.bf16.msra.mxu0 0
        %2082 = vmatprep.subr.bf16.mxu0 0
        %2083 = vmatpush1.bf16.msra.mxu0 0
        %2084 = vmatprep.subr.bf16.mxu0 0
        %2085 = vmatpush1.bf16.msra.mxu0 %v2066
        %2086 = vmatprep.subr.bf16.mxu0 0
        %2087 = vmatpush1.bf16.msra.mxu0 %v2065
        %2088 = vmatprep.subr.bf16.mxu0 0
        %2089 = vmatpush2.bf16.msra.mxu0 0
        %2090 = vmatprep.subr.bf16.mxu0 0
        %2091 = vmatpush2.bf16.msra.mxu0 0
        %2092 = vmatprep.subr.bf16.mxu0 0
        %2093 = vmatpush2.bf16.msra.mxu0 0
        %2094 = vmatprep.subr.bf16.mxu0 0
        %2095 = vmatpush2.bf16.msra.mxu0 0
        %2096 = vmatprep.subr.bf16.mxu0 0
        %2097 = vmatpush2.bf16.msra.mxu0 0
        %2098 = vmatprep.subr.bf16.mxu0 0
        %2099 = vmatpush2.bf16.msra.mxu0 0
        %2100 = vmatprep.subr.bf16.mxu0 0
        %2101 = vmatpush2.bf16.msra.mxu0 0
        %2102 = vmatprep.subr.bf16.mxu0 0
        %2103 = vmatpush2.bf16.msra.mxu0 0
        %2104 = vmatprep.mubr.bf16.mxu0 0
        %2105 = vmatmul.mubr.bf16.gmra.mxu0 %v2070
        %v2106 = vpop.f32.mrf.mxu0
        %v2107 = vadd.f32 %v2051, %v2106
        %v2108 = vpop.f32.mrf.mxu0
        %v2109 = vpop.f32.mrf.mxu0
        %v2110 = vadd.f32 %v2051, %v2109
        %v2111 = vpop.f32.mrf.mxu0
        %2112 = vdwg.mxu0
        %v2113 = vpack.c.bf16 %v1978, %v1978
        %v2114 = vpack.c.bf16 %v2045, %v2042
        %v2116 = vsel %vm884, %v2113, 0
        %v2119 = vsel %vm884, %v2114, 0
        %2121 = vmatprep.subr.bf16.mxu0 0
        %2122 = vmatpush1.bf16.xpose.msra.mxu0 0
        %2123 = vmatprep.subr.bf16.mxu0 0
        %2124 = vmatpush1.bf16.xpose.msra.mxu0 0
        %2125 = vmatprep.subr.bf16.mxu0 0
        %2126 = vmatpush1.bf16.xpose.msra.mxu0 0
        %2127 = vmatprep.subr.bf16.mxu0 0
        %2128 = vmatpush1.bf16.xpose.msra.mxu0 0
        %2129 = vmatprep.subr.bf16.mxu0 0
        %2130 = vmatpush1.bf16.xpose.msra.mxu0 0
        %2131 = vmatprep.subr.bf16.mxu0 0
        %2132 = vmatpush1.bf16.xpose.msra.mxu0 0
        %2133 = vmatprep.subr.bf16.mxu0 0
        %2134 = vmatpush1.bf16.xpose.msra.mxu0 0
        %2135 = vmatprep.subr.bf16.mxu0 0
        %2136 = vmatpush1.bf16.xpose.msra.mxu0 %v2119
        %2137 = vmatprep.subr.bf16.mxu0 0
        %2138 = vmatpush2.bf16.xpose.msra.mxu0 0
        %2139 = vmatprep.subr.bf16.mxu0 0
        %2140 = vmatpush2.bf16.xpose.msra.mxu0 0
        %2141 = vmatprep.subr.bf16.mxu0 0
        %2142 = vmatpush2.bf16.xpose.msra.mxu0 0
        %2143 = vmatprep.subr.bf16.mxu0 0
        %2144 = vmatpush2.bf16.xpose.msra.mxu0 0
        %2145 = vmatprep.subr.bf16.mxu0 0
        %2146 = vmatpush2.bf16.xpose.msra.mxu0 0
        %2147 = vmatprep.subr.bf16.mxu0 0
        %2148 = vmatpush2.bf16.xpose.msra.mxu0 0
        %2149 = vmatprep.subr.bf16.mxu0 0
        %2150 = vmatpush2.bf16.xpose.msra.mxu0 0
        %2151 = vmatprep.subr.bf16.mxu0 0
        %2152 = vmatpush2.bf16.xpose.msra.mxu0 0
        %2153 = vmatprep.mubr.bf16.mxu0 0
        %2154 = vmatmul.mubr.bf16.gmra.mxu0 %v2116
        %v2155 = vpop.f32.mrf.mxu0
        %v2156 = vadd.f32 0.0, %v2155
        %v2157 = vpop.f32.mrf.mxu0
        %v2158 = vpop.f32.mrf.mxu0
        %v2159 = vpop.f32.mrf.mxu0
        %2160 = vdwg.mxu0
        %v2161 = vmul.f32 %v2156, 0.5
        %v2162 = vsel %vm1805, %v2161, -inf
        %2163 = vmax.xlane.f32.xlu0 %v2162
        %v2164 = vpop.xlane.xlu0 %2163
        %v2165 = vsub.f32 %v2161, %v2164
        %v2166 = vmul.f32 %v2165, 1.442695
        %v2167 = vpow.pop %v2166
        %v2168 = vsel %vm1805, %v2167, 0.0
        %2169 = vadd.xlane.f32.xlu0 %v2168
        %v2170 = vpop.xlane.xlu0 %2169
        %v2171 = vrcp.pop %v2170
        %v2172 = vmul.f32 %v2167, %v2171
        %v2173 = vpack.c.bf16 %v2172, %v2172
        %v2174 = vpack.c.bf16 %v2110, %v2107
        %v2176 = vsel %vm1805, %v2173, 0
        %2178 = vmatprep.subr.bf16.mxu0 0
        %2179 = vmatpush1.bf16.msra.mxu0 0
        %2180 = vmatprep.subr.bf16.mxu0 0
        %2181 = vmatpush1.bf16.msra.mxu0 0
        %2182 = vmatprep.subr.bf16.mxu0 0
        %2183 = vmatpush1.bf16.msra.mxu0 0
        %2184 = vmatprep.subr.bf16.mxu0 0
        %2185 = vmatpush1.bf16.msra.mxu0 0
        %2186 = vmatprep.subr.bf16.mxu0 0
        %2187 = vmatpush1.bf16.msra.mxu0 0
        %2188 = vmatprep.subr.bf16.mxu0 0
        %2189 = vmatpush1.bf16.msra.mxu0 0
        %2190 = vmatprep.subr.bf16.mxu0 0
        %2191 = vmatpush1.bf16.msra.mxu0 0
        %2192 = vmatprep.subr.bf16.mxu0 0
        %2193 = vmatpush1.bf16.msra.mxu0 %v2174
        %2194 = vmatprep.subr.bf16.mxu0 0
        %2195 = vmatpush2.bf16.msra.mxu0 0
        %2196 = vmatprep.subr.bf16.mxu0 0
        %2197 = vmatpush2.bf16.msra.mxu0 0
        %2198 = vmatprep.subr.bf16.mxu0 0
        %2199 = vmatpush2.bf16.msra.mxu0 0
        %2200 = vmatprep.subr.bf16.mxu0 0
        %2201 = vmatpush2.bf16.msra.mxu0 0
        %2202 = vmatprep.subr.bf16.mxu0 0
        %2203 = vmatpush2.bf16.msra.mxu0 0
        %2204 = vmatprep.subr.bf16.mxu0 0
        %2205 = vmatpush2.bf16.msra.mxu0 0
        %2206 = vmatprep.subr.bf16.mxu0 0
        %2207 = vmatpush2.bf16.msra.mxu0 0
        %2208 = vmatprep.subr.bf16.mxu0 0
        %2209 = vmatpush2.bf16.msra.mxu0 0
        %2210 = vmatprep.mubr.bf16.mxu0 0
        %2211 = vmatmul.mubr.bf16.gmra.mxu0 %v2176
        %v2212 = vpop.f32.mrf.mxu0
        %v2213 = vadd.f32 0.0, %v2212
        %v2214 = vpop.f32.mrf.mxu0
        %v2215 = vpop.f32.mrf.mxu0
        %v2216 = vpop.f32.mrf.mxu0
        %2217 = vdwg.mxu0
        %2219 = vrot.lane.b32.xlu0 %v2113, 124
        %v2220 = vpop.permute.xlu0 %2219
        %2222 = vrot.lane.b32.xlu0 %v2114, 124
        %v2223 = vpop.permute.xlu0 %2222
        %v2225 = vsel %vm884, %v2220, 0
        %v2228 = vsel %vm884, %v2223, 0
        %2230 = vmatprep.subr.bf16.mxu0 0
        %2231 = vmatpush1.bf16.xpose.msra.mxu0 0
        %2232 = vmatprep.subr.bf16.mxu0 0
        %2233 = vmatpush1.bf16.xpose.msra.mxu0 0
        %2234 = vmatprep.subr.bf16.mxu0 0
        %2235 = vmatpush1.bf16.xpose.msra.mxu0 0
        %2236 = vmatprep.subr.bf16.mxu0 0
        %2237 = vmatpush1.bf16.xpose.msra.mxu0 0
        %2238 = vmatprep.subr.bf16.mxu0 0
        %2239 = vmatpush1.bf16.xpose.msra.mxu0 0
        %2240 = vmatprep.subr.bf16.mxu0 0
        %2241 = vmatpush1.bf16.xpose.msra.mxu0 0
        %2242 = vmatprep.subr.bf16.mxu0 0
        %2243 = vmatpush1.bf16.xpose.msra.mxu0 0
        %2244 = vmatprep.subr.bf16.mxu0 0
        %2245 = vmatpush1.bf16.xpose.msra.mxu0 %v2228
        %2246 = vmatprep.subr.bf16.mxu0 0
        %2247 = vmatpush2.bf16.xpose.msra.mxu0 0
        %2248 = vmatprep.subr.bf16.mxu0 0
        %2249 = vmatpush2.bf16.xpose.msra.mxu0 0
        %2250 = vmatprep.subr.bf16.mxu0 0
        %2251 = vmatpush2.bf16.xpose.msra.mxu0 0
        %2252 = vmatprep.subr.bf16.mxu0 0
        %2253 = vmatpush2.bf16.xpose.msra.mxu0 0
        %2254 = vmatprep.subr.bf16.mxu0 0
        %2255 = vmatpush2.bf16.xpose.msra.mxu0 0
        %2256 = vmatprep.subr.bf16.mxu0 0
        %2257 = vmatpush2.bf16.xpose.msra.mxu0 0
        %2258 = vmatprep.subr.bf16.mxu0 0
        %2259 = vmatpush2.bf16.xpose.msra.mxu0 0
        %2260 = vmatprep.subr.bf16.mxu0 0
        %2261 = vmatpush2.bf16.xpose.msra.mxu0 0
        %2262 = vmatprep.mubr.bf16.mxu0 0
        %2263 = vmatmul.mubr.bf16.gmra.mxu0 %v2225
        %v2264 = vpop.f32.mrf.mxu0
        %v2265 = vadd.f32 0.0, %v2264
        %v2266 = vpop.f32.mrf.mxu0
        %v2267 = vpop.f32.mrf.mxu0
        %v2268 = vpop.f32.mrf.mxu0
        %2269 = vdwg.mxu0
        %v2270 = vmul.f32 %v2265, 0.5
        %v2271 = vsel %vm1805, %v2270, -inf
        %2272 = vmax.xlane.f32.xlu0 %v2271
        %v2273 = vpop.xlane.xlu0 %2272
        %v2274 = vsub.f32 %v2270, %v2273
        %v2275 = vmul.f32 %v2274, 1.442695
        %v2276 = vpow.pop %v2275
        %v2277 = vsel %vm1805, %v2276, 0.0
        %2278 = vadd.xlane.f32.xlu0 %v2277
        %v2279 = vpop.xlane.xlu0 %2278
        %v2280 = vrcp.pop %v2279
        %v2281 = vmul.f32 %v2276, %v2280
        %v2282 = vpack.c.bf16 %v2281, %v2281
        %2284 = vrot.lane.b32.xlu0 %v2174, 124
        %v2285 = vpop.permute.xlu0 %2284
        %v2288 = vsel %vm1805, %v2282, 0
        %2290 = vmatprep.subr.bf16.mxu0 0
        %2291 = vmatpush1.bf16.msra.mxu0 0
        %2292 = vmatprep.subr.bf16.mxu0 0
        %2293 = vmatpush1.bf16.msra.mxu0 0
        %2294 = vmatprep.subr.bf16.mxu0 0
        %2295 = vmatpush1.bf16.msra.mxu0 0
        %2296 = vmatprep.subr.bf16.mxu0 0
        %2297 = vmatpush1.bf16.msra.mxu0 0
        %2298 = vmatprep.subr.bf16.mxu0 0
        %2299 = vmatpush1.bf16.msra.mxu0 0
        %2300 = vmatprep.subr.bf16.mxu0 0
        %2301 = vmatpush1.bf16.msra.mxu0 0
        %2302 = vmatprep.subr.bf16.mxu0 0
        %2303 = vmatpush1.bf16.msra.mxu0 0
        %2304 = vmatprep.subr.bf16.mxu0 0
        %2305 = vmatpush1.bf16.msra.mxu0 %v2285
        %2306 = vmatprep.subr.bf16.mxu0 0
        %2307 = vmatpush2.bf16.msra.mxu0 0
        %2308 = vmatprep.subr.bf16.mxu0 0
        %2309 = vmatpush2.bf16.msra.mxu0 0
        %2310 = vmatprep.subr.bf16.mxu0 0
        %2311 = vmatpush2.bf16.msra.mxu0 0
        %2312 = vmatprep.subr.bf16.mxu0 0
        %2313 = vmatpush2.bf16.msra.mxu0 0
        %2314 = vmatprep.subr.bf16.mxu0 0
        %2315 = vmatpush2.bf16.msra.mxu0 0
        %2316 = vmatprep.subr.bf16.mxu0 0
        %2317 = vmatpush2.bf16.msra.mxu0 0
        %2318 = vmatprep.subr.bf16.mxu0 0
        %2319 = vmatpush2.bf16.msra.mxu0 0
        %2320 = vmatprep.subr.bf16.mxu0 0
        %2321 = vmatpush2.bf16.msra.mxu0 0
        %2322 = vmatprep.mubr.bf16.mxu0 0
        %2323 = vmatmul.mubr.bf16.gmra.mxu0 %v2288
        %v2324 = vpop.f32.mrf.mxu0
        %v2325 = vadd.f32 0.0, %v2324
        %v2326 = vpop.f32.mrf.mxu0
        %v2327 = vpop.f32.mrf.mxu0
        %v2328 = vpop.f32.mrf.mxu0
        %2329 = vdwg.mxu0
        %2330 = vrot.lane.b32.xlu0 %v2113, 120
        %v2331 = vpop.permute.xlu0 %2330
        %2332 = vrot.lane.b32.xlu0 %v2114, 120
        %v2333 = vpop.permute.xlu0 %2332
        %v2335 = vsel %vm884, %v2331, 0
        %v2338 = vsel %vm884, %v2333, 0
        %2340 = vmatprep.subr.bf16.mxu0 0
        %2341 = vmatpush1.bf16.xpose.msra.mxu0 0
        %2342 = vmatprep.subr.bf16.mxu0 0
        %2343 = vmatpush1.bf16.xpose.msra.mxu0 0
        %2344 = vmatprep.subr.bf16.mxu0 0
        %2345 = vmatpush1.bf16.xpose.msra.mxu0 0
        %2346 = vmatprep.subr.bf16.mxu0 0
        %2347 = vmatpush1.bf16.xpose.msra.mxu0 0
        %2348 = vmatprep.subr.bf16.mxu0 0
        %2349 = vmatpush1.bf16.xpose.msra.mxu0 0
        %2350 = vmatprep.subr.bf16.mxu0 0
        %2351 = vmatpush1.bf16.xpose.msra.mxu0 0
        %2352 = vmatprep.subr.bf16.mxu0 0
        %2353 = vmatpush1.bf16.xpose.msra.mxu0 0
        %2354 = vmatprep.subr.bf16.mxu0 0
        %2355 = vmatpush1.bf16.xpose.msra.mxu0 %v2338
        %2356 = vmatprep.subr.bf16.mxu0 0
        %2357 = vmatpush2.bf16.xpose.msra.mxu0 0
        %2358 = vmatprep.subr.bf16.mxu0 0
        %2359 = vmatpush2.bf16.xpose.msra.mxu0 0
        %2360 = vmatprep.subr.bf16.mxu0 0
        %2361 = vmatpush2.bf16.xpose.msra.mxu0 0
        %2362 = vmatprep.subr.bf16.mxu0 0
        %2363 = vmatpush2.bf16.xpose.msra.mxu0 0
        %2364 = vmatprep.subr.bf16.mxu0 0
        %2365 = vmatpush2.bf16.xpose.msra.mxu0 0
        %2366 = vmatprep.subr.bf16.mxu0 0
        %2367 = vmatpush2.bf16.xpose.msra.mxu0 0
        %2368 = vmatprep.subr.bf16.mxu0 0
        %2369 = vmatpush2.bf16.xpose.msra.mxu0 0
        %2370 = vmatprep.subr.bf16.mxu0 0
        %2371 = vmatpush2.bf16.xpose.msra.mxu0 0
        %2372 = vmatprep.mubr.bf16.mxu0 0
        %2373 = vmatmul.mubr.bf16.gmra.mxu0 %v2335
        %v2374 = vpop.f32.mrf.mxu0
        %v2375 = vadd.f32 0.0, %v2374
        %v2376 = vpop.f32.mrf.mxu0
        %v2377 = vpop.f32.mrf.mxu0
        %v2378 = vpop.f32.mrf.mxu0
        %2379 = vdwg.mxu0
        %v2380 = vmul.f32 %v2375, 0.5
        %v2381 = vsel %vm1805, %v2380, -inf
        %2382 = vmax.xlane.f32.xlu0 %v2381
        %v2383 = vpop.xlane.xlu0 %2382
        %v2384 = vsub.f32 %v2380, %v2383
        %v2385 = vmul.f32 %v2384, 1.442695
        %v2386 = vpow.pop %v2385
        %v2387 = vsel %vm1805, %v2386, 0.0
        %2388 = vadd.xlane.f32.xlu0 %v2387
        %v2389 = vpop.xlane.xlu0 %2388
        %v2390 = vrcp.pop %v2389
        %v2391 = vmul.f32 %v2386, %v2390
        %v2392 = vpack.c.bf16 %v2391, %v2391
        %2393 = vrot.lane.b32.xlu0 %v2174, 120
        %v2394 = vpop.permute.xlu0 %2393
        %v2397 = vsel %vm1805, %v2392, 0
        %2399 = vmatprep.subr.bf16.mxu0 0
        %2400 = vmatpush1.bf16.msra.mxu0 0
        %2401 = vmatprep.subr.bf16.mxu0 0
        %2402 = vmatpush1.bf16.msra.mxu0 0
        %2403 = vmatprep.subr.bf16.mxu0 0
        %2404 = vmatpush1.bf16.msra.mxu0 0
        %2405 = vmatprep.subr.bf16.mxu0 0
        %2406 = vmatpush1.bf16.msra.mxu0 0
        %2407 = vmatprep.subr.bf16.mxu0 0
        %2408 = vmatpush1.bf16.msra.mxu0 0
        %2409 = vmatprep.subr.bf16.mxu0 0
        %2410 = vmatpush1.bf16.msra.mxu0 0
        %2411 = vmatprep.subr.bf16.mxu0 0
        %2412 = vmatpush1.bf16.msra.mxu0 0
        %2413 = vmatprep.subr.bf16.mxu0 0
        %2414 = vmatpush1.bf16.msra.mxu0 %v2394
        %2415 = vmatprep.subr.bf16.mxu0 0
        %2416 = vmatpush2.bf16.msra.mxu0 0
        %2417 = vmatprep.subr.bf16.mxu0 0
        %2418 = vmatpush2.bf16.msra.mxu0 0
        %2419 = vmatprep.subr.bf16.mxu0 0
        %2420 = vmatpush2.bf16.msra.mxu0 0
        %2421 = vmatprep.subr.bf16.mxu0 0
        %2422 = vmatpush2.bf16.msra.mxu0 0
        %2423 = vmatprep.subr.bf16.mxu0 0
        %2424 = vmatpush2.bf16.msra.mxu0 0
        %2425 = vmatprep.subr.bf16.mxu0 0
        %2426 = vmatpush2.bf16.msra.mxu0 0
        %2427 = vmatprep.subr.bf16.mxu0 0
        %2428 = vmatpush2.bf16.msra.mxu0 0
        %2429 = vmatprep.subr.bf16.mxu0 0
        %2430 = vmatpush2.bf16.msra.mxu0 0
        %2431 = vmatprep.mubr.bf16.mxu0 0
        %2432 = vmatmul.mubr.bf16.gmra.mxu0 %v2397
        %v2433 = vpop.f32.mrf.mxu0
        %v2434 = vadd.f32 0.0, %v2433
        %v2435 = vpop.f32.mrf.mxu0
        %v2436 = vpop.f32.mrf.mxu0
        %v2437 = vpop.f32.mrf.mxu0
        %2438 = vdwg.mxu0
        %2439 = vrot.lane.b32.xlu0 %v2113, 116
        %v2440 = vpop.permute.xlu0 %2439
        %2441 = vrot.lane.b32.xlu0 %v2114, 116
        %v2442 = vpop.permute.xlu0 %2441
        %v2444 = vsel %vm884, %v2440, 0
        %v2447 = vsel %vm884, %v2442, 0
        %2449 = vmatprep.subr.bf16.mxu0 0
        %2450 = vmatpush1.bf16.xpose.msra.mxu0 0
        %2451 = vmatprep.subr.bf16.mxu0 0
        %2452 = vmatpush1.bf16.xpose.msra.mxu0 0
        %2453 = vmatprep.subr.bf16.mxu0 0
        %2454 = vmatpush1.bf16.xpose.msra.mxu0 0
        %2455 = vmatprep.subr.bf16.mxu0 0
        %2456 = vmatpush1.bf16.xpose.msra.mxu0 0
        %2457 = vmatprep.subr.bf16.mxu0 0
        %2458 = vmatpush1.bf16.xpose.msra.mxu0 0
        %2459 = vmatprep.subr.bf16.mxu0 0
        %2460 = vmatpush1.bf16.xpose.msra.mxu0 0
        %2461 = vmatprep.subr.bf16.mxu0 0
        %2462 = vmatpush1.bf16.xpose.msra.mxu0 0
        %2463 = vmatprep.subr.bf16.mxu0 0
        %2464 = vmatpush1.bf16.xpose.msra.mxu0 %v2447
        %2465 = vmatprep.subr.bf16.mxu0 0
        %2466 = vmatpush2.bf16.xpose.msra.mxu0 0
        %2467 = vmatprep.subr.bf16.mxu0 0
        %2468 = vmatpush2.bf16.xpose.msra.mxu0 0
        %2469 = vmatprep.subr.bf16.mxu0 0
        %2470 = vmatpush2.bf16.xpose.msra.mxu0 0
        %2471 = vmatprep.subr.bf16.mxu0 0
        %2472 = vmatpush2.bf16.xpose.msra.mxu0 0
        %2473 = vmatprep.subr.bf16.mxu0 0
        %2474 = vmatpush2.bf16.xpose.msra.mxu0 0
        %2475 = vmatprep.subr.bf16.mxu0 0
        %2476 = vmatpush2.bf16.xpose.msra.mxu0 0
        %2477 = vmatprep.subr.bf16.mxu0 0
        %2478 = vmatpush2.bf16.xpose.msra.mxu0 0
        %2479 = vmatprep.subr.bf16.mxu0 0
        %2480 = vmatpush2.bf16.xpose.msra.mxu0 0
        %2481 = vmatprep.mubr.bf16.mxu0 0
        %2482 = vmatmul.mubr.bf16.gmra.mxu0 %v2444
        %v2483 = vpop.f32.mrf.mxu0
        %v2484 = vadd.f32 0.0, %v2483
        %v2485 = vpop.f32.mrf.mxu0
        %v2486 = vpop.f32.mrf.mxu0
        %v2487 = vpop.f32.mrf.mxu0
        %2488 = vdwg.mxu0
        %v2489 = vmul.f32 %v2484, 0.5
        %v2490 = vsel %vm1805, %v2489, -inf
        %2491 = vmax.xlane.f32.xlu0 %v2490
        %v2492 = vpop.xlane.xlu0 %2491
        %v2493 = vsub.f32 %v2489, %v2492
        %v2494 = vmul.f32 %v2493, 1.442695
        %v2495 = vpow.pop %v2494
        %v2496 = vsel %vm1805, %v2495, 0.0
        %2497 = vadd.xlane.f32.xlu0 %v2496
        %v2498 = vpop.xlane.xlu0 %2497
        %v2499 = vrcp.pop %v2498
        %v2500 = vmul.f32 %v2495, %v2499
        %v2501 = vpack.c.bf16 %v2500, %v2500
        %2502 = vrot.lane.b32.xlu0 %v2174, 116
        %v2503 = vpop.permute.xlu0 %2502
        %v2506 = vsel %vm1805, %v2501, 0
        %2508 = vmatprep.subr.bf16.mxu0 0
        %2509 = vmatpush1.bf16.msra.mxu0 0
        %2510 = vmatprep.subr.bf16.mxu0 0
        %2511 = vmatpush1.bf16.msra.mxu0 0
        %2512 = vmatprep.subr.bf16.mxu0 0
        %2513 = vmatpush1.bf16.msra.mxu0 0
        %2514 = vmatprep.subr.bf16.mxu0 0
        %2515 = vmatpush1.bf16.msra.mxu0 0
        %2516 = vmatprep.subr.bf16.mxu0 0
        %2517 = vmatpush1.bf16.msra.mxu0 0
        %2518 = vmatprep.subr.bf16.mxu0 0
        %2519 = vmatpush1.bf16.msra.mxu0 0
        %2520 = vmatprep.subr.bf16.mxu0 0
        %2521 = vmatpush1.bf16.msra.mxu0 0
        %2522 = vmatprep.subr.bf16.mxu0 0
        %2523 = vmatpush1.bf16.msra.mxu0 %v2503
        %2524 = vmatprep.subr.bf16.mxu0 0
        %2525 = vmatpush2.bf16.msra.mxu0 0
        %2526 = vmatprep.subr.bf16.mxu0 0
        %2527 = vmatpush2.bf16.msra.mxu0 0
        %2528 = vmatprep.subr.bf16.mxu0 0
        %2529 = vmatpush2.bf16.msra.mxu0 0
        %2530 = vmatprep.subr.bf16.mxu0 0
        %2531 = vmatpush2.bf16.msra.mxu0 0
        %2532 = vmatprep.subr.bf16.mxu0 0
        %2533 = vmatpush2.bf16.msra.mxu0 0
        %2534 = vmatprep.subr.bf16.mxu0 0
        %2535 = vmatpush2.bf16.msra.mxu0 0
        %2536 = vmatprep.subr.bf16.mxu0 0
        %2537 = vmatpush2.bf16.msra.mxu0 0
        %2538 = vmatprep.subr.bf16.mxu0 0
        %2539 = vmatpush2.bf16.msra.mxu0 0
        %2540 = vmatprep.mubr.bf16.mxu0 0
        %2541 = vmatmul.mubr.bf16.gmra.mxu0 %v2506
        %v2542 = vpop.f32.mrf.mxu0
        %v2543 = vadd.f32 0.0, %v2542
        %v2544 = vpop.f32.mrf.mxu0
        %v2545 = vpop.f32.mrf.mxu0
        %v2546 = vpop.f32.mrf.mxu0
        %2547 = vdwg.mxu0
        %2548 = vrot.lane.b32.xlu0 %v2113, 112
        %v2549 = vpop.permute.xlu0 %2548
        %2550 = vrot.lane.b32.xlu0 %v2114, 112
        %v2551 = vpop.permute.xlu0 %2550
        %v2553 = vsel %vm884, %v2549, 0
        %v2556 = vsel %vm884, %v2551, 0
        %2558 = vmatprep.subr.bf16.mxu0 0
        %2559 = vmatpush1.bf16.xpose.msra.mxu0 0
        %2560 = vmatprep.subr.bf16.mxu0 0
        %2561 = vmatpush1.bf16.xpose.msra.mxu0 0
        %2562 = vmatprep.subr.bf16.mxu0 0
        %2563 = vmatpush1.bf16.xpose.msra.mxu0 0
        %2564 = vmatprep.subr.bf16.mxu0 0
        %2565 = vmatpush1.bf16.xpose.msra.mxu0 0
        %2566 = vmatprep.subr.bf16.mxu0 0
        %2567 = vmatpush1.bf16.xpose.msra.mxu0 0
        %2568 = vmatprep.subr.bf16.mxu0 0
        %2569 = vmatpush1.bf16.xpose.msra.mxu0 0
        %2570 = vmatprep.subr.bf16.mxu0 0
        %2571 = vmatpush1.bf16.xpose.msra.mxu0 0
        %2572 = vmatprep.subr.bf16.mxu0 0
        %2573 = vmatpush1.bf16.xpose.msra.mxu0 %v2556
        %2574 = vmatprep.subr.bf16.mxu0 0
        %2575 = vmatpush2.bf16.xpose.msra.mxu0 0
        %2576 = vmatprep.subr.bf16.mxu0 0
        %2577 = vmatpush2.bf16.xpose.msra.mxu0 0
        %2578 = vmatprep.subr.bf16.mxu0 0
        %2579 = vmatpush2.bf16.xpose.msra.mxu0 0
        %2580 = vmatprep.subr.bf16.mxu0 0
        %2581 = vmatpush2.bf16.xpose.msra.mxu0 0
        %2582 = vmatprep.subr.bf16.mxu0 0
        %2583 = vmatpush2.bf16.xpose.msra.mxu0 0
        %2584 = vmatprep.subr.bf16.mxu0 0
        %2585 = vmatpush2.bf16.xpose.msra.mxu0 0
        %2586 = vmatprep.subr.bf16.mxu0 0
        %2587 = vmatpush2.bf16.xpose.msra.mxu0 0
        %2588 = vmatprep.subr.bf16.mxu0 0
        %2589 = vmatpush2.bf16.xpose.msra.mxu0 0
        %2590 = vmatprep.mubr.bf16.mxu0 0
        %2591 = vmatmul.mubr.bf16.gmra.mxu0 %v2553
        %v2592 = vpop.f32.mrf.mxu0
        %v2593 = vadd.f32 0.0, %v2592
        %v2594 = vpop.f32.mrf.mxu0
        %v2595 = vpop.f32.mrf.mxu0
        %v2596 = vpop.f32.mrf.mxu0
        %2597 = vdwg.mxu0
        %v2598 = vmul.f32 %v2593, 0.5
        %v2599 = vsel %vm1805, %v2598, -inf
        %2600 = vmax.xlane.f32.xlu0 %v2599
        %v2601 = vpop.xlane.xlu0 %2600
        %v2602 = vsub.f32 %v2598, %v2601
        %v2603 = vmul.f32 %v2602, 1.442695
        %v2604 = vpow.pop %v2603
        %v2605 = vsel %vm1805, %v2604, 0.0
        %2606 = vadd.xlane.f32.xlu0 %v2605
        %v2607 = vpop.xlane.xlu0 %2606
        %v2608 = vrcp.pop %v2607
        %v2609 = vmul.f32 %v2604, %v2608
        %v2610 = vpack.c.bf16 %v2609, %v2609
        %2611 = vrot.lane.b32.xlu0 %v2174, 112
        %v2612 = vpop.permute.xlu0 %2611
        %v2615 = vsel %vm1805, %v2610, 0
        %2617 = vmatprep.subr.bf16.mxu0 0
        %2618 = vmatpush1.bf16.msra.mxu0 0
        %2619 = vmatprep.subr.bf16.mxu0 0
        %2620 = vmatpush1.bf16.msra.mxu0 0
        %2621 = vmatprep.subr.bf16.mxu0 0
        %2622 = vmatpush1.bf16.msra.mxu0 0
        %2623 = vmatprep.subr.bf16.mxu0 0
        %2624 = vmatpush1.bf16.msra.mxu0 0
        %2625 = vmatprep.subr.bf16.mxu0 0
        %2626 = vmatpush1.bf16.msra.mxu0 0
        %2627 = vmatprep.subr.bf16.mxu0 0
        %2628 = vmatpush1.bf16.msra.mxu0 0
        %2629 = vmatprep.subr.bf16.mxu0 0
        %2630 = vmatpush1.bf16.msra.mxu0 0
        %2631 = vmatprep.subr.bf16.mxu0 0
        %2632 = vmatpush1.bf16.msra.mxu0 %v2612
        %2633 = vmatprep.subr.bf16.mxu0 0
        %2634 = vmatpush2.bf16.msra.mxu0 0
        %2635 = vmatprep.subr.bf16.mxu0 0
        %2636 = vmatpush2.bf16.msra.mxu0 0
        %2637 = vmatprep.subr.bf16.mxu0 0
        %2638 = vmatpush2.bf16.msra.mxu0 0
        %2639 = vmatprep.subr.bf16.mxu0 0
        %2640 = vmatpush2.bf16.msra.mxu0 0
        %2641 = vmatprep.subr.bf16.mxu0 0
        %2642 = vmatpush2.bf16.msra.mxu0 0
        %2643 = vmatprep.subr.bf16.mxu0 0
        %2644 = vmatpush2.bf16.msra.mxu0 0
        %2645 = vmatprep.subr.bf16.mxu0 0
        %2646 = vmatpush2.bf16.msra.mxu0 0
        %2647 = vmatprep.subr.bf16.mxu0 0
        %2648 = vmatpush2.bf16.msra.mxu0 0
        %2649 = vmatprep.mubr.bf16.mxu0 0
        %2650 = vmatmul.mubr.bf16.gmra.mxu0 %v2615
        %v2651 = vpop.f32.mrf.mxu0
        %v2652 = vadd.f32 0.0, %v2651
        %v2653 = vpop.f32.mrf.mxu0
        %v2654 = vpop.f32.mrf.mxu0
        %v2655 = vpop.f32.mrf.mxu0
        %2656 = vdwg.mxu0
        %2657 = vrot.lane.b32.xlu0 %v2113, 108
        %v2658 = vpop.permute.xlu0 %2657
        %2659 = vrot.lane.b32.xlu0 %v2114, 108
        %v2660 = vpop.permute.xlu0 %2659
        %v2662 = vsel %vm884, %v2658, 0
        %v2665 = vsel %vm884, %v2660, 0
        %2667 = vmatprep.subr.bf16.mxu0 0
        %2668 = vmatpush1.bf16.xpose.msra.mxu0 0
        %2669 = vmatprep.subr.bf16.mxu0 0
        %2670 = vmatpush1.bf16.xpose.msra.mxu0 0
        %2671 = vmatprep.subr.bf16.mxu0 0
        %2672 = vmatpush1.bf16.xpose.msra.mxu0 0
        %2673 = vmatprep.subr.bf16.mxu0 0
        %2674 = vmatpush1.bf16.xpose.msra.mxu0 0
        %2675 = vmatprep.subr.bf16.mxu0 0
        %2676 = vmatpush1.bf16.xpose.msra.mxu0 0
        %2677 = vmatprep.subr.bf16.mxu0 0
        %2678 = vmatpush1.bf16.xpose.msra.mxu0 0
        %2679 = vmatprep.subr.bf16.mxu0 0
        %2680 = vmatpush1.bf16.xpose.msra.mxu0 0
        %2681 = vmatprep.subr.bf16.mxu0 0
        %2682 = vmatpush1.bf16.xpose.msra.mxu0 %v2665
        %2683 = vmatprep.subr.bf16.mxu0 0
        %2684 = vmatpush2.bf16.xpose.msra.mxu0 0
        %2685 = vmatprep.subr.bf16.mxu0 0
        %2686 = vmatpush2.bf16.xpose.msra.mxu0 0
        %2687 = vmatprep.subr.bf16.mxu0 0
        %2688 = vmatpush2.bf16.xpose.msra.mxu0 0
        %2689 = vmatprep.subr.bf16.mxu0 0
        %2690 = vmatpush2.bf16.xpose.msra.mxu0 0
        %2691 = vmatprep.subr.bf16.mxu0 0
        %2692 = vmatpush2.bf16.xpose.msra.mxu0 0
        %2693 = vmatprep.subr.bf16.mxu0 0
        %2694 = vmatpush2.bf16.xpose.msra.mxu0 0
        %2695 = vmatprep.subr.bf16.mxu0 0
        %2696 = vmatpush2.bf16.xpose.msra.mxu0 0
        %2697 = vmatprep.subr.bf16.mxu0 0
        %2698 = vmatpush2.bf16.xpose.msra.mxu0 0
        %2699 = vmatprep.mubr.bf16.mxu0 0
        %2700 = vmatmul.mubr.bf16.gmra.mxu0 %v2662
        %v2701 = vpop.f32.mrf.mxu0
        %v2702 = vadd.f32 0.0, %v2701
        %v2703 = vpop.f32.mrf.mxu0
        %v2704 = vpop.f32.mrf.mxu0
        %v2705 = vpop.f32.mrf.mxu0
        %2706 = vdwg.mxu0
        %v2707 = vmul.f32 %v2702, 0.5
        %v2708 = vsel %vm1805, %v2707, -inf
        %2709 = vmax.xlane.f32.xlu0 %v2708
        %v2710 = vpop.xlane.xlu0 %2709
        %v2711 = vsub.f32 %v2707, %v2710
        %v2712 = vmul.f32 %v2711, 1.442695
        %v2713 = vpow.pop %v2712
        %v2714 = vsel %vm1805, %v2713, 0.0
        %2715 = vadd.xlane.f32.xlu0 %v2714
        %v2716 = vpop.xlane.xlu0 %2715
        %v2717 = vrcp.pop %v2716
        %v2718 = vmul.f32 %v2713, %v2717
        %v2719 = vpack.c.bf16 %v2718, %v2718
        %2720 = vrot.lane.b32.xlu0 %v2174, 108
        %v2721 = vpop.permute.xlu0 %2720
        %v2724 = vsel %vm1805, %v2719, 0
        %2726 = vmatprep.subr.bf16.mxu0 0
        %2727 = vmatpush1.bf16.msra.mxu0 0
        %2728 = vmatprep.subr.bf16.mxu0 0
        %2729 = vmatpush1.bf16.msra.mxu0 0
        %2730 = vmatprep.subr.bf16.mxu0 0
        %2731 = vmatpush1.bf16.msra.mxu0 0
        %2732 = vmatprep.subr.bf16.mxu0 0
        %2733 = vmatpush1.bf16.msra.mxu0 0
        %2734 = vmatprep.subr.bf16.mxu0 0
        %2735 = vmatpush1.bf16.msra.mxu0 0
        %2736 = vmatprep.subr.bf16.mxu0 0
        %2737 = vmatpush1.bf16.msra.mxu0 0
        %2738 = vmatprep.subr.bf16.mxu0 0
        %2739 = vmatpush1.bf16.msra.mxu0 0
        %2740 = vmatprep.subr.bf16.mxu0 0
        %2741 = vmatpush1.bf16.msra.mxu0 %v2721
        %2742 = vmatprep.subr.bf16.mxu0 0
        %2743 = vmatpush2.bf16.msra.mxu0 0
        %2744 = vmatprep.subr.bf16.mxu0 0
        %2745 = vmatpush2.bf16.msra.mxu0 0
        %2746 = vmatprep.subr.bf16.mxu0 0
        %2747 = vmatpush2.bf16.msra.mxu0 0
        %2748 = vmatprep.subr.bf16.mxu0 0
        %2749 = vmatpush2.bf16.msra.mxu0 0
        %2750 = vmatprep.subr.bf16.mxu0 0
        %2751 = vmatpush2.bf16.msra.mxu0 0
        %2752 = vmatprep.subr.bf16.mxu0 0
        %2753 = vmatpush2.bf16.msra.mxu0 0
        %2754 = vmatprep.subr.bf16.mxu0 0
        %2755 = vmatpush2.bf16.msra.mxu0 0
        %2756 = vmatprep.subr.bf16.mxu0 0
        %2757 = vmatpush2.bf16.msra.mxu0 0
        %2758 = vmatprep.mubr.bf16.mxu0 0
        %2759 = vmatmul.mubr.bf16.gmra.mxu0 %v2724
        %v2760 = vpop.f32.mrf.mxu0
        %v2761 = vadd.f32 0.0, %v2760
        %v2762 = vpop.f32.mrf.mxu0
        %v2763 = vpop.f32.mrf.mxu0
        %v2764 = vpop.f32.mrf.mxu0
        %2765 = vdwg.mxu0
        %2766 = vrot.lane.b32.xlu0 %v2113, 104
        %v2767 = vpop.permute.xlu0 %2766
        %2768 = vrot.lane.b32.xlu0 %v2114, 104
        %v2769 = vpop.permute.xlu0 %2768
        %v2771 = vsel %vm884, %v2767, 0
        %v2774 = vsel %vm884, %v2769, 0
        %2776 = vmatprep.subr.bf16.mxu0 0
        %2777 = vmatpush1.bf16.xpose.msra.mxu0 0
        %2778 = vmatprep.subr.bf16.mxu0 0
        %2779 = vmatpush1.bf16.xpose.msra.mxu0 0
        %2780 = vmatprep.subr.bf16.mxu0 0
        %2781 = vmatpush1.bf16.xpose.msra.mxu0 0
        %2782 = vmatprep.subr.bf16.mxu0 0
        %2783 = vmatpush1.bf16.xpose.msra.mxu0 0
        %2784 = vmatprep.subr.bf16.mxu0 0
        %2785 = vmatpush1.bf16.xpose.msra.mxu0 0
        %2786 = vmatprep.subr.bf16.mxu0 0
        %2787 = vmatpush1.bf16.xpose.msra.mxu0 0
        %2788 = vmatprep.subr.bf16.mxu0 0
        %2789 = vmatpush1.bf16.xpose.msra.mxu0 0
        %2790 = vmatprep.subr.bf16.mxu0 0
        %2791 = vmatpush1.bf16.xpose.msra.mxu0 %v2774
        %2792 = vmatprep.subr.bf16.mxu0 0
        %2793 = vmatpush2.bf16.xpose.msra.mxu0 0
        %2794 = vmatprep.subr.bf16.mxu0 0
        %2795 = vmatpush2.bf16.xpose.msra.mxu0 0
        %2796 = vmatprep.subr.bf16.mxu0 0
        %2797 = vmatpush2.bf16.xpose.msra.mxu0 0
        %2798 = vmatprep.subr.bf16.mxu0 0
        %2799 = vmatpush2.bf16.xpose.msra.mxu0 0
        %2800 = vmatprep.subr.bf16.mxu0 0
        %2801 = vmatpush2.bf16.xpose.msra.mxu0 0
        %2802 = vmatprep.subr.bf16.mxu0 0
        %2803 = vmatpush2.bf16.xpose.msra.mxu0 0
        %2804 = vmatprep.subr.bf16.mxu0 0
        %2805 = vmatpush2.bf16.xpose.msra.mxu0 0
        %2806 = vmatprep.subr.bf16.mxu0 0
        %2807 = vmatpush2.bf16.xpose.msra.mxu0 0
        %2808 = vmatprep.mubr.bf16.mxu0 0
        %2809 = vmatmul.mubr.bf16.gmra.mxu0 %v2771
        %v2810 = vpop.f32.mrf.mxu0
        %v2811 = vadd.f32 0.0, %v2810
        %v2812 = vpop.f32.mrf.mxu0
        %v2813 = vpop.f32.mrf.mxu0
        %v2814 = vpop.f32.mrf.mxu0
        %2815 = vdwg.mxu0
        %v2816 = vmul.f32 %v2811, 0.5
        %v2817 = vsel %vm1805, %v2816, -inf
        %2818 = vmax.xlane.f32.xlu0 %v2817
        %v2819 = vpop.xlane.xlu0 %2818
        %v2820 = vsub.f32 %v2816, %v2819
        %v2821 = vmul.f32 %v2820, 1.442695
        %v2822 = vpow.pop %v2821
        %v2823 = vsel %vm1805, %v2822, 0.0
        %2824 = vadd.xlane.f32.xlu0 %v2823
        %v2825 = vpop.xlane.xlu0 %2824
        %v2826 = vrcp.pop %v2825
        %v2827 = vmul.f32 %v2822, %v2826
        %v2828 = vpack.c.bf16 %v2827, %v2827
        %2829 = vrot.lane.b32.xlu0 %v2174, 104
        %v2830 = vpop.permute.xlu0 %2829
        %v2833 = vsel %vm1805, %v2828, 0
        %2835 = vmatprep.subr.bf16.mxu0 0
        %2836 = vmatpush1.bf16.msra.mxu0 0
        %2837 = vmatprep.subr.bf16.mxu0 0
        %2838 = vmatpush1.bf16.msra.mxu0 0
        %2839 = vmatprep.subr.bf16.mxu0 0
        %2840 = vmatpush1.bf16.msra.mxu0 0
        %2841 = vmatprep.subr.bf16.mxu0 0
        %2842 = vmatpush1.bf16.msra.mxu0 0
        %2843 = vmatprep.subr.bf16.mxu0 0
        %2844 = vmatpush1.bf16.msra.mxu0 0
        %2845 = vmatprep.subr.bf16.mxu0 0
        %2846 = vmatpush1.bf16.msra.mxu0 0
        %2847 = vmatprep.subr.bf16.mxu0 0
        %2848 = vmatpush1.bf16.msra.mxu0 0
        %2849 = vmatprep.subr.bf16.mxu0 0
        %2850 = vmatpush1.bf16.msra.mxu0 %v2830
        %2851 = vmatprep.subr.bf16.mxu0 0
        %2852 = vmatpush2.bf16.msra.mxu0 0
        %2853 = vmatprep.subr.bf16.mxu0 0
        %2854 = vmatpush2.bf16.msra.mxu0 0
        %2855 = vmatprep.subr.bf16.mxu0 0
        %2856 = vmatpush2.bf16.msra.mxu0 0
        %2857 = vmatprep.subr.bf16.mxu0 0
        %2858 = vmatpush2.bf16.msra.mxu0 0
        %2859 = vmatprep.subr.bf16.mxu0 0
        %2860 = vmatpush2.bf16.msra.mxu0 0
        %2861 = vmatprep.subr.bf16.mxu0 0
        %2862 = vmatpush2.bf16.msra.mxu0 0
        %2863 = vmatprep.subr.bf16.mxu0 0
        %2864 = vmatpush2.bf16.msra.mxu0 0
        %2865 = vmatprep.subr.bf16.mxu0 0
        %2866 = vmatpush2.bf16.msra.mxu0 0
        %2867 = vmatprep.mubr.bf16.mxu0 0
        %2868 = vmatmul.mubr.bf16.gmra.mxu0 %v2833
        %v2869 = vpop.f32.mrf.mxu0
        %v2870 = vadd.f32 0.0, %v2869
        %v2871 = vpop.f32.mrf.mxu0
        %v2872 = vpop.f32.mrf.mxu0
        %v2873 = vpop.f32.mrf.mxu0
        %2874 = vdwg.mxu0
        %2875 = vrot.lane.b32.xlu0 %v2113, 100
        %v2876 = vpop.permute.xlu0 %2875
        %2877 = vrot.lane.b32.xlu0 %v2114, 100
        %v2878 = vpop.permute.xlu0 %2877
        %v2880 = vsel %vm884, %v2876, 0
        %v2883 = vsel %vm884, %v2878, 0
        %2885 = vmatprep.subr.bf16.mxu0 0
        %2886 = vmatpush1.bf16.xpose.msra.mxu0 0
        %2887 = vmatprep.subr.bf16.mxu0 0
        %2888 = vmatpush1.bf16.xpose.msra.mxu0 0
        %2889 = vmatprep.subr.bf16.mxu0 0
        %2890 = vmatpush1.bf16.xpose.msra.mxu0 0
        %2891 = vmatprep.subr.bf16.mxu0 0
        %2892 = vmatpush1.bf16.xpose.msra.mxu0 0
        %2893 = vmatprep.subr.bf16.mxu0 0
        %2894 = vmatpush1.bf16.xpose.msra.mxu0 0
        %2895 = vmatprep.subr.bf16.mxu0 0
        %2896 = vmatpush1.bf16.xpose.msra.mxu0 0
        %2897 = vmatprep.subr.bf16.mxu0 0
        %2898 = vmatpush1.bf16.xpose.msra.mxu0 0
        %2899 = vmatprep.subr.bf16.mxu0 0
        %2900 = vmatpush1.bf16.xpose.msra.mxu0 %v2883
        %2901 = vmatprep.subr.bf16.mxu0 0
        %2902 = vmatpush2.bf16.xpose.msra.mxu0 0
        %2903 = vmatprep.subr.bf16.mxu0 0
        %2904 = vmatpush2.bf16.xpose.msra.mxu0 0
        %2905 = vmatprep.subr.bf16.mxu0 0
        %2906 = vmatpush2.bf16.xpose.msra.mxu0 0
        %2907 = vmatprep.subr.bf16.mxu0 0
        %2908 = vmatpush2.bf16.xpose.msra.mxu0 0
        %2909 = vmatprep.subr.bf16.mxu0 0
        %2910 = vmatpush2.bf16.xpose.msra.mxu0 0
        %2911 = vmatprep.subr.bf16.mxu0 0
        %2912 = vmatpush2.bf16.xpose.msra.mxu0 0
        %2913 = vmatprep.subr.bf16.mxu0 0
        %2914 = vmatpush2.bf16.xpose.msra.mxu0 0
        %2915 = vmatprep.subr.bf16.mxu0 0
        %2916 = vmatpush2.bf16.xpose.msra.mxu0 0
        %2917 = vmatprep.mubr.bf16.mxu0 0
        %2918 = vmatmul.mubr.bf16.gmra.mxu0 %v2880
        %v2919 = vpop.f32.mrf.mxu0
        %v2920 = vadd.f32 0.0, %v2919
        %v2921 = vpop.f32.mrf.mxu0
        %v2922 = vpop.f32.mrf.mxu0
        %v2923 = vpop.f32.mrf.mxu0
        %2924 = vdwg.mxu0
        %v2925 = vmul.f32 %v2920, 0.5
        %v2926 = vsel %vm1805, %v2925, -inf
        %2927 = vmax.xlane.f32.xlu0 %v2926
        %v2928 = vpop.xlane.xlu0 %2927
        %v2929 = vsub.f32 %v2925, %v2928
        %v2930 = vmul.f32 %v2929, 1.442695
        %v2931 = vpow.pop %v2930
        %v2932 = vsel %vm1805, %v2931, 0.0
        %2933 = vadd.xlane.f32.xlu0 %v2932
        %v2934 = vpop.xlane.xlu0 %2933
        %v2935 = vrcp.pop %v2934
        %v2936 = vmul.f32 %v2931, %v2935
        %v2937 = vpack.c.bf16 %v2936, %v2936
        %2938 = vrot.lane.b32.xlu0 %v2174, 100
        %v2939 = vpop.permute.xlu0 %2938
        %v2942 = vsel %vm1805, %v2937, 0
        %2944 = vmatprep.subr.bf16.mxu0 0
        %2945 = vmatpush1.bf16.msra.mxu0 0
        %2946 = vmatprep.subr.bf16.mxu0 0
        %2947 = vmatpush1.bf16.msra.mxu0 0
        %2948 = vmatprep.subr.bf16.mxu0 0
        %2949 = vmatpush1.bf16.msra.mxu0 0
        %2950 = vmatprep.subr.bf16.mxu0 0
        %2951 = vmatpush1.bf16.msra.mxu0 0
        %2952 = vmatprep.subr.bf16.mxu0 0
        %2953 = vmatpush1.bf16.msra.mxu0 0
        %2954 = vmatprep.subr.bf16.mxu0 0
        %2955 = vmatpush1.bf16.msra.mxu0 0
        %2956 = vmatprep.subr.bf16.mxu0 0
        %2957 = vmatpush1.bf16.msra.mxu0 0
        %2958 = vmatprep.subr.bf16.mxu0 0
        %2959 = vmatpush1.bf16.msra.mxu0 %v2939
        %2960 = vmatprep.subr.bf16.mxu0 0
        %2961 = vmatpush2.bf16.msra.mxu0 0
        %2962 = vmatprep.subr.bf16.mxu0 0
        %2963 = vmatpush2.bf16.msra.mxu0 0
        %2964 = vmatprep.subr.bf16.mxu0 0
        %2965 = vmatpush2.bf16.msra.mxu0 0
        %2966 = vmatprep.subr.bf16.mxu0 0
        %2967 = vmatpush2.bf16.msra.mxu0 0
        %2968 = vmatprep.subr.bf16.mxu0 0
        %2969 = vmatpush2.bf16.msra.mxu0 0
        %2970 = vmatprep.subr.bf16.mxu0 0
        %2971 = vmatpush2.bf16.msra.mxu0 0
        %2972 = vmatprep.subr.bf16.mxu0 0
        %2973 = vmatpush2.bf16.msra.mxu0 0
        %2974 = vmatprep.subr.bf16.mxu0 0
        %2975 = vmatpush2.bf16.msra.mxu0 0
        %2976 = vmatprep.mubr.bf16.mxu0 0
        %2977 = vmatmul.mubr.bf16.gmra.mxu0 %v2942
        %v2978 = vpop.f32.mrf.mxu0
        %v2979 = vadd.f32 0.0, %v2978
        %v2980 = vpop.f32.mrf.mxu0
        %v2981 = vpop.f32.mrf.mxu0
        %v2982 = vpop.f32.mrf.mxu0
        %2983 = vdwg.mxu0
        %2985 = vrot.lane.b32.xlu0 %v2325, 4
        %v2986 = vpop.permute.xlu0 %2985
        %2989 = vrot.lane.b32.xlu0 %v2434, 8
        %v2990 = vpop.permute.xlu0 %2989
        %2993 = vrot.lane.b32.xlu0 %v2543, 12
        %v2994 = vpop.permute.xlu0 %2993
        %2997 = vrot.lane.b32.xlu0 %v2652, 16
        %v2998 = vpop.permute.xlu0 %2997
        %3001 = vrot.lane.b32.xlu0 %v2761, 20
        %v3002 = vpop.permute.xlu0 %3001
        %3005 = vrot.lane.b32.xlu0 %v2870, 24
        %v3006 = vpop.permute.xlu0 %3005
        %3009 = vrot.lane.b32.xlu0 %v2979, 28
        %v3010 = vpop.permute.xlu0 %3009
        %v3012 = vsel %vm884, %v2213, %v2986
        %v3013 = vsel %vm932, %v3012, %v2990
        %v3014 = vsel %vm1803, %v3013, %v2994
        %v3015 = vsel %vm1805, %v3014, %v2998
        %v3016 = vsel %vm1807, %v3015, %v3002
        %v3017 = vsel %vm1809, %v3016, %v3006
        %v3018 = vsel %vm1811, %v3017, %v3010
        %v3019 = vpack.c.bf16 %v3018, %v3018
        %v3020 = vlaneseq
        %v3021 = vshrl.u32 %v3020, 7
        %v3022 = vsub.s32 7, %v3021
        %v3023 = vrot.slane %v681, %v3022
        %v3028 = vunpack.c.l.b16 %v1920
        %v3029 = vunpack.c.l.b16 %v1921
        %v3030 = vunpack.c.l.b16 %v1922
        %v3031 = vunpack.c.l.b16 %v1923
        %v3032 = vpack.c.b16 %v3029, %v3028
        %v3033 = vpack.c.b16 %v3031, %v3030
        %v3037 = vsel %vm723, %v3019, 0
        %3039 = vmatprep.subr.bf16.mxu0 0
        %3040 = vmatpush1.bf16.msra.mxu0 0
        %3041 = vmatprep.subr.bf16.mxu0 0
        %3042 = vmatpush1.bf16.msra.mxu0 0
        %3043 = vmatprep.subr.bf16.mxu0 0
        %3044 = vmatpush1.bf16.msra.mxu0 0
        %3045 = vmatprep.subr.bf16.mxu0 0
        %3046 = vmatpush1.bf16.msra.mxu0 0
        %3047 = vmatprep.subr.bf16.mxu0 0
        %3048 = vmatpush1.bf16.msra.mxu0 0
        %3049 = vmatprep.subr.bf16.mxu0 0
        %3050 = vmatpush1.bf16.msra.mxu0 0
        %3051 = vmatprep.subr.bf16.mxu0 0
        %3052 = vmatpush1.bf16.msra.mxu0 %v3033
        %3053 = vmatprep.subr.bf16.mxu0 0
        %3054 = vmatpush1.bf16.msra.mxu0 %v3032
        %3055 = vmatprep.subr.bf16.mxu0 0
        %3056 = vmatpush2.bf16.msra.mxu0 0
        %3057 = vmatprep.subr.bf16.mxu0 0
        %3058 = vmatpush2.bf16.msra.mxu0 0
        %3059 = vmatprep.subr.bf16.mxu0 0
        %3060 = vmatpush2.bf16.msra.mxu0 0
        %3061 = vmatprep.subr.bf16.mxu0 0
        %3062 = vmatpush2.bf16.msra.mxu0 0
        %3063 = vmatprep.subr.bf16.mxu0 0
        %3064 = vmatpush2.bf16.msra.mxu0 0
        %3065 = vmatprep.subr.bf16.mxu0 0
        %3066 = vmatpush2.bf16.msra.mxu0 0
        %3067 = vmatprep.subr.bf16.mxu0 0
        %3068 = vmatpush2.bf16.msra.mxu0 0
        %3069 = vmatprep.subr.bf16.mxu0 0
        %3070 = vmatpush2.bf16.msra.mxu0 0
        %3071 = vmatprep.mubr.bf16.mxu0 0
        %3072 = vmatmul.mubr.bf16.gmra.mxu0 %v3037
        %v3073 = vpop.f32.mrf.mxu0
        %v3074 = vadd.f32 %v3023, %v3073
        %v3075 = vpop.f32.mrf.mxu0
        %v3076 = vpop.f32.mrf.mxu0
        %v3077 = vpop.f32.mrf.mxu0
        %3078 = vdwg.mxu0
        %v3079 = vadd.f32 %v1897, %v3074
        %v3080 = vsel %vm723, %v3079, 0.0
        %3081 = vadd.xlane.f32.xlu0 %v3080
        %v3082 = vpop.xlane.xlu0 %3081
        %v3083 = vmul.f32 %v3082, %v1877
        %v3084 = vsub.f32 %v3079, %v3083
        %v3085 = vmul.f32 %v3084, %v3084
        %v3086 = vsel %vm723, %v3085, 0.0
        %3087 = vadd.xlane.f32.xlu0 %v3086
        %v3088 = vpop.xlane.xlu0 %3087
        %v3089 = vmul.f32 %v3088, %v1877
        %v3090 = vadd.f32 %v3089, 1e-05
        %v3091 = vrsqrt.pop %v3090
        %v3092 = vmul.f32 %v3084, %v3091
        %v3093 = vlaneseq
        %v3094 = vshrl.u32 %v3093, 7
        %v3095 = vsub.s32 3, %v3094
        %v3096 = vrot.slane %v682, %v3095
        %v3097 = vmul.f32 %v3092, %v3096
        %v3098 = vlaneseq
        %v3099 = vshrl.u32 %v3098, 7
        %v3100 = vsub.s32 4, %v3099
        %v3101 = vrot.slane %v682, %v3100
        %v3102 = vadd.f32 %v3097, %v3101
        %v3103 = vpack.c.bf16 %v3102, %v3102
        %v3104 = vld [vmem:[%s634] sm:$0xff]
        %v3105 = vld [vmem:[%s634 + $0x8] sm:$0xff]
        %v3106 = vld [vmem:[%s634 + $0x10] sm:$0xff]
        %v3107 = vld [vmem:[%s634 + $0x18] sm:$0xff]
        %v3108 = vld [vmem:[%s638] sm:$0x3]
        %v3110 = vlaneseq
        %v3111 = vshrl.u32 %v3110, 7
        %v3112 = vsub.s32 0, %v3111
        %v3113 = vrot.slane %v3108, %v3112
        %v3114 = vlaneseq
        %v3115 = vshrl.u32 %v3114, 7
        %v3116 = vsub.s32 1, %v3115
        %v3117 = vrot.slane %v3108, %v3116
        %v3124 = vunpack.c.l.b16 %v3104
        %v3125 = vunpack.c.h.b16 %v3104
        %v3126 = vunpack.c.l.b16 %v3105
        %v3127 = vunpack.c.h.b16 %v3105
        %v3128 = vunpack.c.l.b16 %v3106
        %v3129 = vunpack.c.h.b16 %v3106
        %v3130 = vunpack.c.l.b16 %v3107
        %v3131 = vunpack.c.h.b16 %v3107
        %v3132 = vpack.c.b16 %v3126, %v3124
        %v3133 = vpack.c.b16 %v3127, %v3125
        %v3134 = vpack.c.b16 %v3130, %v3128
        %v3135 = vpack.c.b16 %v3131, %v3129
        %v3141 = vsel %vm723, %v3103, 0
        %3143 = vmatprep.subr.bf16.mxu0 0
        %3144 = vmatpush1.bf16.msra.mxu0 0
        %3145 = vmatprep.subr.bf16.mxu0 0
        %3146 = vmatpush1.bf16.msra.mxu0 0
        %3147 = vmatprep.subr.bf16.mxu0 0
        %3148 = vmatpush1.bf16.msra.mxu0 0
        %3149 = vmatprep.subr.bf16.mxu0 0
        %3150 = vmatpush1.bf16.msra.mxu0 0
        %3151 = vmatprep.subr.bf16.mxu0 0
        %3152 = vmatpush1.bf16.msra.mxu0 0
        %3153 = vmatprep.subr.bf16.mxu0 0
        %3154 = vmatpush1.bf16.msra.mxu0 0
        %3155 = vmatprep.subr.bf16.mxu0 %v3135
        %3156 = vmatpush1.bf16.msra.mxu0 %v3134
        %3157 = vmatprep.subr.bf16.mxu0 %v3133
        %3158 = vmatpush1.bf16.msra.mxu0 %v3132
        %3159 = vmatprep.subr.bf16.mxu0 0
        %3160 = vmatpush2.bf16.msra.mxu0 0
        %3161 = vmatprep.subr.bf16.mxu0 0
        %3162 = vmatpush2.bf16.msra.mxu0 0
        %3163 = vmatprep.subr.bf16.mxu0 0
        %3164 = vmatpush2.bf16.msra.mxu0 0
        %3165 = vmatprep.subr.bf16.mxu0 0
        %3166 = vmatpush2.bf16.msra.mxu0 0
        %3167 = vmatprep.subr.bf16.mxu0 0
        %3168 = vmatpush2.bf16.msra.mxu0 0
        %3169 = vmatprep.subr.bf16.mxu0 0
        %3170 = vmatpush2.bf16.msra.mxu0 0
        %3171 = vmatprep.subr.bf16.mxu0 0
        %3172 = vmatpush2.bf16.msra.mxu0 0
        %3173 = vmatprep.subr.bf16.mxu0 0
        %3174 = vmatpush2.bf16.msra.mxu0 0
        %3175 = vmatprep.mubr.bf16.mxu0 0
        %3176 = vmatmul.mubr.bf16.gmra.mxu0 %v3141
        %v3177 = vpop.f32.mrf.mxu0
        %v3178 = vadd.f32 %v3113, %v3177
        %v3179 = vpop.f32.mrf.mxu0
        %v3180 = vadd.f32 %v3117, %v3179
        %v3181 = vpop.f32.mrf.mxu0
        %v3182 = vpop.f32.mrf.mxu0
        %3183 = vdwg.mxu0
        %v3184 = vmax.f32 %v3178, 0.0
        %v3185 = vmax.f32 %v3180, 0.0
        %v3186 = vpack.c.bf16 %v3184, %v3184
        %v3187 = vpack.c.bf16 %v3185, %v3185
        %v3188 = vld [vmem:[%s643] sm:$0xf]
        %v3189 = vld [vmem:[%s643 + $0x4] sm:$0xf]
        %v3190 = vld [vmem:[%s643 + $0x8] sm:$0xf]
        %v3191 = vld [vmem:[%s643 + $0xc] sm:$0xf]
        %v3192 = vld [vmem:[%s643 + $0x10] sm:$0xf]
        %v3193 = vld [vmem:[%s643 + $0x14] sm:$0xf]
        %v3194 = vld [vmem:[%s643 + $0x18] sm:$0xf]
        %v3195 = vld [vmem:[%s643 + $0x1c] sm:$0xf]
        %v3196 = vld [vmem:[%s643 + $0x20] sm:$0xf]
        %v3197 = vld [vmem:[%s643 + $0x24] sm:$0xf]
        %v3198 = vld [vmem:[%s643 + $0x28] sm:$0xf]
        %v3199 = vld [vmem:[%s643 + $0x2c] sm:$0xf]
        %v3200 = vld [vmem:[%s643 + $0x30] sm:$0xf]
        %v3201 = vld [vmem:[%s643 + $0x34] sm:$0xf]
        %v3202 = vld [vmem:[%s643 + $0x38] sm:$0xf]
        %v3203 = vld [vmem:[%s643 + $0x3c] sm:$0xf]
        %v3204 = vld [vmem:[%s643 + $0x40] sm:$0xf]
        %v3205 = vld [vmem:[%s643 + $0x44] sm:$0xf]
        %v3206 = vld [vmem:[%s643 + $0x48] sm:$0xf]
        %v3207 = vld [vmem:[%s643 + $0x4c] sm:$0xf]
        %v3208 = vld [vmem:[%s643 + $0x50] sm:$0xf]
        %v3209 = vld [vmem:[%s643 + $0x54] sm:$0xf]
        %v3210 = vld [vmem:[%s643 + $0x58] sm:$0xf]
        %v3211 = vld [vmem:[%s643 + $0x5c] sm:$0xf]
        %v3212 = vld [vmem:[%s643 + $0x60] sm:$0xf]
        %v3213 = vld [vmem:[%s643 + $0x64] sm:$0xf]
        %v3214 = vld [vmem:[%s643 + $0x68] sm:$0xf]
        %v3215 = vld [vmem:[%s643 + $0x6c] sm:$0xf]
        %v3216 = vld [vmem:[%s643 + $0x70] sm:$0xf]
        %v3217 = vld [vmem:[%s643 + $0x74] sm:$0xf]
        %v3218 = vld [vmem:[%s643 + $0x78] sm:$0xf]
        %v3219 = vld [vmem:[%s643 + $0x7c] sm:$0xf]
        %v3220 = vlaneseq
        %v3221 = vshrl.u32 %v3220, 7
        %v3222 = vsub.s32 0, %v3221
        %v3223 = vrot.slane %v682, %v3222
        %v3256 = vunpack.c.l.b16 %v3188
        %v3257 = vunpack.c.l.b16 %v3189
        %v3258 = vunpack.c.l.b16 %v3190
        %v3259 = vunpack.c.l.b16 %v3191
        %v3260 = vunpack.c.l.b16 %v3192
        %v3261 = vunpack.c.l.b16 %v3193
        %v3262 = vunpack.c.l.b16 %v3194
        %v3263 = vunpack.c.l.b16 %v3195
        %v3264 = vunpack.c.l.b16 %v3196
        %v3265 = vunpack.c.l.b16 %v3197
        %v3266 = vunpack.c.l.b16 %v3198
        %v3267 = vunpack.c.l.b16 %v3199
        %v3268 = vunpack.c.l.b16 %v3200
        %v3269 = vunpack.c.l.b16 %v3201
        %v3270 = vunpack.c.l.b16 %v3202
        %v3271 = vunpack.c.l.b16 %v3203
        %v3272 = vunpack.c.l.b16 %v3204
        %v3273 = vunpack.c.l.b16 %v3205
        %v3274 = vunpack.c.l.b16 %v3206
        %v3275 = vunpack.c.l.b16 %v3207
        %v3276 = vunpack.c.l.b16 %v3208
        %v3277 = vunpack.c.l.b16 %v3209
        %v3278 = vunpack.c.l.b16 %v3210
        %v3279 = vunpack.c.l.b16 %v3211
        %v3280 = vunpack.c.l.b16 %v3212
        %v3281 = vunpack.c.l.b16 %v3213
        %v3282 = vunpack.c.l.b16 %v3214
        %v3283 = vunpack.c.l.b16 %v3215
        %v3284 = vunpack.c.l.b16 %v3216
        %v3285 = vunpack.c.l.b16 %v3217
        %v3286 = vunpack.c.l.b16 %v3218
        %v3287 = vunpack.c.l.b16 %v3219
        %v3288 = vpack.c.b16 %v3257, %v3256
        %v3289 = vpack.c.b16 %v3259, %v3258
        %v3290 = vpack.c.b16 %v3261, %v3260
        %v3291 = vpack.c.b16 %v3263, %v3262
        %v3292 = vpack.c.b16 %v3265, %v3264
        %v3293 = vpack.c.b16 %v3267, %v3266
        %v3294 = vpack.c.b16 %v3269, %v3268
        %v3295 = vpack.c.b16 %v3271, %v3270
        %v3296 = vpack.c.b16 %v3273, %v3272
        %v3297 = vpack.c.b16 %v3275, %v3274
        %v3298 = vpack.c.b16 %v3277, %v3276
        %v3299 = vpack.c.b16 %v3279, %v3278
        %v3300 = vpack.c.b16 %v3281, %v3280
        %v3301 = vpack.c.b16 %v3283, %v3282
        %v3302 = vpack.c.b16 %v3285, %v3284
        %v3303 = vpack.c.b16 %v3287, %v3286
        %3320 = vmatprep.subr.bf16.mxu0 0
        %3321 = vmatpush1.bf16.msra.mxu0 %v3295
        %3322 = vmatprep.subr.bf16.mxu0 0
        %3323 = vmatpush1.bf16.msra.mxu0 %v3294
        %3324 = vmatprep.subr.bf16.mxu0 0
        %3325 = vmatpush1.bf16.msra.mxu0 %v3293
        %3326 = vmatprep.subr.bf16.mxu0 0
        %3327 = vmatpush1.bf16.msra.mxu0 %v3292
        %3328 = vmatprep.subr.bf16.mxu0 0
        %3329 = vmatpush1.bf16.msra.mxu0 %v3291
        %3330 = vmatprep.subr.bf16.mxu0 0
        %3331 = vmatpush1.bf16.msra.mxu0 %v3290
        %3332 = vmatprep.subr.bf16.mxu0 0
        %3333 = vmatpush1.bf16.msra.mxu0 %v3289
        %3334 = vmatprep.subr.bf16.mxu0 0
        %3335 = vmatpush1.bf16.msra.mxu0 %v3288
        %3336 = vmatprep.subr.bf16.mxu0 0
        %3337 = vmatpush2.bf16.msra.mxu0 %v3303
        %3338 = vmatprep.subr.bf16.mxu0 0
        %3339 = vmatpush2.bf16.msra.mxu0 %v3302
        %3340 = vmatprep.subr.bf16.mxu0 0
        %3341 = vmatpush2.bf16.msra.mxu0 %v3301
        %3342 = vmatprep.subr.bf16.mxu0 0
        %3343 = vmatpush2.bf16.msra.mxu0 %v3300
        %3344 = vmatprep.subr.bf16.mxu0 0
        %3345 = vmatpush2.bf16.msra.mxu0 %v3299
        %3346 = vmatprep.subr.bf16.mxu0 0
        %3347 = vmatpush2.bf16.msra.mxu0 %v3298
        %3348 = vmatprep.subr.bf16.mxu0 0
        %3349 = vmatpush2.bf16.msra.mxu0 %v3297
        %3350 = vmatprep.subr.bf16.mxu0 0
        %3351 = vmatpush2.bf16.msra.mxu0 %v3296
        %3352 = vmatprep.mubr.bf16.mxu0 %v3187
        %3353 = vmatmul.mubr.bf16.gmra.mxu0 %v3186
        %v3354 = vpop.f32.mrf.mxu0
        %v3355 = vadd.f32 %v3223, %v3354
        %v3356 = vpop.f32.mrf.mxu0
        %v3357 = vpop.f32.mrf.mxu0
        %v3358 = vpop.f32.mrf.mxu0
        %3359 = vdwg.mxu0
        %v3360 = vadd.f32 %v3102, %v3355
        %v3361 = vsel %vm723, %v3360, 0.0
        %3362 = vadd.xlane.f32.xlu0 %v3361
        %v3363 = vpop.xlane.xlu0 %3362
        %v3364 = vmul.f32 %v3363, %v1877
        %v3365 = vsub.f32 %v3360, %v3364
        %v3366 = vmul.f32 %v3365, %v3365
        %v3367 = vsel %vm723, %v3366, 0.0
        %3368 = vadd.xlane.f32.xlu0 %v3367
        %v3369 = vpop.xlane.xlu0 %3368
        %v3370 = vmul.f32 %v3369, %v1877
        %v3371 = vadd.f32 %v3370, 1e-05
        %v3372 = vrsqrt.pop %v3371
        %v3373 = vmul.f32 %v3365, %v3372
        %v3374 = vlaneseq
        %v3375 = vshrl.u32 %v3374, 7
        %v3376 = vsub.s32 5, %v3375
        %v3377 = vrot.slane %v682, %v3376
        %v3378 = vmul.f32 %v3373, %v3377
        %v3379 = vlaneseq
        %v3380 = vshrl.u32 %v3379, 7
        %v3381 = vsub.s32 6, %v3380
        %v3382 = vrot.slane %v682, %v3381
        %v3383 = vadd.f32 %v3378, %v3382
        %3384 = vst.msk [vmem:[#allocation2] sm:$0xff] %vm723, %v3383
        %v3385 = vld [vmem:[%s9] sm:$0x1]
        %v3386 = vld [vmem:[%s10] sm:$0x1]
        %v3387 = vsel %vm723, %v3383, 0.0
        %3388 = vadd.xlane.f32.xlu0 %v3387
        %v3389 = vpop.xlane.xlu0 %3388
        %v3390 = vmul.f32 %v3389, %v1877
        %v3391 = vsub.f32 %v3383, %v3390
        %v3392 = vmul.f32 %v3391, %v3391
        %v3393 = vsel %vm723, %v3392, 0.0
        %3394 = vadd.xlane.f32.xlu0 %v3393
        %v3395 = vpop.xlane.xlu0 %3394
        %v3396 = vmul.f32 %v3395, %v1877
        %v3397 = vadd.f32 %v3396, 1e-05
        %v3398 = vrsqrt.pop %v3397
        %v3399 = vmul.f32 %v3391, %v3398
        %v3401 = vlaneseq
        %v3402 = vshrl.u32 %v3401, 7
        %v3403 = vsub.s32 0, %v3402
        %v3404 = vrot.slane %v3385, %v3403
        %v3406 = vmul.f32 %v3399, %v3404
        %v3408 = vlaneseq
        %v3409 = vshrl.u32 %v3408, 7
        %v3410 = vsub.s32 0, %v3409
        %v3411 = vrot.slane %v3386, %v3410
        %v3413 = vadd.f32 %v3406, %v3411
        %3414 = vst.msk [vmem:[%s624] sm:$0xff] %vm723, %v3413
        %s3415 = sand.u32 %s332, 1
        %s3416 = scalar_lea.sflag [#allocation7], %s3415
        %s3417 = sand.u32 %s332, 1
        %s3418 = smul.addr %s3417, 8
        %s3419 = scalar_lea.vmem [#allocation14], %s3418
        // Predicated region
        $region89: #{tpu_custom_call.1} parent=63 // pred_check
          %p3420 = pneg %p342
        $region90: #{tpu_custom_call.1} parent=63 // pred_check_branch
          %3422 = sbr.rel (%p3420) target = $region92
        $region91: #{tpu_custom_call.1} parent=63 // pred_region
          %s3424 = ssub.s32 128, 128
          %3425 = vsyncadd %s3416, %s3424
          %s3426 = smul.addr %s39, 2
          %s3427 = sadd.s32 %s38, %s3426
          %s3428 = smul.addr %s3427, 128
          %s3429 = scalar_lea.hbm %s11, %s3428
          %s3431 = sshll.u32 %s3419, 4
          %s3432 = int_to_ptr.vmem [resolvable:$true] %s3431
          %3434 = dma.vmem_to_hbm [thread:$0]  %s3432, 128, %s3429, %s3416
        $region92: #{tpu_custom_call.1} parent=63 // pred_fallthru
          _
      $region64: #{tpu_custom_call.1} parent=5 // pred_fallthru
        _
      %p3435 = scmp.le.s32.totalorder 2, %s29
      // Predicated region
      $region93: #{tpu_custom_call.1} parent=5 // pred_check
        %p3436 = pneg %p3435
      $region94: #{tpu_custom_call.1} parent=5 // pred_check_branch
        %3438 = sbr.rel (%p3436) target = $region96
      $region95: #{tpu_custom_call.1} parent=5 // pred_region
        %s3439 = ssub.s32 %s29, 2
        // Predicated region
        $region97: #{tpu_custom_call.1} parent=95 // pred_check
          %p3440 = pneg %p348
        $region98: #{tpu_custom_call.1} parent=95 // pred_check_branch
          %3442 = sbr.rel (%p3440) target = $region100
        $region99: #{tpu_custom_call.1} parent=95 // pred_region
          %s3443 = sand.u32 %s333, 1
          %s3444 = scalar_lea.sflag [#allocation7], %s3443
          %s3445 = sand.u32 %s333, 1
          %s3446 = smul.addr %s3445, 8
          %s3447 = scalar_lea.vmem [#allocation14], %s3446
          %3448 = dma.done %s3444, 128
        $region100: #{tpu_custom_call.1} parent=95 // pred_fallthru
          _
      $region96: #{tpu_custom_call.1} parent=5 // pred_fallthru
        _
    $region6: #{tpu_custom_call.1} parent=1 // loop_footer
      %s33 = sadd.s32 1, %s29
    $region7: #{tpu_custom_call.1} parent=1 // loop_footer_branch
      %28 = sbr.rel target = $region3
    $region8: #{tpu_custom_call.1} parent=1 // loop_exit
      _
    %3449 = vsyncpa [#allocation6], 1
    %s3450 = scalar_lea.sflag [#allocation6], 1
    %3451 = vsyncpa %s3450, 1
    %3452 = vsyncpa [#allocation9], 1
    %s3453 = scalar_lea.sflag [#allocation9], 1
    %3454 = vsyncpa %s3453, 1
    %3455 = vsyncpa [#allocation12], 1
    %s3456 = scalar_lea.sflag [#allocation12], 1
    %3457 = vsyncpa %s3456, 1
    %3458 = vsyncpa [#allocation7], 1
    %s3459 = scalar_lea.sflag [#allocation7], 1
    %3460 = vsyncpa %s3459, 1

</llo_original>
